<compile_context>
chip_gen: v6e
topology: v6e:2x2x1
jax: 0.10.0
libtpu: 0.0.40
codegen_flags: <defaults>
</compile_context>

<pallas_src>
import functools

import jax
import jax.numpy as jnp
from jax.experimental import pallas as pl
from jax.experimental.pallas import tpu as pltpu

LRELU_SLOPE = 0.2


# ----------------------------- Pallas kernels ------------------------------

def _conv1_kernel(p_ref, w_ref, b_ref, o_ref):
    # (M, 16) @ (16, 64) + bias, LeakyReLU(0.2). Whole operands in VMEM.
    y = jnp.dot(p_ref[...], w_ref[...], preferred_element_type=jnp.float32)
    y = y + b_ref[...]
    o_ref[...] = jnp.where(y > 0.0, y, LRELU_SLOPE * y)


def conv1_matmul(p, w, b):
    m, k = p.shape
    n = w.shape[1]
    # No grid: single invocation, whole-array VMEM refs (no pipelining buffers
    # needed for this tiny layer).
    return pl.pallas_call(
        _conv1_kernel,
        out_shape=jax.ShapeDtypeStruct((m, n), jnp.float32),
        cost_estimate=pl.CostEstimate(
            flops=2 * m * k * n,
            transcendentals=0,
            bytes_accessed=(p.size + w.size + b.size + m * n) * 4),
    )(p, w, b)


def _fused_tail_kernel(p2_ref, w2_ref, b2_ref, w3_ref, b3_ref, w4_ref, b4_ref,
                       zn_ref, zc_ref, zl_ref, h2_scr, acc_scr,
                       *, batch, spt, c2, latent_dim):
    """conv2 + flatten + fc1 (streamed w3) + fc2 + split + softmax.

    Grid axis t tiles the 3200-long reduction of fc1: each step owns `spt`
    spatial positions of the flattened conv2 output, i.e. a (spt*c2, 1024)
    slab of w3 (DMA'd by the BlockSpec and overlapped with compute).
    p2 rows are ordered (oh, ow, b), so the rows of h2 needed for spatial
    position s are the contiguous block h2[s*batch : (s+1)*batch, :].
    """
    t = pl.program_id(0)

    # --- step 0: conv2 matmul + bias + LeakyReLU; h2 stays resident in VMEM.
    @pl.when(t == 0)
    def _():
        h2 = jnp.dot(p2_ref[...], w2_ref[...],
                     preferred_element_type=jnp.float32) + b2_ref[...]
        h2_scr[...] = jnp.where(h2 > 0.0, h2, LRELU_SLOPE * h2)
        acc_scr[...] = jnp.zeros_like(acc_scr)

    # --- every step: accumulate this step's K-slab of fc1 ------------------
    for j in range(spt):                                      # static unroll
        rows = h2_scr[pl.ds((t * spt + j) * batch, batch), :]       # (B, c2)
        wj = w3_ref[pl.ds(j * c2, c2), :].astype(jnp.float32)       # (c2, 1024)
        acc_scr[...] += jnp.dot(rows, wj, preferred_element_type=jnp.float32)

    # --- last step: fc1 epilogue + fc2 + split + softmax, fused -------------
    @pl.when(t == pl.num_programs(0) - 1)
    def _():
        h3 = acc_scr[...] + b3_ref[...]
        h3 = jnp.where(h3 > 0.0, h3, LRELU_SLOPE * h3)
        z = jnp.dot(h3, w4_ref[...],
                    preferred_element_type=jnp.float32) + b4_ref[...]
        zn_ref[...] = z[:, :latent_dim]
        logits = z[:, latent_dim:]
        zl_ref[...] = logits
        m = jnp.max(logits, axis=-1, keepdims=True)
        e = jnp.exp(logits - m)
        zc_ref[...] = e / jnp.sum(e, axis=-1, keepdims=True)


def fused_tail(p2, w2, b2, w3, b3, w4, b4, *, batch, latent_dim, n_c, spt=5):
    rows, k2 = p2.shape                 # (25*B, 1024)
    c2 = w2.shape[1]                    # 128
    spatial = rows // batch             # 25
    hidden = w3.shape[1]                # 1024
    n_out = latent_dim + n_c
    assert spatial % spt == 0 and w3.shape[0] == spatial * c2
    kt = spatial // spt                 # reduction grid (5 steps)

    kernel = functools.partial(_fused_tail_kernel, batch=batch, spt=spt,
                               c2=c2, latent_dim=latent_dim)

    flops = 2 * (rows * k2 * c2
                 + batch * spatial * c2 * hidden
                 + batch * hidden * n_out)
    bytes_accessed = (p2.size * 4 + w2.size * 4 + b2.size * 4
                      + w3.size * 2 + b3.size * 4 + w4.size * 4 + b4.size * 4
                      + batch * (latent_dim + 2 * n_c) * 4)

    return pl.pallas_call(
        kernel,
        out_shape=(jax.ShapeDtypeStruct((batch, latent_dim), jnp.float32),
                   jax.ShapeDtypeStruct((batch, n_c), jnp.float32),
                   jax.ShapeDtypeStruct((batch, n_c), jnp.float32)),
        grid_spec=pltpu.PrefetchScalarGridSpec(
            num_scalar_prefetch=0,
            grid=(kt,),
            in_specs=[
                pl.BlockSpec((rows, k2), lambda t: (0, 0)),           # p2 (resident)
                pl.BlockSpec((k2, c2), lambda t: (0, 0)),             # w2 (resident)
                pl.BlockSpec((1, c2), lambda t: (0, 0)),              # b2
                pl.BlockSpec((spt * c2, hidden), lambda t: (t, 0)),   # w3 (streamed)
                pl.BlockSpec((1, hidden), lambda t: (0, 0)),          # b3
                pl.BlockSpec((hidden, n_out), lambda t: (0, 0)),      # w4
                pl.BlockSpec((1, n_out), lambda t: (0, 0)),           # b4
            ],
            out_specs=[
                pl.BlockSpec((batch, latent_dim), lambda t: (0, 0)),
                pl.BlockSpec((batch, n_c), lambda t: (0, 0)),
                pl.BlockSpec((batch, n_c), lambda t: (0, 0)),
            ],
            scratch_shapes=[
                pltpu.VMEM((rows, c2), jnp.float32),      # h2, VMEM-resident
                pltpu.VMEM((batch, hidden), jnp.float32),  # fc1 accumulator
            ]),
        compiler_params=pltpu.CompilerParams(
            dimension_semantics=("arbitrary",)),   # reduction axis w/ carry
        cost_estimate=pl.CostEstimate(flops=flops,
                                      transcendentals=batch * n_c,
                                      bytes_accessed=bytes_accessed),
    )(p2, w2, b2, w3, b3, w4, b4)


# --------------------------------- glue ------------------------------------

def im2col_nhwc(x, kh, kw, stride, *, batch_major=True):
    """x: (B, H, W, C) -> patches (B*OH*OW, KH*KW*C), columns in (kh, kw, c)
    order.  batch_major=True -> rows ordered (b, oh, ow);
    batch_major=False -> rows ordered (oh, ow, b)  (for in-kernel flattening).
    """
    B, H, W, C = x.shape
    oh = (H - kh) // stride + 1
    ow = (W - kw) // stride + 1
    pats = []
    for i in range(kh):
        for j in range(kw):
            pats.append(x[:, i:i + stride * (oh - 1) + 1:stride,
                            j:j + stride * (ow - 1) + 1:stride, :])
    pat = jnp.stack(pats, axis=3)                        # (B, oh, ow, kh*kw, C)
    if not batch_major:
        pat = pat.transpose(1, 2, 0, 3, 4)               # (oh, ow, B, kh*kw, C)
    return pat.reshape(B * oh * ow, kh * kw * C), oh, ow


def init_params(key, latent_dim, n_c):
    """Mirrors initialize_weights(): weights ~ N(0, 0.02), biases = 0.

    Weights are first drawn in canonical PyTorch layout, then re-laid-out ONCE
    for the kernels (NHWC im2col column order, (K, N) matmul shapes, bf16 w3).
    """
    ks = jax.random.split(key, 4)
    std = 0.02
    # canonical PyTorch layouts
    w1_pt = jax.random.normal(ks[0], (64, 1, 4, 4), jnp.float32) * std
    w2_pt = jax.random.normal(ks[1], (128, 64, 4, 4), jnp.float32) * std
    w3_pt = jax.random.normal(ks[2], (1024, 128 * 5 * 5), jnp.float32) * std
    w4_pt = jax.random.normal(ks[3], (latent_dim + n_c, 1024), jnp.float32) * std

    # one-time re-layout (no per-forward transposes)
    w1 = w1_pt.transpose(2, 3, 1, 0).reshape(16, 64)            # rows (kh,kw,c)
    w2 = w2_pt.transpose(2, 3, 1, 0).reshape(1024, 128)         # rows (kh,kw,c)
    w3 = (w3_pt.reshape(1024, 128, 5, 5)
               .transpose(2, 3, 1, 0)                           # (h, w, c, out)
               .reshape(3200, 1024)
               .astype(jnp.bfloat16))                           # bf16 stream, f32 accum
    w4 = w4_pt.T                                                # (1024, latent+n_c)

    return dict(
        w1=w1, b1=jnp.zeros((1, 64), jnp.float32),
        w2=w2, b2=jnp.zeros((1, 128), jnp.float32),
        w3=w3, b3=jnp.zeros((1, 1024), jnp.float32),
        w4=w4, b4=jnp.zeros((1, latent_dim + n_c), jnp.float32),
    )


def encoder_cnn_forward(params, x, latent_dim, n_c):
    """Replicates Encoder_CNN.forward(in_feat) -> (zn, zc, zc_logits)."""
    B = x.shape[0]
    x_nhwc = jnp.transpose(x, (0, 2, 3, 1))                    # one-time, ~6 KB

    # Conv2d(1, 64, 4, stride=2) + LeakyReLU(0.2)
    p1, oh1, ow1 = im2col_nhwc(x_nhwc, 4, 4, 2)                # (B*13*13, 16)
    h1 = conv1_matmul(p1, params["w1"], params["b1"])          # (B*169, 64)
    h1 = h1.reshape(B, oh1, ow1, 64)                           # NHWC, contiguous

    # Conv2d(64,128,4,s=2)+LReLU, Reshape(3200), Linear(3200,1024)+LReLU,
    # Linear(1024, latent+n_c), split, softmax -- single fused kernel.
    p2, _, _ = im2col_nhwc(h1, 4, 4, 2, batch_major=False)     # (25*B, 1024)
    zn, zc, zc_logits = fused_tail(
        p2, params["w2"], params["b2"], params["w3"], params["b3"],
        params["w4"], params["b4"],
        batch=B, latent_dim=latent_dim, n_c=n_c, spt=5)
    return zn, zc, zc_logits


def encoder_cnn_reference(params, x, latent_dim, n_c):
    """Pure-JAX reference using the same (re-laid-out) params."""
    B = x.shape[0]
    x_nhwc = jnp.transpose(x, (0, 2, 3, 1))
    p1, oh1, ow1 = im2col_nhwc(x_nhwc, 4, 4, 2)
    h1 = p1 @ params["w1"] + params["b1"]
    h1 = jnp.where(h1 > 0, h1, LRELU_SLOPE * h1).reshape(B, oh1, ow1, 64)
    p2, _, _ = im2col_nhwc(h1, 4, 4, 2, batch_major=False)
    h2 = p2 @ params["w2"] + params["b2"]
    h2 = jnp.where(h2 > 0, h2, LRELU_SLOPE * h2)               # rows (s, b)
    flat = h2.reshape(25, B, 128).transpose(1, 0, 2).reshape(B, 3200)
    h3 = flat @ params["w3"].astype(jnp.float32) + params["b3"]
    h3 = jnp.where(h3 > 0, h3, LRELU_SLOPE * h3)
    z = h3 @ params["w4"] + params["b4"]
    zn, zl = z[:, :latent_dim], z[:, latent_dim:]
    zc = jax.nn.softmax(zl, axis=1)
    return zn, zc, zl


if __name__ == "__main__":
    latent_dim, n_c = 8, 4
    # Spatial size 28x28 with 1 channel is fixed by the architecture
    # (cshape = (128, 5, 5) => 28 -> 13 -> 5 under k=4, stride=2).
    key = jax.random.PRNGKey(0)
    k_in, k_p = jax.random.split(key)
    x = jax.random.normal(k_in, (2, 1, 28, 28), jnp.float32)
    params = init_params(k_p, latent_dim, n_c)

    fwd = jax.jit(functools.partial(encoder_cnn_forward,
                                    latent_dim=latent_dim, n_c=n_c))
    zn, zc, zc_logits = fwd(params, x)
    jax.block_until_ready((zn, zc, zc_logits))

    assert zn.shape == (2, latent_dim)
    assert zc.shape == (2, n_c)
    assert zc_logits.shape == (2, n_c)
    assert bool(jnp.all(jnp.isfinite(zn))) and bool(jnp.all(jnp.isfinite(zc)))
    assert bool(jnp.allclose(jnp.sum(zc, axis=1), 1.0, atol=1e-5))

    # Cross-check against the pure-JAX reference (same params).
    rn, rc, rl = encoder_cnn_reference(params, x, latent_dim, n_c)
    assert bool(jnp.allclose(zn, rn, atol=1e-3, rtol=1e-2))
    assert bool(jnp.allclose(zc, rc, atol=1e-3, rtol=1e-2))
    assert bool(jnp.allclose(zc_logits, rl, atol=1e-3, rtol=1e-2))

    print("KERNEL_OK")
</pallas_src>

<mosaic_0001>
module attributes {stable_mosaic.version = 11 : i64} {
  func.func @_conv1_kernel(%arg0: memref<338x16xf32, #tpu.memory_space<vmem>>, %arg1: memref<16x64xf32, #tpu.memory_space<vmem>>, %arg2: memref<1x64xf32, #tpu.memory_space<vmem>>, %arg3: memref<338x64xf32, #tpu.memory_space<vmem>>) attributes {dimension_semantics = [], scalar_prefetch = 0 : i64, scratch_operands = 0 : i64, tpu.core_type = #tpu.core_type<tc>} {
    %c0 = arith.constant 0 : index
    %c0_0 = arith.constant 0 : index
    %0 = vector.load %arg0[%c0, %c0_0] : memref<338x16xf32, #tpu.memory_space<vmem>>, vector<338x16xf32>
    %c0_1 = arith.constant 0 : index
    %c0_2 = arith.constant 0 : index
    %1 = vector.load %arg1[%c0_1, %c0_2] : memref<16x64xf32, #tpu.memory_space<vmem>>, vector<16x64xf32>
    %cst = arith.constant dense<0.000000e+00> : vector<338x64xf32>
    %2 = tpu.matmul %0, %1, %cst {dimension_numbers = #tpu.dot_dimension_numbers<[1], [0], [0], [1], [0, 0, 1, 1], [], []>} : vector<338x16xf32>, vector<16x64xf32>, vector<338x64xf32> -> vector<338x64xf32>
    %c0_3 = arith.constant 0 : index
    %c0_4 = arith.constant 0 : index
    %3 = vector.load %arg2[%c0_3, %c0_4] : memref<1x64xf32, #tpu.memory_space<vmem>>, vector<1x64xf32>
    %4 = vector.broadcast %3 : vector<1x64xf32> to vector<338x64xf32>
    %5 = arith.addf %2, %4 : vector<338x64xf32>
    %cst_5 = arith.constant 0.000000e+00 : f32
    %6 = vector.broadcast %cst_5 : f32 to vector<338x64xf32>
    %7 = arith.cmpf ogt, %5, %6 : vector<338x64xf32>
    %cst_6 = arith.constant 2.000000e-01 : f32
    %8 = vector.broadcast %cst_6 : f32 to vector<338x64xf32>
    %9 = arith.mulf %8, %5 : vector<338x64xf32>
    %10 = arith.select %7, %5, %9 : vector<338x64xi1>, vector<338x64xf32>
    %c0_7 = arith.constant 0 : index
    %c0_8 = arith.constant 0 : index
    %11 = vector.load %arg3[%c0_7, %c0_8] : memref<338x64xf32, #tpu.memory_space<vmem>>, vector<338x64xf32>
    tpu.vector_store %arg3[%c0_7, %c0_8], %10 {strides = array<i32>} : memref<338x64xf32, #tpu.memory_space<vmem>>, vector<338x64xf32>,
    return
  }
}

module attributes {stable_mosaic.version = 11 : i64} {
  func.func @_fused_tail_kernel(%arg0: i32, %arg1: memref<50x1024xf32, #tpu.memory_space<vmem>>, %arg2: memref<1024x128xf32, #tpu.memory_space<vmem>>, %arg3: memref<1x128xf32, #tpu.memory_space<vmem>>, %arg4: memref<640x1024xbf16, #tpu.memory_space<vmem>>, %arg5: memref<1x1024xf32, #tpu.memory_space<vmem>>, %arg6: memref<1024x12xf32, #tpu.memory_space<vmem>>, %arg7: memref<1x12xf32, #tpu.memory_space<vmem>>, %arg8: memref<2x8xf32, #tpu.memory_space<vmem>>, %arg9: memref<2x4xf32, #tpu.memory_space<vmem>>, %arg10: memref<2x4xf32, #tpu.memory_space<vmem>>, %arg11: memref<50x128xf32, #tpu.memory_space<vmem>>, %arg12: memref<2x1024xf32, #tpu.memory_space<vmem>>) attributes {dimension_semantics = [#tpu.dimension_semantics<arbitrary>], iteration_bounds = array<i64: 5>, scalar_prefetch = 0 : i64, scratch_operands = 2 : i64, tpu.core_type = #tpu.core_type<tc>, window_params = [{pipeline_mode = #tpu.pipeline_mode<synchronous>, transform_indices = @transform_0, window_bounds = array<i64: 50, 1024>}, {pipeline_mode = #tpu.pipeline_mode<synchronous>, transform_indices = @transform_1, window_bounds = array<i64: 1024, 128>}, {pipeline_mode = #tpu.pipeline_mode<synchronous>, transform_indices = @transform_2, window_bounds = array<i64: 1, 128>}, {transform_indices = @transform_3, window_bounds = array<i64: 640, 1024>}, {pipeline_mode = #tpu.pipeline_mode<synchronous>, transform_indices = @transform_4, window_bounds = array<i64: 1, 1024>}, {pipeline_mode = #tpu.pipeline_mode<synchronous>, transform_indices = @transform_5, window_bounds = array<i64: 1024, 12>}, {pipeline_mode = #tpu.pipeline_mode<synchronous>, transform_indices = @transform_6, window_bounds = array<i64: 1, 12>}, {pipeline_mode = #tpu.pipeline_mode<synchronous>, transform_indices = @transform_7, window_bounds = array<i64: 2, 8>}, {pipeline_mode = #tpu.pipeline_mode<synchronous>, transform_indices = @transform_8, window_bounds = array<i64: 2, 4>}, {pipeline_mode = #tpu.pipeline_mode<synchronous>, transform_indices = @transform_9, window_bounds = array<i64: 2, 4>}]} {
    %c0_i32 = arith.constant 0 : i32
    %0 = arith.cmpi eq, %arg0, %c0_i32 : i32
    %1 = arith.extui %0 : i1 to i32
    %c0_i32_0 = arith.constant 0 : i32
    %2 = arith.cmpi ne, %1, %c0_i32_0 : i32
    scf.if %2 {
      %c0_47 = arith.constant 0 : index
      %c0_48 = arith.constant 0 : index
      %61 = vector.load %arg1[%c0_47, %c0_48] : memref<50x1024xf32, #tpu.memory_space<vmem>>, vector<50x1024xf32>
      %c0_49 = arith.constant 0 : index
      %c0_50 = arith.constant 0 : index
      %62 = vector.load %arg2[%c0_49, %c0_50] : memref<1024x128xf32, #tpu.memory_space<vmem>>, vector<1024x128xf32>
      %cst_51 = arith.constant dense<0.000000e+00> : vector<50x128xf32>
      %63 = tpu.matmul %61, %62, %cst_51 {dimension_numbers = #tpu.dot_dimension_numbers<[1], [0], [0], [1], [0, 0, 1, 1], [], []>} : vector<50x1024xf32>, vector<1024x128xf32>, vector<50x128xf32> -> vector<50x128xf32>
      %c0_52 = arith.constant 0 : index
      %c0_53 = arith.constant 0 : index
      %64 = vector.load %arg3[%c0_52, %c0_53] : memref<1x128xf32, #tpu.memory_space<vmem>>, vector<1x128xf32>
      %65 = vector.broadcast %64 : vector<1x128xf32> to vector<50x128xf32>
      %66 = arith.addf %63, %65 : vector<50x128xf32>
      %cst_54 = arith.constant 0.000000e+00 : f32
      %67 = vector.broadcast %cst_54 : f32 to vector<50x128xf32>
      %68 = arith.cmpf ogt, %66, %67 : vector<50x128xf32>
      %cst_55 = arith.constant 2.000000e-01 : f32
      %69 = vector.broadcast %cst_55 : f32 to vector<50x128xf32>
      %70 = arith.mulf %69, %66 : vector<50x128xf32>
      %71 = arith.select %68, %66, %70 : vector<50x128xi1>, vector<50x128xf32>
      %c0_56 = arith.constant 0 : index
      %c0_57 = arith.constant 0 : index
      %72 = vector.load %arg11[%c0_56, %c0_57] : memref<50x128xf32, #tpu.memory_space<vmem>>, vector<50x128xf32>
      tpu.vector_store %arg11[%c0_56, %c0_57], %71 {strides = array<i32>} : memref<50x128xf32, #tpu.memory_space<vmem>>, vector<50x128xf32>,
      %cst_58 = arith.constant 0.000000e+00 : f32
      %73 = vector.broadcast %cst_58 : f32 to vector<2x1024xf32>
      %c0_59 = arith.constant 0 : index
      %c0_60 = arith.constant 0 : index
      %74 = vector.load %arg12[%c0_59, %c0_60] : memref<2x1024xf32, #tpu.memory_space<vmem>>, vector<2x1024xf32>
      tpu.vector_store %arg12[%c0_59, %c0_60], %73 {strides = array<i32>} : memref<2x1024xf32, #tpu.memory_space<vmem>>, vector<2x1024xf32>,
    } else {
    }
    %c5_i32 = arith.constant 5 : i32
    %3 = arith.muli %arg0, %c5_i32 : i32
    %c0_i32_1 = arith.constant 0 : i32
    %4 = arith.addi %3, %c0_i32_1 : i32
    %c2_i32 = arith.constant 2 : i32
    %5 = arith.muli %4, %c2_i32 : i32
    %6 = arith.index_cast %5 : i32 to index
    %c0 = arith.constant 0 : index
    %7 = vector.load %arg11[%6, %c0] : memref<50x128xf32, #tpu.memory_space<vmem>>, vector<2x128xf32>
    %c0_2 = arith.constant 0 : index
    %c0_3 = arith.constant 0 : index
    %8 = vector.load %arg4[%c0_2, %c0_3] : memref<640x1024xbf16, #tpu.memory_space<vmem>>, vector<128x1024xbf16>
    %9 = arith.extf %8 : vector<128x1024xbf16> to vector<128x1024xf32>
    %c0_4 = arith.constant 0 : index
    %c0_5 = arith.constant 0 : index
    %10 = vector.load %arg12[%c0_4, %c0_5] : memref<2x1024xf32, #tpu.memory_space<vmem>>, vector<2x1024xf32>
    %cst = arith.constant dense<0.000000e+00> : vector<2x1024xf32>
    %11 = tpu.matmul %7, %9, %cst {dimension_numbers = #tpu.dot_dimension_numbers<[1], [0], [0], [1], [0, 0, 1, 1], [], []>} : vector<2x128xf32>, vector<128x1024xf32>, vector<2x1024xf32> -> vector<2x1024xf32>
    %12 = arith.addf %10, %11 : vector<2x1024xf32>
    %c0_6 = arith.constant 0 : index
    %c0_7 = arith.constant 0 : index
    %13 = vector.load %arg12[%c0_6, %c0_7] : memref<2x1024xf32, #tpu.memory_space<vmem>>, vector<2x1024xf32>
    tpu.vector_store %arg12[%c0_6, %c0_7], %12 {strides = array<i32>} : memref<2x1024xf32, #tpu.memory_space<vmem>>, vector<2x1024xf32>,
    %c5_i32_8 = arith.constant 5 : i32
    %14 = arith.muli %arg0, %c5_i32_8 : i32
    %c1_i32 = arith.constant 1 : i32
    %15 = arith.addi %14, %c1_i32 : i32
    %c2_i32_9 = arith.constant 2 : i32
    %16 = arith.muli %15, %c2_i32_9 : i32
    %17 = arith.index_cast %16 : i32 to index
    %c0_10 = arith.constant 0 : index
    %18 = vector.load %arg11[%17, %c0_10] : memref<50x128xf32, #tpu.memory_space<vmem>>, vector<2x128xf32>
    %c128 = arith.constant 128 : index
    %c0_11 = arith.constant 0 : index
    %19 = vector.load %arg4[%c128, %c0_11] : memref<640x1024xbf16, #tpu.memory_space<vmem>>, vector<128x1024xbf16>
    %20 = arith.extf %19 : vector<128x1024xbf16> to vector<128x1024xf32>
    %c0_12 = arith.constant 0 : index
    %c0_13 = arith.constant 0 : index
    %21 = vector.load %arg12[%c0_12, %c0_13] : memref<2x1024xf32, #tpu.memory_space<vmem>>, vector<2x1024xf32>
    %cst_14 = arith.constant dense<0.000000e+00> : vector<2x1024xf32>
    %22 = tpu.matmul %18, %20, %cst_14 {dimension_numbers = #tpu.dot_dimension_numbers<[1], [0], [0], [1], [0, 0, 1, 1], [], []>} : vector<2x128xf32>, vector<128x1024xf32>, vector<2x1024xf32> -> vector<2x1024xf32>
    %23 = arith.addf %21, %22 : vector<2x1024xf32>
    %c0_15 = arith.constant 0 : index
    %c0_16 = arith.constant 0 : index
    %24 = vector.load %arg12[%c0_15, %c0_16] : memref<2x1024xf32, #tpu.memory_space<vmem>>, vector<2x1024xf32>
    tpu.vector_store %arg12[%c0_15, %c0_16], %23 {strides = array<i32>} : memref<2x1024xf32, #tpu.memory_space<vmem>>, vector<2x1024xf32>,
    %c5_i32_17 = arith.constant 5 : i32
    %25 = arith.muli %arg0, %c5_i32_17 : i32
    %c2_i32_18 = arith.constant 2 : i32
    %26 = arith.addi %25, %c2_i32_18 : i32
    %c2_i32_19 = arith.constant 2 : i32
    %27 = arith.muli %26, %c2_i32_19 : i32
    %28 = arith.index_cast %27 : i32 to index
    %c0_20 = arith.constant 0 : index
    %29 = vector.load %arg11[%28, %c0_20] : memref<50x128xf32, #tpu.memory_space<vmem>>, vector<2x128xf32>
    %c256 = arith.constant 256 : index
    %c0_21 = arith.constant 0 : index
    %30 = vector.load %arg4[%c256, %c0_21] : memref<640x1024xbf16, #tpu.memory_space<vmem>>, vector<128x1024xbf16>
    %31 = arith.extf %30 : vector<128x1024xbf16> to vector<128x1024xf32>
    %c0_22 = arith.constant 0 : index
    %c0_23 = arith.constant 0 : index
    %32 = vector.load %arg12[%c0_22, %c0_23] : memref<2x1024xf32, #tpu.memory_space<vmem>>, vector<2x1024xf32>
    %cst_24 = arith.constant dense<0.000000e+00> : vector<2x1024xf32>
    %33 = tpu.matmul %29, %31, %cst_24 {dimension_numbers = #tpu.dot_dimension_numbers<[1], [0], [0], [1], [0, 0, 1, 1], [], []>} : vector<2x128xf32>, vector<128x1024xf32>, vector<2x1024xf32> -> vector<2x1024xf32>
    %34 = arith.addf %32, %33 : vector<2x1024xf32>
    %c0_25 = arith.constant 0 : index
    %c0_26 = arith.constant 0 : index
    %35 = vector.load %arg12[%c0_25, %c0_26] : memref<2x1024xf32, #tpu.memory_space<vmem>>, vector<2x1024xf32>
    tpu.vector_store %arg12[%c0_25, %c0_26], %34 {strides = array<i32>} : memref<2x1024xf32, #tpu.memory_space<vmem>>, vector<2x1024xf32>,
    %c5_i32_27 = arith.constant 5 : i32
    %36 = arith.muli %arg0, %c5_i32_27 : i32
    %c3_i32 = arith.constant 3 : i32
    %37 = arith.addi %36, %c3_i32 : i32
    %c2_i32_28 = arith.constant 2 : i32
    %38 = arith.muli %37, %c2_i32_28 : i32
    %39 = arith.index_cast %38 : i32 to index
    %c0_29 = arith.constant 0 : index
    %40 = vector.load %arg11[%39, %c0_29] : memref<50x128xf32, #tpu.memory_space<vmem>>, vector<2x128xf32>
    %c384 = arith.constant 384 : index
    %c0_30 = arith.constant 0 : index
    %41 = vector.load %arg4[%c384, %c0_30] : memref<640x1024xbf16, #tpu.memory_space<vmem>>, vector<128x1024xbf16>
    %42 = arith.extf %41 : vector<128x1024xbf16> to vector<128x1024xf32>
    %c0_31 = arith.constant 0 : index
    %c0_32 = arith.constant 0 : index
    %43 = vector.load %arg12[%c0_31, %c0_32] : memref<2x1024xf32, #tpu.memory_space<vmem>>, vector<2x1024xf32>
    %cst_33 = arith.constant dense<0.000000e+00> : vector<2x1024xf32>
    %44 = tpu.matmul %40, %42, %cst_33 {dimension_numbers = #tpu.dot_dimension_numbers<[1], [0], [0], [1], [0, 0, 1, 1], [], []>} : vector<2x128xf32>, vector<128x1024xf32>, vector<2x1024xf32> -> vector<2x1024xf32>
    %45 = arith.addf %43, %44 : vector<2x1024xf32>
    %c0_34 = arith.constant 0 : index
    %c0_35 = arith.constant 0 : index
    %46 = vector.load %arg12[%c0_34, %c0_35] : memref<2x1024xf32, #tpu.memory_space<vmem>>, vector<2x1024xf32>
    tpu.vector_store %arg12[%c0_34, %c0_35], %45 {strides = array<i32>} : memref<2x1024xf32, #tpu.memory_space<vmem>>, vector<2x1024xf32>,
    %c5_i32_36 = arith.constant 5 : i32
    %47 = arith.muli %arg0, %c5_i32_36 : i32
    %c4_i32 = arith.constant 4 : i32
    %48 = arith.addi %47, %c4_i32 : i32
    %c2_i32_37 = arith.constant 2 : i32
    %49 = arith.muli %48, %c2_i32_37 : i32
    %50 = arith.index_cast %49 : i32 to index
    %c0_38 = arith.constant 0 : index
    %51 = vector.load %arg11[%50, %c0_38] : memref<50x128xf32, #tpu.memory_space<vmem>>, vector<2x128xf32>
    %c512 = arith.constant 512 : index
    %c0_39 = arith.constant 0 : index
    %52 = vector.load %arg4[%c512, %c0_39] : memref<640x1024xbf16, #tpu.memory_space<vmem>>, vector<128x1024xbf16>
    %53 = arith.extf %52 : vector<128x1024xbf16> to vector<128x1024xf32>
    %c0_40 = arith.constant 0 : index
    %c0_41 = arith.constant 0 : index
    %54 = vector.load %arg12[%c0_40, %c0_41] : memref<2x1024xf32, #tpu.memory_space<vmem>>, vector<2x1024xf32>
    %cst_42 = arith.constant dense<0.000000e+00> : vector<2x1024xf32>
    %55 = tpu.matmul %51, %53, %cst_42 {dimension_numbers = #tpu.dot_dimension_numbers<[1], [0], [0], [1], [0, 0, 1, 1], [], []>} : vector<2x128xf32>, vector<128x1024xf32>, vector<2x1024xf32> -> vector<2x1024xf32>
    %56 = arith.addf %54, %55 : vector<2x1024xf32>
    %c0_43 = arith.constant 0 : index
    %c0_44 = arith.constant 0 : index
    %57 = vector.load %arg12[%c0_43, %c0_44] : memref<2x1024xf32, #tpu.memory_space<vmem>>, vector<2x1024xf32>
    tpu.vector_store %arg12[%c0_43, %c0_44], %56 {strides = array<i32>} : memref<2x1024xf32, #tpu.memory_space<vmem>>, vector<2x1024xf32>,
    %c4_i32_45 = arith.constant 4 : i32
    %58 = arith.cmpi eq, %arg0, %c4_i32_45 : i32
    %59 = arith.extui %58 : i1 to i32
    %c0_i32_46 = arith.constant 0 : i32
    %60 = arith.cmpi ne, %59, %c0_i32_46 : i32
    scf.if %60 {
      %c0_47 = arith.constant 0 : index
      %c0_48 = arith.constant 0 : index
      %61 = vector.load %arg12[%c0_47, %c0_48] : memref<2x1024xf32, #tpu.memory_space<vmem>>, vector<2x1024xf32>
      %c0_49 = arith.constant 0 : index
      %c0_50 = arith.constant 0 : index
      %62 = vector.load %arg5[%c0_49, %c0_50] : memref<1x1024xf32, #tpu.memory_space<vmem>>, vector<1x1024xf32>
      %63 = vector.broadcast %62 : vector<1x1024xf32> to vector<2x1024xf32>
      %64 = arith.addf %61, %63 : vector<2x1024xf32>
      %cst_51 = arith.constant 0.000000e+00 : f32
      %65 = vector.broadcast %cst_51 : f32 to vector<2x1024xf32>
      %66 = arith.cmpf ogt, %64, %65 : vector<2x1024xf32>
      %cst_52 = arith.constant 2.000000e-01 : f32
      %67 = vector.broadcast %cst_52 : f32 to vector<2x1024xf32>
      %68 = arith.mulf %67, %64 : vector<2x1024xf32>
      %69 = arith.select %66, %64, %68 : vector<2x1024xi1>, vector<2x1024xf32>
      %c0_53 = arith.constant 0 : index
      %c0_54 = arith.constant 0 : index
      %70 = vector.load %arg6[%c0_53, %c0_54] : memref<1024x12xf32, #tpu.memory_space<vmem>>, vector<1024x12xf32>
      %cst_55 = arith.constant dense<0.000000e+00> : vector<2x12xf32>
      %71 = tpu.matmul %69, %70, %cst_55 {dimension_numbers = #tpu.dot_dimension_numbers<[1], [0], [0], [1], [0, 0, 1, 1], [], []>} : vector<2x1024xf32>, vector<1024x12xf32>, vector<2x12xf32> -> vector<2x12xf32>
      %c0_56 = arith.constant 0 : index
      %c0_57 = arith.constant 0 : index
      %72 = vector.load %arg7[%c0_56, %c0_57] : memref<1x12xf32, #tpu.memory_space<vmem>>, vector<1x12xf32>
      %73 = vector.broadcast %72 : vector<1x12xf32> to vector<2x12xf32>
      %74 = arith.addf %71, %73 : vector<2x12xf32>
      %75 = vector.extract_strided_slice %74 {offsets = [0, 0], sizes = [2, 8], strides = [1, 1]} : vector<2x12xf32> to vector<2x8xf32>
      %c0_58 = arith.constant 0 : index
      %c0_59 = arith.constant 0 : index
      %76 = vector.load %arg8[%c0_58, %c0_59] : memref<2x8xf32, #tpu.memory_space<vmem>>, vector<2x8xf32>
      tpu.vector_store %arg8[%c0_58, %c0_59], %75 {strides = array<i32>} : memref<2x8xf32, #tpu.memory_space<vmem>>, vector<2x8xf32>,
      %77 = vector.extract_strided_slice %74 {offsets = [0, 8], sizes = [2, 4], strides = [1, 1]} : vector<2x12xf32> to vector<2x4xf32>
      %c0_60 = arith.constant 0 : index
      %c0_61 = arith.constant 0 : index
      %78 = vector.load %arg10[%c0_60, %c0_61] : memref<2x4xf32, #tpu.memory_space<vmem>>, vector<2x4xf32>
      tpu.vector_store %arg10[%c0_60, %c0_61], %77 {strides = array<i32>} : memref<2x4xf32, #tpu.memory_space<vmem>>, vector<2x4xf32>,
      %cst_62 = arith.constant dense<0xFF800000> : vector<2xf32>
      %79 = vector.multi_reduction <maximumf>, %77, %cst_62 [1] : vector<2x4xf32> to vector<2xf32>
      %80 = vector.shape_cast %79 : vector<2xf32> to vector<2x1xf32>
      %81 = vector.broadcast %80 : vector<2x1xf32> to vector<2x4xf32>
      %82 = arith.subf %77, %81 : vector<2x4xf32>
      %83 = math.exp %82 : vector<2x4xf32>
      %cst_63 = arith.constant dense<0.000000e+00> : vector<2xf32>
      %84 = vector.multi_reduction <add>, %83, %cst_63 [1] : vector<2x4xf32> to vector<2xf32>
      %85 = vector.shape_cast %84 : vector<2xf32> to vector<2x1xf32>
      %86 = vector.broadcast %85 : vector<2x1xf32> to vector<2x4xf32>
      %87 = arith.divf %83, %86 : vector<2x4xf32>
      %c0_64 = arith.constant 0 : index
      %c0_65 = arith.constant 0 : index
      %88 = vector.load %arg9[%c0_64, %c0_65] : memref<2x4xf32, #tpu.memory_space<vmem>>, vector<2x4xf32>
      tpu.vector_store %arg9[%c0_64, %c0_65], %87 {strides = array<i32>} : memref<2x4xf32, #tpu.memory_space<vmem>>, vector<2x4xf32>,
    } else {
    }
    return
  }
  func.func @transform_0(%arg0: i32) -> (i32, i32) {
    %c0_i32 = arith.constant 0 : i32
    %c0_i32_0 = arith.constant 0 : i32
    %c0_i32_1 = arith.constant 0 : i32
    return %c0_i32, %c0_i32_0 : i32, i32
  }
  func.func @transform_1(%arg0: i32) -> (i32, i32) {
    %c0_i32 = arith.constant 0 : i32
    %c0_i32_0 = arith.constant 0 : i32
    %c0_i32_1 = arith.constant 0 : i32
    return %c0_i32, %c0_i32_0 : i32, i32
  }
  func.func @transform_2(%arg0: i32) -> (i32, i32) {
    %c0_i32 = arith.constant 0 : i32
    %c0_i32_0 = arith.constant 0 : i32
    %c0_i32_1 = arith.constant 0 : i32
    return %c0_i32, %c0_i32_0 : i32, i32
  }
  func.func @transform_3(%arg0: i32) -> (i32, i32) {
    %c0_i32 = arith.constant 0 : i32
    %c0_i32_0 = arith.constant 0 : i32
    return %arg0, %c0_i32 : i32, i32
  }
  func.func @transform_4(%arg0: i32) -> (i32, i32) {
    %c0_i32 = arith.constant 0 : i32
    %c0_i32_0 = arith.constant 0 : i32
    %c0_i32_1 = arith.constant 0 : i32
    return %c0_i32, %c0_i32_0 : i32, i32
  }
  func.func @transform_5(%arg0: i32) -> (i32, i32) {
    %c0_i32 = arith.constant 0 : i32
    %c0_i32_0 = arith.constant 0 : i32
    %c0_i32_1 = arith.constant 0 : i32
    return %c0_i32, %c0_i32_0 : i32, i32
  }
  func.func @transform_6(%arg0: i32) -> (i32, i32) {
    %c0_i32 = arith.constant 0 : i32
    %c0_i32_0 = arith.constant 0 : i32
    %c0_i32_1 = arith.constant 0 : i32
    return %c0_i32, %c0_i32_0 : i32, i32
  }
  func.func @transform_7(%arg0: i32) -> (i32, i32) {
    %c0_i32 = arith.constant 0 : i32
    %c0_i32_0 = arith.constant 0 : i32
    %c0_i32_1 = arith.constant 0 : i32
    return %c0_i32, %c0_i32_0 : i32, i32
  }
  func.func @transform_8(%arg0: i32) -> (i32, i32) {
    %c0_i32 = arith.constant 0 : i32
    %c0_i32_0 = arith.constant 0 : i32
    %c0_i32_1 = arith.constant 0 : i32
    return %c0_i32, %c0_i32_0 : i32, i32
  }
  func.func @transform_9(%arg0: i32) -> (i32, i32) {
    %c0_i32 = arith.constant 0 : i32
    %c0_i32_0 = arith.constant 0 : i32
    %c0_i32_1 = arith.constant 0 : i32
    return %c0_i32, %c0_i32_0 : i32, i32
  }
}

</mosaic_0001>

<llo_original>
// kernel: encoder_cnn_forward.2
$region0: #{encoder_cnn_forward.2}
  #allocation0 [shape = 'u32[]', space=smem, size = 0x4, offset = 0x4, fixed_abs, tag = 'smem constant byte address 0x4 - core index']
  #allocation1 [shape = 'u32[144,128]{1,0:T(1,128)}', space=vmem, size = 0x12000, scoped, tag = 'internal scratch']
  %s0 = inlined_call_operand.vmem [shape: f32[338,16], index: 0, kind: input, shape index: {}]
  %s1 = inlined_call_operand.hbm [shape: f32[16,64], index: 1, kind: input, shape index: {}]
  %s2 = inlined_call_operand.hbm [shape: f32[1,64], index: 2, kind: input, shape index: {}]
  %s3 = inlined_call_operand.vmem [shape: f32[338,64], index: 3, kind: output, shape index: {}]
  %s4 = sld [smem:[#allocation0]]
  $region30: #{encoder_cnn_forward.2} parent=0
    _
  %s6 = ssub.s32 1, %s4
  %s7 = scalar_select 0, %s6, %s4
  $region1: #{encoder_cnn_forward.2} parent=0
    #allocation2 [shape = 'u8[8192]{0}', space=vmem, size = 0x2000, scoped, tag = 'input window, operand 1, single buffered']
    #allocation3 [shape = 's32[1]{0}', space=sflag, size = 0x4, scoped, tag = 'scoped memory for encoder_cnn_forward.2']
    #allocation4 [shape = 'u8[512]{0}', space=vmem, size = 0x400, scoped, tag = 'input window, operand 2, single buffered']
    #allocation5 [shape = 's32[1]{0}', space=sflag, size = 0x4, scoped, tag = 'scoped memory for encoder_cnn_forward.2']
    %8 = vsyncpa [#allocation3], 0
    %9 = vsyncpa [#allocation5], 0
    // Predicated region
    $region2: #{encoder_cnn_forward.2} parent=1 // pred_check
      _
    $region3: #{encoder_cnn_forward.2} parent=1 // pred_check_branch
      %11 = sbr.rel (0) target = $region5
    $region4: #{encoder_cnn_forward.2} parent=1 // pred_region
      _
    $region5: #{encoder_cnn_forward.2} parent=1 // pred_fallthru
      _
    // Predicated region
    $region6: #{encoder_cnn_forward.2} parent=1 // pred_check
      _
    $region7: #{encoder_cnn_forward.2} parent=1 // pred_check_branch
      %13 = sbr.rel (0) target = $region9
    $region8: #{encoder_cnn_forward.2} parent=1 // pred_region
      %s15 = ssub.s32 256, 256
      %16 = vsyncadd [#allocation3], %s15
      %s17 = sshll.u32 [#allocation2], 4
      %s18 = int_to_ptr.vmem [resolvable:$true] %s17
      %23 = dma.hbm_to_vmem [thread:$0]  %s1, 256, %s18, [#allocation3], 128, 128, 8
    $region9: #{encoder_cnn_forward.2} parent=1 // pred_fallthru
      _
    // Predicated region
    $region10: #{encoder_cnn_forward.2} parent=1 // pred_check
      _
    $region11: #{encoder_cnn_forward.2} parent=1 // pred_check_branch
      %25 = sbr.rel (0) target = $region13
    $region12: #{encoder_cnn_forward.2} parent=1 // pred_region
      %s27 = ssub.s32 16, 16
      %28 = vsyncadd [#allocation5], %s27
      %s30 = sshll.u32 [#allocation4], 4
      %s31 = int_to_ptr.vmem [resolvable:$true] %s30
      %33 = dma.hbm_to_vmem [thread:$0]  %s2, 16, %s31, [#allocation5]
    $region13: #{encoder_cnn_forward.2} parent=1 // pred_fallthru
      _
    // Predicated region
    $region14: #{encoder_cnn_forward.2} parent=1 // pred_check
      _
    $region15: #{encoder_cnn_forward.2} parent=1 // pred_check_branch
      %35 = sbr.rel (0) target = $region17
    $region16: #{encoder_cnn_forward.2} parent=1 // pred_region
      %36 = dma.done [#allocation3], 256
    $region17: #{encoder_cnn_forward.2} parent=1 // pred_fallthru
      _
    // Predicated region
    $region18: #{encoder_cnn_forward.2} parent=1 // pred_check
      _
    $region19: #{encoder_cnn_forward.2} parent=1 // pred_check_branch
      %38 = sbr.rel (0) target = $region21
    $region20: #{encoder_cnn_forward.2} parent=1 // pred_region
      %39 = dma.done [#allocation5], 16
    $region21: #{encoder_cnn_forward.2} parent=1 // pred_fallthru
      _
    %v40 = vld [vmem:[%s0] sm:$0xff]
    %v41 = vld [vmem:[%s0 + $0x8] sm:$0xff]
    %v42 = vld [vmem:[%s0 + $0x10] sm:$0xff]
    %v43 = vld [vmem:[%s0 + $0x18] sm:$0xff]
    %v44 = vld [vmem:[%s0 + $0x20] sm:$0xff]
    %v45 = vld [vmem:[%s0 + $0x28] sm:$0xff]
    %v46 = vld [vmem:[%s0 + $0x30] sm:$0xff]
    %v47 = vld [vmem:[%s0 + $0x38] sm:$0xff]
    %v48 = vld [vmem:[%s0 + $0x40] sm:$0xff]
    %v49 = vld [vmem:[%s0 + $0x48] sm:$0xff]
    %v50 = vld [vmem:[%s0 + $0x50] sm:$0xff]
    %v51 = vld [vmem:[%s0 + $0x58] sm:$0xff]
    %v52 = vld [vmem:[%s0 + $0x60] sm:$0xff]
    %v53 = vld [vmem:[%s0 + $0x68] sm:$0xff]
    %v54 = vld [vmem:[%s0 + $0x70] sm:$0xff]
    %v55 = vld [vmem:[%s0 + $0x78] sm:$0xff]
    %v56 = vld [vmem:[%s0 + $0x80] sm:$0xff]
    %v57 = vld [vmem:[%s0 + $0x88] sm:$0xff]
    %v58 = vld [vmem:[%s0 + $0x90] sm:$0xff]
    %v59 = vld [vmem:[%s0 + $0x98] sm:$0xff]
    %v60 = vld [vmem:[%s0 + $0xa0] sm:$0xff]
    %v61 = vld [vmem:[%s0 + $0xa8] sm:$0xff]
    %v62 = vld [vmem:[%s0 + $0xb0] sm:$0xff]
    %v63 = vld [vmem:[%s0 + $0xb8] sm:$0xff]
    %v64 = vld [vmem:[%s0 + $0xc0] sm:$0xff]
    %v65 = vld [vmem:[%s0 + $0xc8] sm:$0xff]
    %v66 = vld [vmem:[%s0 + $0xd0] sm:$0xff]
    %v67 = vld [vmem:[%s0 + $0xd8] sm:$0xff]
    %v68 = vld [vmem:[%s0 + $0xe0] sm:$0xff]
    %v69 = vld [vmem:[%s0 + $0xe8] sm:$0xff]
    %v70 = vld [vmem:[%s0 + $0xf0] sm:$0xff]
    %v71 = vld [vmem:[%s0 + $0xf8] sm:$0xff]
    %v72 = vld [vmem:[%s0 + $0x100] sm:$0xff]
    %v73 = vld [vmem:[%s0 + $0x108] sm:$0xff]
    %v74 = vld [vmem:[%s0 + $0x110] sm:$0xff]
    %v75 = vld [vmem:[%s0 + $0x118] sm:$0xff]
    %v76 = vld [vmem:[%s0 + $0x120] sm:$0xff]
    %v77 = vld [vmem:[%s0 + $0x128] sm:$0xff]
    %v78 = vld [vmem:[%s0 + $0x130] sm:$0xff]
    %v79 = vld [vmem:[%s0 + $0x138] sm:$0xff]
    %v80 = vld [vmem:[%s0 + $0x140] sm:$0xff]
    %v81 = vld [vmem:[%s0 + $0x148] sm:$0xff]
    %v82 = vld [vmem:[%s0 + $0x150] sm:$0x3]
    %v83 = vld [vmem:[#allocation2] sm:$0xff]
    %v84 = vld [vmem:[#allocation2 + $0x8] sm:$0xff]
    %v85 = vld [vmem:[#allocation4] sm:$0x1]
    %v87 = vlaneseq
    %v88 = vshrl.u32 %v87, 7
    %v89 = vsub.s32 0, %v88
    %v90 = vrot.slane %v85, %v89
    %vm92 = vcmask 130048
    %v94 = vsel %vm92, %v40, 0
    %v97 = vsel %vm92, %v41, 0
    %v100 = vsel %vm92, %v42, 0
    %v103 = vsel %vm92, %v43, 0
    %v106 = vsel %vm92, %v44, 0
    %v109 = vsel %vm92, %v45, 0
    %v112 = vsel %vm92, %v46, 0
    %v115 = vsel %vm92, %v47, 0
    %v118 = vsel %vm92, %v48, 0
    %v121 = vsel %vm92, %v49, 0
    %v124 = vsel %vm92, %v50, 0
    %v127 = vsel %vm92, %v51, 0
    %v130 = vsel %vm92, %v52, 0
    %v133 = vsel %vm92, %v53, 0
    %v136 = vsel %vm92, %v54, 0
    %v139 = vsel %vm92, %v55, 0
    %v142 = vsel %vm92, %v56, 0
    %v145 = vsel %vm92, %v57, 0
    %v148 = vsel %vm92, %v58, 0
    %v151 = vsel %vm92, %v59, 0
    %v154 = vsel %vm92, %v60, 0
    %v157 = vsel %vm92, %v61, 0
    %v160 = vsel %vm92, %v62, 0
    %v163 = vsel %vm92, %v63, 0
    %v166 = vsel %vm92, %v64, 0
    %v169 = vsel %vm92, %v65, 0
    %v172 = vsel %vm92, %v66, 0
    %v175 = vsel %vm92, %v67, 0
    %v178 = vsel %vm92, %v68, 0
    %v181 = vsel %vm92, %v69, 0
    %v184 = vsel %vm92, %v70, 0
    %v187 = vsel %vm92, %v71, 0
    %v190 = vsel %vm92, %v72, 0
    %v193 = vsel %vm92, %v73, 0
    %v196 = vsel %vm92, %v74, 0
    %v199 = vsel %vm92, %v75, 0
    %v202 = vsel %vm92, %v76, 0
    %v205 = vsel %vm92, %v77, 0
    %v208 = vsel %vm92, %v78, 0
    %v211 = vsel %vm92, %v79, 0
    %v214 = vsel %vm92, %v80, 0
    %v217 = vsel %vm92, %v81, 0
    %v220 = vsel %vm92, %v82, 0
    %222 = vmatprep.subr.mxu0 0.0
    %223 = vmatpush1.msra.mxu0 0.0
    %224 = vmatprep.subr.mxu0 0.0
    %225 = vmatpush1.msra.mxu0 0.0
    %226 = vmatprep.subr.mxu0 0.0
    %227 = vmatpush1.msra.mxu0 0.0
    %228 = vmatprep.subr.mxu0 0.0
    %229 = vmatpush1.msra.mxu0 0.0
    %230 = vmatprep.subr.mxu0 0.0
    %231 = vmatpush1.msra.mxu0 0.0
    %232 = vmatprep.subr.mxu0 0.0
    %233 = vmatpush1.msra.mxu0 0.0
    %234 = vmatprep.subr.mxu0 0.0
    %235 = vmatpush1.msra.mxu0 0.0
    %236 = vmatprep.subr.mxu0 0.0
    %237 = vmatpush1.msra.mxu0 0.0
    %238 = vmatprep.subr.mxu0 0.0
    %239 = vmatpush1.msra.mxu0 0.0
    %240 = vmatprep.subr.mxu0 0.0
    %241 = vmatpush1.msra.mxu0 0.0
    %242 = vmatprep.subr.mxu0 0.0
    %243 = vmatpush1.msra.mxu0 0.0
    %244 = vmatprep.subr.mxu0 0.0
    %245 = vmatpush1.msra.mxu0 0.0
    %246 = vmatprep.subr.mxu0 0.0
    %247 = vmatpush1.msra.mxu0 0.0
    %248 = vmatprep.subr.mxu0 0.0
    %249 = vmatpush1.msra.mxu0 0.0
    %250 = vmatprep.subr.mxu0 0.0
    %251 = vmatpush1.msra.mxu0 %v84
    %252 = vmatprep.subr.mxu0 0.0
    %253 = vmatpush1.msra.mxu0 %v83
    %254 = vmatprep.subr.mxu0 0.0
    %255 = vmatpush2.msra.mxu0 0.0
    %256 = vmatprep.subr.mxu0 0.0
    %257 = vmatpush2.msra.mxu0 0.0
    %258 = vmatprep.subr.mxu0 0.0
    %259 = vmatpush2.msra.mxu0 0.0
    %260 = vmatprep.subr.mxu0 0.0
    %261 = vmatpush2.msra.mxu0 0.0
    %262 = vmatprep.subr.mxu0 0.0
    %263 = vmatpush2.msra.mxu0 0.0
    %264 = vmatprep.subr.mxu0 0.0
    %265 = vmatpush2.msra.mxu0 0.0
    %266 = vmatprep.subr.mxu0 0.0
    %267 = vmatpush2.msra.mxu0 0.0
    %268 = vmatprep.subr.mxu0 0.0
    %269 = vmatpush2.msra.mxu0 0.0
    %270 = vmatprep.subr.mxu0 0.0
    %271 = vmatpush2.msra.mxu0 0.0
    %272 = vmatprep.subr.mxu0 0.0
    %273 = vmatpush2.msra.mxu0 0.0
    %274 = vmatprep.subr.mxu0 0.0
    %275 = vmatpush2.msra.mxu0 0.0
    %276 = vmatprep.subr.mxu0 0.0
    %277 = vmatpush2.msra.mxu0 0.0
    %278 = vmatprep.subr.mxu0 0.0
    %279 = vmatpush2.msra.mxu0 0.0
    %280 = vmatprep.subr.mxu0 0.0
    %281 = vmatpush2.msra.mxu0 0.0
    %282 = vmatprep.subr.mxu0 0.0
    %283 = vmatpush2.msra.mxu0 0.0
    %284 = vmatprep.subr.mxu0 0.0
    %285 = vmatpush2.msra.mxu0 0.0
    %286 = vmatprep.mubr.f32.mxu0 0.0
    %287 = vmatmul.mubr.f32.gmra.mxu0 %v94
    %v288 = vpop.f32.mrf.mxu0
    %v289 = vadd.f32 %v90, %v288
    %v290 = vpop.f32.mrf.mxu0
    %291 = vmatprep.mubr.f32.mxu0 0.0
    %292 = vmatmul.mubr.f32.gmra.mxu0 %v97
    %v293 = vpop.f32.mrf.mxu0
    %v294 = vadd.f32 %v90, %v293
    %v295 = vpop.f32.mrf.mxu0
    %296 = vmatprep.mubr.f32.mxu0 0.0
    %297 = vmatmul.mubr.f32.gmra.mxu0 %v100
    %v298 = vpop.f32.mrf.mxu0
    %v299 = vadd.f32 %v90, %v298
    %v300 = vpop.f32.mrf.mxu0
    %301 = vmatprep.mubr.f32.mxu0 0.0
    %302 = vmatmul.mubr.f32.gmra.mxu0 %v103
    %v303 = vpop.f32.mrf.mxu0
    %v304 = vadd.f32 %v90, %v303
    %v305 = vpop.f32.mrf.mxu0
    %306 = vmatprep.mubr.f32.mxu0 0.0
    %307 = vmatmul.mubr.f32.gmra.mxu0 %v106
    %v308 = vpop.f32.mrf.mxu0
    %v309 = vadd.f32 %v90, %v308
    %v310 = vpop.f32.mrf.mxu0
    %311 = vmatprep.mubr.f32.mxu0 0.0
    %312 = vmatmul.mubr.f32.gmra.mxu0 %v109
    %v313 = vpop.f32.mrf.mxu0
    %v314 = vadd.f32 %v90, %v313
    %v315 = vpop.f32.mrf.mxu0
    %316 = vmatprep.mubr.f32.mxu0 0.0
    %317 = vmatmul.mubr.f32.gmra.mxu0 %v112
    %v318 = vpop.f32.mrf.mxu0
    %v319 = vadd.f32 %v90, %v318
    %v320 = vpop.f32.mrf.mxu0
    %321 = vmatprep.mubr.f32.mxu0 0.0
    %322 = vmatmul.mubr.f32.gmra.mxu0 %v115
    %v323 = vpop.f32.mrf.mxu0
    %v324 = vadd.f32 %v90, %v323
    %v325 = vpop.f32.mrf.mxu0
    %326 = vmatprep.mubr.f32.mxu0 0.0
    %327 = vmatmul.mubr.f32.gmra.mxu0 %v118
    %v328 = vpop.f32.mrf.mxu0
    %v329 = vadd.f32 %v90, %v328
    %v330 = vpop.f32.mrf.mxu0
    %331 = vmatprep.mubr.f32.mxu0 0.0
    %332 = vmatmul.mubr.f32.gmra.mxu0 %v121
    %v333 = vpop.f32.mrf.mxu0
    %v334 = vadd.f32 %v90, %v333
    %v335 = vpop.f32.mrf.mxu0
    %336 = vmatprep.mubr.f32.mxu0 0.0
    %337 = vmatmul.mubr.f32.gmra.mxu0 %v124
    %v338 = vpop.f32.mrf.mxu0
    %v339 = vadd.f32 %v90, %v338
    %v340 = vpop.f32.mrf.mxu0
    %341 = vmatprep.mubr.f32.mxu0 0.0
    %342 = vmatmul.mubr.f32.gmra.mxu0 %v127
    %v343 = vpop.f32.mrf.mxu0
    %v344 = vadd.f32 %v90, %v343
    %v345 = vpop.f32.mrf.mxu0
    %346 = vmatprep.mubr.f32.mxu0 0.0
    %347 = vmatmul.mubr.f32.gmra.mxu0 %v130
    %v348 = vpop.f32.mrf.mxu0
    %v349 = vadd.f32 %v90, %v348
    %v350 = vpop.f32.mrf.mxu0
    %351 = vmatprep.mubr.f32.mxu0 0.0
    %352 = vmatmul.mubr.f32.gmra.mxu0 %v133
    %v353 = vpop.f32.mrf.mxu0
    %v354 = vadd.f32 %v90, %v353
    %v355 = vpop.f32.mrf.mxu0
    %356 = vmatprep.mubr.f32.mxu0 0.0
    %357 = vmatmul.mubr.f32.gmra.mxu0 %v136
    %v358 = vpop.f32.mrf.mxu0
    %v359 = vadd.f32 %v90, %v358
    %v360 = vpop.f32.mrf.mxu0
    %361 = vmatprep.mubr.f32.mxu0 0.0
    %362 = vmatmul.mubr.f32.gmra.mxu0 %v139
    %v363 = vpop.f32.mrf.mxu0
    %v364 = vadd.f32 %v90, %v363
    %v365 = vpop.f32.mrf.mxu0
    %366 = vmatprep.mubr.f32.mxu0 0.0
    %367 = vmatmul.mubr.f32.gmra.mxu0 %v142
    %v368 = vpop.f32.mrf.mxu0
    %v369 = vadd.f32 %v90, %v368
    %v370 = vpop.f32.mrf.mxu0
    %371 = vmatprep.mubr.f32.mxu0 0.0
    %372 = vmatmul.mubr.f32.gmra.mxu0 %v145
    %v373 = vpop.f32.mrf.mxu0
    %v374 = vadd.f32 %v90, %v373
    %v375 = vpop.f32.mrf.mxu0
    %376 = vmatprep.mubr.f32.mxu0 0.0
    %377 = vmatmul.mubr.f32.gmra.mxu0 %v148
    %v378 = vpop.f32.mrf.mxu0
    %v379 = vadd.f32 %v90, %v378
    %v380 = vpop.f32.mrf.mxu0
    %381 = vmatprep.mubr.f32.mxu0 0.0
    %382 = vmatmul.mubr.f32.gmra.mxu0 %v151
    %v383 = vpop.f32.mrf.mxu0
    %v384 = vadd.f32 %v90, %v383
    %v385 = vpop.f32.mrf.mxu0
    %386 = vmatprep.mubr.f32.mxu0 0.0
    %387 = vmatmul.mubr.f32.gmra.mxu0 %v154
    %v388 = vpop.f32.mrf.mxu0
    %v389 = vadd.f32 %v90, %v388
    %v390 = vpop.f32.mrf.mxu0
    %391 = vmatprep.mubr.f32.mxu0 0.0
    %392 = vmatmul.mubr.f32.gmra.mxu0 %v157
    %v393 = vpop.f32.mrf.mxu0
    %v394 = vadd.f32 %v90, %v393
    %v395 = vpop.f32.mrf.mxu0
    %396 = vmatprep.mubr.f32.mxu0 0.0
    %397 = vmatmul.mubr.f32.gmra.mxu0 %v160
    %v398 = vpop.f32.mrf.mxu0
    %v399 = vadd.f32 %v90, %v398
    %v400 = vpop.f32.mrf.mxu0
    %401 = vmatprep.mubr.f32.mxu0 0.0
    %402 = vmatmul.mubr.f32.gmra.mxu0 %v163
    %v403 = vpop.f32.mrf.mxu0
    %v404 = vadd.f32 %v90, %v403
    %v405 = vpop.f32.mrf.mxu0
    %406 = vmatprep.mubr.f32.mxu0 0.0
    %407 = vmatmul.mubr.f32.gmra.mxu0 %v166
    %v408 = vpop.f32.mrf.mxu0
    %v409 = vadd.f32 %v90, %v408
    %v410 = vpop.f32.mrf.mxu0
    %411 = vmatprep.mubr.f32.mxu0 0.0
    %412 = vmatmul.mubr.f32.gmra.mxu0 %v169
    %v413 = vpop.f32.mrf.mxu0
    %v414 = vadd.f32 %v90, %v413
    %v415 = vpop.f32.mrf.mxu0
    %416 = vmatprep.mubr.f32.mxu0 0.0
    %417 = vmatmul.mubr.f32.gmra.mxu0 %v172
    %v418 = vpop.f32.mrf.mxu0
    %v419 = vadd.f32 %v90, %v418
    %v420 = vpop.f32.mrf.mxu0
    %421 = vmatprep.mubr.f32.mxu0 0.0
    %422 = vmatmul.mubr.f32.gmra.mxu0 %v175
    %v423 = vpop.f32.mrf.mxu0
    %v424 = vadd.f32 %v90, %v423
    %v425 = vpop.f32.mrf.mxu0
    %426 = vmatprep.mubr.f32.mxu0 0.0
    %427 = vmatmul.mubr.f32.gmra.mxu0 %v178
    %v428 = vpop.f32.mrf.mxu0
    %v429 = vadd.f32 %v90, %v428
    %v430 = vpop.f32.mrf.mxu0
    %431 = vmatprep.mubr.f32.mxu0 0.0
    %432 = vmatmul.mubr.f32.gmra.mxu0 %v181
    %v433 = vpop.f32.mrf.mxu0
    %v434 = vadd.f32 %v90, %v433
    %v435 = vpop.f32.mrf.mxu0
    %436 = vmatprep.mubr.f32.mxu0 0.0
    %437 = vmatmul.mubr.f32.gmra.mxu0 %v184
    %v438 = vpop.f32.mrf.mxu0
    %v439 = vadd.f32 %v90, %v438
    %v440 = vpop.f32.mrf.mxu0
    %441 = vmatprep.mubr.f32.mxu0 0.0
    %442 = vmatmul.mubr.f32.gmra.mxu0 %v187
    %v443 = vpop.f32.mrf.mxu0
    %v444 = vadd.f32 %v90, %v443
    %v445 = vpop.f32.mrf.mxu0
    %446 = vmatprep.mubr.f32.mxu0 0.0
    %447 = vmatmul.mubr.f32.gmra.mxu0 %v190
    %v448 = vpop.f32.mrf.mxu0
    %v449 = vadd.f32 %v90, %v448
    %v450 = vpop.f32.mrf.mxu0
    %451 = vmatprep.mubr.f32.mxu0 0.0
    %452 = vmatmul.mubr.f32.gmra.mxu0 %v193
    %v453 = vpop.f32.mrf.mxu0
    %v454 = vadd.f32 %v90, %v453
    %v455 = vpop.f32.mrf.mxu0
    %456 = vmatprep.mubr.f32.mxu0 0.0
    %457 = vmatmul.mubr.f32.gmra.mxu0 %v196
    %v458 = vpop.f32.mrf.mxu0
    %v459 = vadd.f32 %v90, %v458
    %v460 = vpop.f32.mrf.mxu0
    %461 = vmatprep.mubr.f32.mxu0 0.0
    %462 = vmatmul.mubr.f32.gmra.mxu0 %v199
    %v463 = vpop.f32.mrf.mxu0
    %v464 = vadd.f32 %v90, %v463
    %v465 = vpop.f32.mrf.mxu0
    %466 = vmatprep.mubr.f32.mxu0 0.0
    %467 = vmatmul.mubr.f32.gmra.mxu0 %v202
    %v468 = vpop.f32.mrf.mxu0
    %v469 = vadd.f32 %v90, %v468
    %v470 = vpop.f32.mrf.mxu0
    %471 = vmatprep.mubr.f32.mxu0 0.0
    %472 = vmatmul.mubr.f32.gmra.mxu0 %v205
    %v473 = vpop.f32.mrf.mxu0
    %v474 = vadd.f32 %v90, %v473
    %v475 = vpop.f32.mrf.mxu0
    %476 = vmatprep.mubr.f32.mxu0 0.0
    %477 = vmatmul.mubr.f32.gmra.mxu0 %v208
    %v478 = vpop.f32.mrf.mxu0
    %v479 = vadd.f32 %v90, %v478
    %v480 = vpop.f32.mrf.mxu0
    %481 = vmatprep.mubr.f32.mxu0 0.0
    %482 = vmatmul.mubr.f32.gmra.mxu0 %v211
    %v483 = vpop.f32.mrf.mxu0
    %v484 = vadd.f32 %v90, %v483
    %v485 = vpop.f32.mrf.mxu0
    %486 = vmatprep.mubr.f32.mxu0 0.0
    %487 = vmatmul.mubr.f32.gmra.mxu0 %v214
    %v488 = vpop.f32.mrf.mxu0
    %v489 = vadd.f32 %v90, %v488
    %v490 = vpop.f32.mrf.mxu0
    %491 = vmatprep.mubr.f32.mxu0 0.0
    %492 = vmatmul.mubr.f32.gmra.mxu0 %v217
    %v493 = vpop.f32.mrf.mxu0
    %v494 = vadd.f32 %v90, %v493
    %v495 = vpop.f32.mrf.mxu0
    %496 = vmatprep.mubr.f32.mxu0 0.0
    %497 = vmatmul.mubr.f32.gmra.mxu0 %v220
    %v498 = vpop.f32.mrf.mxu0
    %v499 = vadd.f32 %v90, %v498
    %v500 = vpop.f32.mrf.mxu0
    %501 = vdwg.mxu0
    %vm502 = vcmp.gt.f32.partialorder %v289, 0.0
    %vm503 = vcmp.gt.f32.partialorder %v294, 0.0
    %vm504 = vcmp.gt.f32.partialorder %v299, 0.0
    %vm505 = vcmp.gt.f32.partialorder %v304, 0.0
    %vm506 = vcmp.gt.f32.partialorder %v309, 0.0
    %vm507 = vcmp.gt.f32.partialorder %v314, 0.0
    %vm508 = vcmp.gt.f32.partialorder %v319, 0.0
    %vm509 = vcmp.gt.f32.partialorder %v324, 0.0
    %vm510 = vcmp.gt.f32.partialorder %v329, 0.0
    %vm511 = vcmp.gt.f32.partialorder %v334, 0.0
    %vm512 = vcmp.gt.f32.partialorder %v339, 0.0
    %vm513 = vcmp.gt.f32.partialorder %v344, 0.0
    %vm514 = vcmp.gt.f32.partialorder %v349, 0.0
    %vm515 = vcmp.gt.f32.partialorder %v354, 0.0
    %vm516 = vcmp.gt.f32.partialorder %v359, 0.0
    %vm517 = vcmp.gt.f32.partialorder %v364, 0.0
    %vm518 = vcmp.gt.f32.partialorder %v369, 0.0
    %vm519 = vcmp.gt.f32.partialorder %v374, 0.0
    %vm520 = vcmp.gt.f32.partialorder %v379, 0.0
    %vm521 = vcmp.gt.f32.partialorder %v384, 0.0
    %vm522 = vcmp.gt.f32.partialorder %v389, 0.0
    %vm523 = vcmp.gt.f32.partialorder %v394, 0.0
    %vm524 = vcmp.gt.f32.partialorder %v399, 0.0
    %vm525 = vcmp.gt.f32.partialorder %v404, 0.0
    %vm526 = vcmp.gt.f32.partialorder %v409, 0.0
    %vm527 = vcmp.gt.f32.partialorder %v414, 0.0
    %vm528 = vcmp.gt.f32.partialorder %v419, 0.0
    %vm529 = vcmp.gt.f32.partialorder %v424, 0.0
    %vm530 = vcmp.gt.f32.partialorder %v429, 0.0
    %vm531 = vcmp.gt.f32.partialorder %v434, 0.0
    %vm532 = vcmp.gt.f32.partialorder %v439, 0.0
    %vm533 = vcmp.gt.f32.partialorder %v444, 0.0
    %vm534 = vcmp.gt.f32.partialorder %v449, 0.0
    %vm535 = vcmp.gt.f32.partialorder %v454, 0.0
    %vm536 = vcmp.gt.f32.partialorder %v459, 0.0
    %vm537 = vcmp.gt.f32.partialorder %v464, 0.0
    %vm538 = vcmp.gt.f32.partialorder %v469, 0.0
    %vm539 = vcmp.gt.f32.partialorder %v474, 0.0
    %vm540 = vcmp.gt.f32.partialorder %v479, 0.0
    %vm541 = vcmp.gt.f32.partialorder %v484, 0.0
    %vm542 = vcmp.gt.f32.partialorder %v489, 0.0
    %vm543 = vcmp.gt.f32.partialorder %v494, 0.0
    %vm544 = vcmp.gt.f32.partialorder %v499, 0.0
    %v545 = vmul.f32 %v289, 0.2
    %v546 = vmul.f32 %v294, 0.2
    %v547 = vmul.f32 %v299, 0.2
    %v548 = vmul.f32 %v304, 0.2
    %v549 = vmul.f32 %v309, 0.2
    %v550 = vmul.f32 %v314, 0.2
    %v551 = vmul.f32 %v319, 0.2
    %v552 = vmul.f32 %v324, 0.2
    %v553 = vmul.f32 %v329, 0.2
    %v554 = vmul.f32 %v334, 0.2
    %v555 = vmul.f32 %v339, 0.2
    %v556 = vmul.f32 %v344, 0.2
    %v557 = vmul.f32 %v349, 0.2
    %v558 = vmul.f32 %v354, 0.2
    %v559 = vmul.f32 %v359, 0.2
    %v560 = vmul.f32 %v364, 0.2
    %v561 = vmul.f32 %v369, 0.2
    %v562 = vmul.f32 %v374, 0.2
    %v563 = vmul.f32 %v379, 0.2
    %v564 = vmul.f32 %v384, 0.2
    %v565 = vmul.f32 %v389, 0.2
    %v566 = vmul.f32 %v394, 0.2
    %v567 = vmul.f32 %v399, 0.2
    %v568 = vmul.f32 %v404, 0.2
    %v569 = vmul.f32 %v409, 0.2
    %v570 = vmul.f32 %v414, 0.2
    %v571 = vmul.f32 %v419, 0.2
    %v572 = vmul.f32 %v424, 0.2
    %v573 = vmul.f32 %v429, 0.2
    %v574 = vmul.f32 %v434, 0.2
    %v575 = vmul.f32 %v439, 0.2
    %v576 = vmul.f32 %v444, 0.2
    %v577 = vmul.f32 %v449, 0.2
    %v578 = vmul.f32 %v454, 0.2
    %v579 = vmul.f32 %v459, 0.2
    %v580 = vmul.f32 %v464, 0.2
    %v581 = vmul.f32 %v469, 0.2
    %v582 = vmul.f32 %v474, 0.2
    %v583 = vmul.f32 %v479, 0.2
    %v584 = vmul.f32 %v484, 0.2
    %v585 = vmul.f32 %v489, 0.2
    %v586 = vmul.f32 %v494, 0.2
    %v587 = vmul.f32 %v499, 0.2
    %v588 = vsel %vm502, %v289, %v545
    %v589 = vsel %vm503, %v294, %v546
    %v590 = vsel %vm504, %v299, %v547
    %v591 = vsel %vm505, %v304, %v548
    %v592 = vsel %vm506, %v309, %v549
    %v593 = vsel %vm507, %v314, %v550
    %v594 = vsel %vm508, %v319, %v551
    %v595 = vsel %vm509, %v324, %v552
    %v596 = vsel %vm510, %v329, %v553
    %v597 = vsel %vm511, %v334, %v554
    %v598 = vsel %vm512, %v339, %v555
    %v599 = vsel %vm513, %v344, %v556
    %v600 = vsel %vm514, %v349, %v557
    %v601 = vsel %vm515, %v354, %v558
    %v602 = vsel %vm516, %v359, %v559
    %v603 = vsel %vm517, %v364, %v560
    %v604 = vsel %vm518, %v369, %v561
    %v605 = vsel %vm519, %v374, %v562
    %v606 = vsel %vm520, %v379, %v563
    %v607 = vsel %vm521, %v384, %v564
    %v608 = vsel %vm522, %v389, %v565
    %v609 = vsel %vm523, %v394, %v566
    %v610 = vsel %vm524, %v399, %v567
    %v611 = vsel %vm525, %v404, %v568
    %v612 = vsel %vm526, %v409, %v569
    %v613 = vsel %vm527, %v414, %v570
    %v614 = vsel %vm528, %v419, %v571
    %v615 = vsel %vm529, %v424, %v572
    %v616 = vsel %vm530, %v429, %v573
    %v617 = vsel %vm531, %v434, %v574
    %v618 = vsel %vm532, %v439, %v575
    %v619 = vsel %vm533, %v444, %v576
    %v620 = vsel %vm534, %v449, %v577
    %v621 = vsel %vm535, %v454, %v578
    %v622 = vsel %vm536, %v459, %v579
    %v623 = vsel %vm537, %v464, %v580
    %v624 = vsel %vm538, %v469, %v581
    %v625 = vsel %vm539, %v474, %v582
    %v626 = vsel %vm540, %v479, %v583
    %v627 = vsel %vm541, %v484, %v584
    %v628 = vsel %vm542, %v489, %v585
    %v629 = vsel %vm543, %v494, %v586
    %v630 = vsel %vm544, %v499, %v587
    %vm631 = vcmask 523264
    %632 = vst.msk [vmem:[%s3] sm:$0xff] %vm631, %v588
    %633 = vst.msk [vmem:[%s3 + $0x8] sm:$0xff] %vm631, %v589
    %634 = vst.msk [vmem:[%s3 + $0x10] sm:$0xff] %vm631, %v590
    %635 = vst.msk [vmem:[%s3 + $0x18] sm:$0xff] %vm631, %v591
    %636 = vst.msk [vmem:[%s3 + $0x20] sm:$0xff] %vm631, %v592
    %637 = vst.msk [vmem:[%s3 + $0x28] sm:$0xff] %vm631, %v593
    %638 = vst.msk [vmem:[%s3 + $0x30] sm:$0xff] %vm631, %v594
    %639 = vst.msk [vmem:[%s3 + $0x38] sm:$0xff] %vm631, %v595
    %640 = vst.msk [vmem:[%s3 + $0x40] sm:$0xff] %vm631, %v596
    %641 = vst.msk [vmem:[%s3 + $0x48] sm:$0xff] %vm631, %v597
    %642 = vst.msk [vmem:[%s3 + $0x50] sm:$0xff] %vm631, %v598
    %643 = vst.msk [vmem:[%s3 + $0x58] sm:$0xff] %vm631, %v599
    %644 = vst.msk [vmem:[%s3 + $0x60] sm:$0xff] %vm631, %v600
    %645 = vst.msk [vmem:[%s3 + $0x68] sm:$0xff] %vm631, %v601
    %646 = vst.msk [vmem:[%s3 + $0x70] sm:$0xff] %vm631, %v602
    %647 = vst.msk [vmem:[%s3 + $0x78] sm:$0xff] %vm631, %v603
    %648 = vst.msk [vmem:[%s3 + $0x80] sm:$0xff] %vm631, %v604
    %649 = vst.msk [vmem:[%s3 + $0x88] sm:$0xff] %vm631, %v605
    %650 = vst.msk [vmem:[%s3 + $0x90] sm:$0xff] %vm631, %v606
    %651 = vst.msk [vmem:[%s3 + $0x98] sm:$0xff] %vm631, %v607
    %652 = vst.msk [vmem:[%s3 + $0xa0] sm:$0xff] %vm631, %v608
    %653 = vst.msk [vmem:[%s3 + $0xa8] sm:$0xff] %vm631, %v609
    %654 = vst.msk [vmem:[%s3 + $0xb0] sm:$0xff] %vm631, %v610
    %655 = vst.msk [vmem:[%s3 + $0xb8] sm:$0xff] %vm631, %v611
    %656 = vst.msk [vmem:[%s3 + $0xc0] sm:$0xff] %vm631, %v612
    %657 = vst.msk [vmem:[%s3 + $0xc8] sm:$0xff] %vm631, %v613
    %658 = vst.msk [vmem:[%s3 + $0xd0] sm:$0xff] %vm631, %v614
    %659 = vst.msk [vmem:[%s3 + $0xd8] sm:$0xff] %vm631, %v615
    %660 = vst.msk [vmem:[%s3 + $0xe0] sm:$0xff] %vm631, %v616
    %661 = vst.msk [vmem:[%s3 + $0xe8] sm:$0xff] %vm631, %v617
    %662 = vst.msk [vmem:[%s3 + $0xf0] sm:$0xff] %vm631, %v618
    %663 = vst.msk [vmem:[%s3 + $0xf8] sm:$0xff] %vm631, %v619
    %664 = vst.msk [vmem:[%s3 + $0x100] sm:$0xff] %vm631, %v620
    %665 = vst.msk [vmem:[%s3 + $0x108] sm:$0xff] %vm631, %v621
    %666 = vst.msk [vmem:[%s3 + $0x110] sm:$0xff] %vm631, %v622
    %667 = vst.msk [vmem:[%s3 + $0x118] sm:$0xff] %vm631, %v623
    %668 = vst.msk [vmem:[%s3 + $0x120] sm:$0xff] %vm631, %v624
    %669 = vst.msk [vmem:[%s3 + $0x128] sm:$0xff] %vm631, %v625
    %670 = vst.msk [vmem:[%s3 + $0x130] sm:$0xff] %vm631, %v626
    %671 = vst.msk [vmem:[%s3 + $0x138] sm:$0xff] %vm631, %v627
    %672 = vst.msk [vmem:[%s3 + $0x140] sm:$0xff] %vm631, %v628
    %673 = vst.msk [vmem:[%s3 + $0x148] sm:$0xff] %vm631, %v629
    %vm674 = vcmask 517120
    %675 = vst.msk [vmem:[%s3 + $0x150] sm:$0x3] %vm674, %v630
    // Predicated region
    $region22: #{encoder_cnn_forward.2} parent=1 // pred_check
      _
    $region23: #{encoder_cnn_forward.2} parent=1 // pred_check_branch
      %677 = sbr.rel (0) target = $region25
    $region24: #{encoder_cnn_forward.2} parent=1 // pred_region
      _
    $region25: #{encoder_cnn_forward.2} parent=1 // pred_fallthru
      _
    // Predicated region
    $region26: #{encoder_cnn_forward.2} parent=1 // pred_check
      _
    $region27: #{encoder_cnn_forward.2} parent=1 // pred_check_branch
      %679 = sbr.rel (0) target = $region29
    $region28: #{encoder_cnn_forward.2} parent=1 // pred_region
      _
    $region29: #{encoder_cnn_forward.2} parent=1 // pred_fallthru
      _
    %680 = vsyncpa [#allocation3], 1
    %681 = vsyncpa [#allocation5], 1

// kernel: encoder_cnn_forward.3
$region0: #{encoder_cnn_forward.3}
  #allocation0 [shape = 'u32[]', space=smem, size = 0x4, offset = 0x4, fixed_abs, tag = 'smem constant byte address 0x4 - core index']
  #allocation1 [shape = 'u32[144,128]{1,0:T(1,128)}', space=vmem, size = 0x12000, scoped, tag = 'internal scratch']
  #allocation2 [shape = 'f32[50,128]{1,0:T(8,128)}', space=vmem, size = 0x7000, scoped, tag = 'scratch operand']
  #allocation3 [shape = 'f32[2,1024]{1,0:T(2,128)}', space=vmem, size = 0x2000, scoped, tag = 'scratch operand']
  %s0 = inlined_call_operand.vmem [shape: f32[50,1024], index: 0, kind: input, shape index: {}]
  %s1 = inlined_call_operand.vmem [shape: f32[1024,128], index: 1, kind: input, shape index: {}]
  %s2 = inlined_call_operand.vmem [shape: f32[1,128], index: 2, kind: input, shape index: {}]
  %s3 = inlined_call_operand.vmem [shape: bf16[3200,1024], index: 3, kind: input, shape index: {}]
  %s4 = inlined_call_operand.vmem [shape: f32[1,1024], index: 4, kind: input, shape index: {}]
  %s5 = inlined_call_operand.vmem [shape: f32[1024,12], index: 5, kind: input, shape index: {}]
  %s6 = inlined_call_operand.vmem [shape: f32[1,12], index: 6, kind: input, shape index: {}]
  %s7 = inlined_call_operand.hbm [shape: f32[2,8], index: 7, kind: output, shape index: {0}]
  %s8 = inlined_call_operand.hbm [shape: f32[2,4], index: 8, kind: output, shape index: {1}]
  %s9 = inlined_call_operand.hbm [shape: f32[2,4], index: 9, kind: output, shape index: {2}]
  %10 = xla_tuple %s7, %s8, %s9
  %s11 = sld [smem:[#allocation0]]
  $region85: #{encoder_cnn_forward.3} parent=0
    _
  %s13 = ssub.s32 1, %s11
  %s14 = scalar_select 0, %s13, %s11
  $region1: #{encoder_cnn_forward.3} parent=0
    #allocation4 [shape = 'u8[1024]{0}', space=vmem, size = 0x400, scoped, tag = 'output window, operand 0, single buffered']
    #allocation5 [shape = 's32[2]{0}', space=sflag, size = 0x8, scoped, tag = 'scoped memory for encoder_cnn_forward.3']
    #allocation6 [shape = 'u8[1024]{0}', space=vmem, size = 0x400, scoped, tag = 'output window, operand 1, single buffered']
    #allocation7 [shape = 's32[1]{0}', space=sflag, size = 0x4, scoped, tag = 'scoped memory for encoder_cnn_forward.3']
    #allocation8 [shape = 'u8[1024]{0}', space=vmem, size = 0x400, scoped, tag = 'output window, operand 2, single buffered']
    %15 = vsyncpa [#allocation5], 0
    %16 = vsyncpa [#allocation7], 0
    loop: start=0, step=1, limit=7
    $region2: #{encoder_cnn_forward.3} parent=1 // loop_pre_header
      _
    $region3: #{encoder_cnn_forward.3} parent=1 // loop_header
      %s18 = sphi 0, %s22
      %p19 = scmp.ge.s32.totalorder %s18, 7
      %s26 = sphi 0, %s26
      %s28 = sphi 0, %s26
      %s29 = sphi 0, %s28
      %s43 = sphi 0, %s29
      %s47 = sphi 0, %s47
      %s49 = sphi 0, %s47
      %s50 = sphi 0, %s49
      %s64 = sphi 0, %s50
      %s68 = sphi 0, %s68
      %s70 = sphi 0, %s68
      %s71 = sphi 0, %s70
      %s85 = sphi 0, %s71
      %s91 = sphi 0, %s93
      %s94 = sphi 0, %s91
      %s95 = sphi 0, %s94
      %s111 = sphi 0, %s95
      %s115 = sphi 0, %s115
      %s117 = sphi 0, %s115
      %s118 = sphi 0, %s117
      %s132 = sphi 0, %s118
      %s136 = sphi 0, %s136
      %s138 = sphi 0, %s136
      %s139 = sphi 0, %s138
      %s153 = sphi 0, %s139
      %s157 = sphi 0, %s157
      %s159 = sphi 0, %s157
      %s160 = sphi 0, %s159
      %s174 = sphi 0, %s160
      %s178 = sphi 0, %s178
      %s180 = sphi 0, %s178
      %s181 = sphi 0, %s180
      %s195 = sphi 0, %s181
      %s199 = sphi 0, %s199
      %s201 = sphi 0, %s199
      %s202 = sphi 0, %s201
      %s216 = sphi 0, %s202
      %s220 = sphi 0, %s220
      %s222 = sphi 0, %s220
      %s223 = sphi 0, %s222
      %s237 = sphi 0, %s223
    $region4: #{encoder_cnn_forward.3} parent=1 // loop_header_branch
      %21 = sbr.rel (%p19) target = $region8
    $region5: #{encoder_cnn_forward.3} parent=1 // loop_body
      %s23 = ssub.s32 %s18, 1
      %s24 = ssub.s32 %s18, 2
      %s25 = sadd.s32 %s18, 1
      %s27 = sadd.s32 %s26, 1
      %p30 = scmp.eq.s32.totalorder %s18, 4
      %p31 = scmp.ne.s32.totalorder %s26, %s28
      %p32 = scmp.eq.s32.totalorder %s18, 0
      %p33 = por %p31, %p32
      %p34 = scmp.ne.s32.totalorder %s26, %s28
      %p35 = scmp.eq.s32.totalorder %s23, 4
      %p36 = por %p34, %p35
      %p37 = scmp.ne.s32.totalorder %s28, %s29
      %p38 = scmp.eq.s32.totalorder %s23, 0
      %p39 = por %p37, %p38
      %p40 = scmp.ne.s32.totalorder %s28, %s29
      %p41 = scmp.eq.s32.totalorder %s24, 4
      %p42 = por %p40, %p41
      %p44 = scmp.ne.s32.totalorder %s29, %s43
      %p45 = scmp.eq.s32.totalorder %s24, 0
      %p46 = por %p44, %p45
      %s48 = sadd.s32 %s47, 1
      %p51 = scmp.eq.s32.totalorder %s18, 4
      %p52 = scmp.ne.s32.totalorder %s47, %s49
      %p53 = scmp.eq.s32.totalorder %s18, 0
      %p54 = por %p52, %p53
      %p55 = scmp.ne.s32.totalorder %s47, %s49
      %p56 = scmp.eq.s32.totalorder %s23, 4
      %p57 = por %p55, %p56
      %p58 = scmp.ne.s32.totalorder %s49, %s50
      %p59 = scmp.eq.s32.totalorder %s23, 0
      %p60 = por %p58, %p59
      %p61 = scmp.ne.s32.totalorder %s49, %s50
      %p62 = scmp.eq.s32.totalorder %s24, 4
      %p63 = por %p61, %p62
      %p65 = scmp.ne.s32.totalorder %s50, %s64
      %p66 = scmp.eq.s32.totalorder %s24, 0
      %p67 = por %p65, %p66
      %s69 = sadd.s32 %s68, 1
      %p72 = scmp.eq.s32.totalorder %s18, 4
      %p73 = scmp.ne.s32.totalorder %s68, %s70
      %p74 = scmp.eq.s32.totalorder %s18, 0
      %p75 = por %p73, %p74
      %p76 = scmp.ne.s32.totalorder %s68, %s70
      %p77 = scmp.eq.s32.totalorder %s23, 4
      %p78 = por %p76, %p77
      %p79 = scmp.ne.s32.totalorder %s70, %s71
      %p80 = scmp.eq.s32.totalorder %s23, 0
      %p81 = por %p79, %p80
      %p82 = scmp.ne.s32.totalorder %s70, %s71
      %p83 = scmp.eq.s32.totalorder %s24, 4
      %p84 = por %p82, %p83
      %p86 = scmp.ne.s32.totalorder %s71, %s85
      %p87 = scmp.eq.s32.totalorder %s24, 0
      %p88 = por %p86, %p87
      %s89 = ssub.s32 %s18, %s25
      %p90 = scmp.eq.s32.totalorder %s89, 0
      %s92 = sadd.s32 %s91, 1
      %s93 = scalar_select %p90, %s91, %s92
      %p96 = pneg %p90
      %p97 = scmp.eq.s32.totalorder %s18, 4
      %p98 = por %p96, %p97
      %p99 = scmp.ne.s32.totalorder %s91, %s94
      %p100 = scmp.eq.s32.totalorder %s18, 0
      %p101 = por %p99, %p100
      %p102 = scmp.ne.s32.totalorder %s91, %s94
      %p103 = scmp.eq.s32.totalorder %s23, 4
      %p104 = por %p102, %p103
      %p105 = scmp.ne.s32.totalorder %s94, %s95
      %p106 = scmp.eq.s32.totalorder %s23, 0
      %p107 = por %p105, %p106
      %p108 = scmp.ne.s32.totalorder %s94, %s95
      %p109 = scmp.eq.s32.totalorder %s24, 4
      %p110 = por %p108, %p109
      %p112 = scmp.ne.s32.totalorder %s95, %s111
      %p113 = scmp.eq.s32.totalorder %s24, 0
      %p114 = por %p112, %p113
      %s116 = sadd.s32 %s115, 1
      %p119 = scmp.eq.s32.totalorder %s18, 4
      %p120 = scmp.ne.s32.totalorder %s115, %s117
      %p121 = scmp.eq.s32.totalorder %s18, 0
      %p122 = por %p120, %p121
      %p123 = scmp.ne.s32.totalorder %s115, %s117
      %p124 = scmp.eq.s32.totalorder %s23, 4
      %p125 = por %p123, %p124
      %p126 = scmp.ne.s32.totalorder %s117, %s118
      %p127 = scmp.eq.s32.totalorder %s23, 0
      %p128 = por %p126, %p127
      %p129 = scmp.ne.s32.totalorder %s117, %s118
      %p130 = scmp.eq.s32.totalorder %s24, 4
      %p131 = por %p129, %p130
      %p133 = scmp.ne.s32.totalorder %s118, %s132
      %p134 = scmp.eq.s32.totalorder %s24, 0
      %p135 = por %p133, %p134
      %s137 = sadd.s32 %s136, 1
      %p140 = scmp.eq.s32.totalorder %s18, 4
      %p141 = scmp.ne.s32.totalorder %s136, %s138
      %p142 = scmp.eq.s32.totalorder %s18, 0
      %p143 = por %p141, %p142
      %p144 = scmp.ne.s32.totalorder %s136, %s138
      %p145 = scmp.eq.s32.totalorder %s23, 4
      %p146 = por %p144, %p145
      %p147 = scmp.ne.s32.totalorder %s138, %s139
      %p148 = scmp.eq.s32.totalorder %s23, 0
      %p149 = por %p147, %p148
      %p150 = scmp.ne.s32.totalorder %s138, %s139
      %p151 = scmp.eq.s32.totalorder %s24, 4
      %p152 = por %p150, %p151
      %p154 = scmp.ne.s32.totalorder %s139, %s153
      %p155 = scmp.eq.s32.totalorder %s24, 0
      %p156 = por %p154, %p155
      %s158 = sadd.s32 %s157, 1
      %p161 = scmp.eq.s32.totalorder %s18, 4
      %p162 = scmp.ne.s32.totalorder %s157, %s159
      %p163 = scmp.eq.s32.totalorder %s18, 0
      %p164 = por %p162, %p163
      %p165 = scmp.ne.s32.totalorder %s157, %s159
      %p166 = scmp.eq.s32.totalorder %s23, 4
      %p167 = por %p165, %p166
      %p168 = scmp.ne.s32.totalorder %s159, %s160
      %p169 = scmp.eq.s32.totalorder %s23, 0
      %p170 = por %p168, %p169
      %p171 = scmp.ne.s32.totalorder %s159, %s160
      %p172 = scmp.eq.s32.totalorder %s24, 4
      %p173 = por %p171, %p172
      %p175 = scmp.ne.s32.totalorder %s160, %s174
      %p176 = scmp.eq.s32.totalorder %s24, 0
      %p177 = por %p175, %p176
      %s179 = sadd.s32 %s178, 1
      %p182 = scmp.eq.s32.totalorder %s18, 4
      %p183 = scmp.ne.s32.totalorder %s178, %s180
      %p184 = scmp.eq.s32.totalorder %s18, 0
      %p185 = por %p183, %p184
      %p186 = scmp.ne.s32.totalorder %s178, %s180
      %p187 = scmp.eq.s32.totalorder %s23, 4
      %p188 = por %p186, %p187
      %p189 = scmp.ne.s32.totalorder %s180, %s181
      %p190 = scmp.eq.s32.totalorder %s23, 0
      %p191 = por %p189, %p190
      %p192 = scmp.ne.s32.totalorder %s180, %s181
      %p193 = scmp.eq.s32.totalorder %s24, 4
      %p194 = por %p192, %p193
      %p196 = scmp.ne.s32.totalorder %s181, %s195
      %p197 = scmp.eq.s32.totalorder %s24, 0
      %p198 = por %p196, %p197
      %s200 = sadd.s32 %s199, 1
      %p203 = scmp.eq.s32.totalorder %s18, 4
      %p204 = scmp.ne.s32.totalorder %s199, %s201
      %p205 = scmp.eq.s32.totalorder %s18, 0
      %p206 = por %p204, %p205
      %p207 = scmp.ne.s32.totalorder %s199, %s201
      %p208 = scmp.eq.s32.totalorder %s23, 4
      %p209 = por %p207, %p208
      %p210 = scmp.ne.s32.totalorder %s201, %s202
      %p211 = scmp.eq.s32.totalorder %s23, 0
      %p212 = por %p210, %p211
      %p213 = scmp.ne.s32.totalorder %s201, %s202
      %p214 = scmp.eq.s32.totalorder %s24, 4
      %p215 = por %p213, %p214
      %p217 = scmp.ne.s32.totalorder %s202, %s216
      %p218 = scmp.eq.s32.totalorder %s24, 0
      %p219 = por %p217, %p218
      %s221 = sadd.s32 %s220, 1
      %p224 = scmp.eq.s32.totalorder %s18, 4
      %p225 = scmp.ne.s32.totalorder %s220, %s222
      %p226 = scmp.eq.s32.totalorder %s18, 0
      %p227 = por %p225, %p226
      %p228 = scmp.ne.s32.totalorder %s220, %s222
      %p229 = scmp.eq.s32.totalorder %s23, 4
      %p230 = por %p228, %p229
      %p231 = scmp.ne.s32.totalorder %s222, %s223
      %p232 = scmp.eq.s32.totalorder %s23, 0
      %p233 = por %p231, %p232
      %p234 = scmp.ne.s32.totalorder %s222, %s223
      %p235 = scmp.eq.s32.totalorder %s24, 4
      %p236 = por %p234, %p235
      %p238 = scmp.ne.s32.totalorder %s223, %s237
      %p239 = scmp.eq.s32.totalorder %s24, 0
      %p240 = por %p238, %p239
      %p241 = scmp.le.s32.totalorder 1, %s18
      %p242 = scmp.lt.s32.totalorder %s18, 6
      %p243 = pnand %p241, %p242
      %p244 = pneg %p243
      // Predicated region
      $region9: #{encoder_cnn_forward.3} parent=5 // pred_check
        _
      $region10: #{encoder_cnn_forward.3} parent=5 // pred_check_branch
        %246 = sbr.rel (%p243) target = $region12
      $region11: #{encoder_cnn_forward.3} parent=5 // pred_region
        %s247 = ssub.s32 %s18, 1
        // Predicated region
        $region13: #{encoder_cnn_forward.3} parent=11 // pred_check
          %p248 = pneg %p39
        $region14: #{encoder_cnn_forward.3} parent=11 // pred_check_branch
          %250 = sbr.rel (%p248) target = $region16
        $region15: #{encoder_cnn_forward.3} parent=11 // pred_region
          _
        $region16: #{encoder_cnn_forward.3} parent=11 // pred_fallthru
          _
        // Predicated region
        $region17: #{encoder_cnn_forward.3} parent=11 // pred_check
          %p251 = pneg %p60
        $region18: #{encoder_cnn_forward.3} parent=11 // pred_check_branch
          %253 = sbr.rel (%p251) target = $region20
        $region19: #{encoder_cnn_forward.3} parent=11 // pred_region
          _
        $region20: #{encoder_cnn_forward.3} parent=11 // pred_fallthru
          _
        // Predicated region
        $region21: #{encoder_cnn_forward.3} parent=11 // pred_check
          %p254 = pneg %p81
        $region22: #{encoder_cnn_forward.3} parent=11 // pred_check_branch
          %256 = sbr.rel (%p254) target = $region24
        $region23: #{encoder_cnn_forward.3} parent=11 // pred_region
          _
        $region24: #{encoder_cnn_forward.3} parent=11 // pred_fallthru
          _
        // Predicated region
        $region25: #{encoder_cnn_forward.3} parent=11 // pred_check
          %p257 = pneg %p128
        $region26: #{encoder_cnn_forward.3} parent=11 // pred_check_branch
          %259 = sbr.rel (%p257) target = $region28
        $region27: #{encoder_cnn_forward.3} parent=11 // pred_region
          _
        $region28: #{encoder_cnn_forward.3} parent=11 // pred_fallthru
          _
        // Predicated region
        $region29: #{encoder_cnn_forward.3} parent=11 // pred_check
          %p260 = pneg %p149
        $region30: #{encoder_cnn_forward.3} parent=11 // pred_check_branch
          %262 = sbr.rel (%p260) target = $region32
        $region31: #{encoder_cnn_forward.3} parent=11 // pred_region
          _
        $region32: #{encoder_cnn_forward.3} parent=11 // pred_fallthru
          _
        // Predicated region
        $region33: #{encoder_cnn_forward.3} parent=11 // pred_check
          %p263 = pneg %p170
        $region34: #{encoder_cnn_forward.3} parent=11 // pred_check_branch
          %265 = sbr.rel (%p263) target = $region36
        $region35: #{encoder_cnn_forward.3} parent=11 // pred_region
          _
        $region36: #{encoder_cnn_forward.3} parent=11 // pred_fallthru
          _
      $region12: #{encoder_cnn_forward.3} parent=5 // pred_fallthru
        _
      %p266 = scmp.lt.s32.totalorder %s18, 5
      // Predicated region
      $region37: #{encoder_cnn_forward.3} parent=5 // pred_check
        %p267 = pneg %p266
      $region38: #{encoder_cnn_forward.3} parent=5 // pred_check_branch
        %269 = sbr.rel (%p267) target = $region40
      $region39: #{encoder_cnn_forward.3} parent=5 // pred_region
        // Predicated region
        $region41: #{encoder_cnn_forward.3} parent=39 // pred_check
          %p270 = pneg %p101
        $region42: #{encoder_cnn_forward.3} parent=39 // pred_check_branch
          %272 = sbr.rel (%p270) target = $region44
        $region43: #{encoder_cnn_forward.3} parent=39 // pred_region
          %s273 = smul.u32 80, %s18
          %p274 = scmp.lt.s32.totalorder %s273, 399
          %s275 = scalar_select %p274, %s273, 399
          %s276 = smul.addr %s275, 8
          %s277 = smul.addr %s276, 4
          %s278 = scalar_lea.vmem %s3, %s277
          %s279 = smul.u32 80, %s18
        $region44: #{encoder_cnn_forward.3} parent=39 // pred_fallthru
          _
      $region40: #{encoder_cnn_forward.3} parent=5 // pred_fallthru
        _
      %p280 = scmp.le.s32.totalorder 1, %s18
      %p281 = scmp.lt.s32.totalorder %s18, 6
      %p282 = pnand %p280, %p281
      %p283 = pneg %p282
      // Predicated region
      $region45: #{encoder_cnn_forward.3} parent=5 // pred_check
        _
      $region46: #{encoder_cnn_forward.3} parent=5 // pred_check_branch
        %285 = sbr.rel (%p282) target = $region48
      $region47: #{encoder_cnn_forward.3} parent=5 // pred_region
        %s286 = ssub.s32 %s18, 1
        %p287 = pneg %p39
        %p288 = pneg %p36
        %p289 = pneg %p60
        %p290 = pneg %p57
        %p291 = pneg %p81
        %p292 = pneg %p78
        %s293 = smul.u32 80, %s23
        %p294 = scmp.lt.s32.totalorder %s293, 399
        %s295 = scalar_select %p294, %s293, 399
        %s296 = smul.addr %s295, 8
        %s297 = smul.addr %s296, 4
        %s298 = scalar_lea.vmem %s3, %s297
        %p299 = pneg %p107
        %p300 = pneg %p104
        %p301 = pneg %p128
        %p302 = pneg %p125
        %p303 = pneg %p149
        %p304 = pneg %p146
        %p305 = pneg %p170
        %p306 = pneg %p167
        %p307 = pneg %p191
        %p308 = pneg %p188
        %p309 = pneg %p212
        %p310 = pneg %p209
        %p311 = pneg %p233
        %p312 = pneg %p230
        %s313 = smul.u32 80, %s23
        %p314 = scmp.lt.s32.totalorder %s313, 399
        %s315 = scalar_select %p314, %s313, 399
        %s316 = smul.addr %s315, 8
        %s317 = smul.addr %s316, 4
        %s318 = scalar_lea.vmem %s3, %s317
        %s319 = smul.u32 80, %s23
        %p320 = scmp.eq.s32.totalorder %s23, 0
        // Predicated region
        $region49: #{encoder_cnn_forward.3} parent=47 // pred_check
          %p321 = pneg %p320
        $region50: #{encoder_cnn_forward.3} parent=47 // pred_check_branch
          %323 = sbr.rel (%p321) target = $region52
        $region51: #{encoder_cnn_forward.3} parent=47 // pred_region
          %v324 = vld [vmem:[%s0] sm:$0xff]
          %v325 = vld [vmem:[%s0 + $0x8] sm:$0xff]
          %v326 = vld [vmem:[%s0 + $0x10] sm:$0xff]
          %v327 = vld [vmem:[%s0 + $0x18] sm:$0xff]
          %v328 = vld [vmem:[%s0 + $0x20] sm:$0xff]
          %v329 = vld [vmem:[%s0 + $0x28] sm:$0xff]
          %v330 = vld [vmem:[%s0 + $0x30] sm:$0xff]
          %v331 = vld [vmem:[%s0 + $0x38] sm:$0xff]
          %v332 = vld [vmem:[%s0 + $0x40] sm:$0xff]
          %v333 = vld [vmem:[%s0 + $0x48] sm:$0xff]
          %v334 = vld [vmem:[%s0 + $0x50] sm:$0xff]
          %v335 = vld [vmem:[%s0 + $0x58] sm:$0xff]
          %v336 = vld [vmem:[%s0 + $0x60] sm:$0xff]
          %v337 = vld [vmem:[%s0 + $0x68] sm:$0xff]
          %v338 = vld [vmem:[%s0 + $0x70] sm:$0xff]
          %v339 = vld [vmem:[%s0 + $0x78] sm:$0xff]
          %v340 = vld [vmem:[%s0 + $0x80] sm:$0xff]
          %v341 = vld [vmem:[%s0 + $0x88] sm:$0xff]
          %v342 = vld [vmem:[%s0 + $0x90] sm:$0xff]
          %v343 = vld [vmem:[%s0 + $0x98] sm:$0xff]
          %v344 = vld [vmem:[%s0 + $0xa0] sm:$0xff]
          %v345 = vld [vmem:[%s0 + $0xa8] sm:$0xff]
          %v346 = vld [vmem:[%s0 + $0xb0] sm:$0xff]
          %v347 = vld [vmem:[%s0 + $0xb8] sm:$0xff]
          %v348 = vld [vmem:[%s0 + $0xc0] sm:$0xff]
          %v349 = vld [vmem:[%s0 + $0xc8] sm:$0xff]
          %v350 = vld [vmem:[%s0 + $0xd0] sm:$0xff]
          %v351 = vld [vmem:[%s0 + $0xd8] sm:$0xff]
          %v352 = vld [vmem:[%s0 + $0xe0] sm:$0xff]
          %v353 = vld [vmem:[%s0 + $0xe8] sm:$0xff]
          %v354 = vld [vmem:[%s0 + $0xf0] sm:$0xff]
          %v355 = vld [vmem:[%s0 + $0xf8] sm:$0xff]
          %v356 = vld [vmem:[%s0 + $0x100] sm:$0xff]
          %v357 = vld [vmem:[%s0 + $0x108] sm:$0xff]
          %v358 = vld [vmem:[%s0 + $0x110] sm:$0xff]
          %v359 = vld [vmem:[%s0 + $0x118] sm:$0xff]
          %v360 = vld [vmem:[%s0 + $0x120] sm:$0xff]
          %v361 = vld [vmem:[%s0 + $0x128] sm:$0xff]
          %v362 = vld [vmem:[%s0 + $0x130] sm:$0xff]
          %v363 = vld [vmem:[%s0 + $0x138] sm:$0xff]
          %v364 = vld [vmem:[%s0 + $0x140] sm:$0xff]
          %v365 = vld [vmem:[%s0 + $0x148] sm:$0xff]
          %v366 = vld [vmem:[%s0 + $0x150] sm:$0xff]
          %v367 = vld [vmem:[%s0 + $0x158] sm:$0xff]
          %v368 = vld [vmem:[%s0 + $0x160] sm:$0xff]
          %v369 = vld [vmem:[%s0 + $0x168] sm:$0xff]
          %v370 = vld [vmem:[%s0 + $0x170] sm:$0xff]
          %v371 = vld [vmem:[%s0 + $0x178] sm:$0xff]
          %v372 = vld [vmem:[%s0 + $0x180] sm:$0x3]
          %v373 = vld [vmem:[%s0 + $0x188] sm:$0x3]
          %v374 = vld [vmem:[%s0 + $0x190] sm:$0x3]
          %v375 = vld [vmem:[%s0 + $0x198] sm:$0x3]
          %v376 = vld [vmem:[%s0 + $0x1a0] sm:$0x3]
          %v377 = vld [vmem:[%s0 + $0x1a8] sm:$0x3]
          %v378 = vld [vmem:[%s0 + $0x1b0] sm:$0x3]
          %v379 = vld [vmem:[%s0 + $0x1b8] sm:$0x3]
          %v380 = vld [vmem:[%s1] sm:$0xff]
          %v381 = vld [vmem:[%s1 + $0x8] sm:$0xff]
          %v382 = vld [vmem:[%s1 + $0x10] sm:$0xff]
          %v383 = vld [vmem:[%s1 + $0x18] sm:$0xff]
          %v384 = vld [vmem:[%s1 + $0x20] sm:$0xff]
          %v385 = vld [vmem:[%s1 + $0x28] sm:$0xff]
          %v386 = vld [vmem:[%s1 + $0x30] sm:$0xff]
          %v387 = vld [vmem:[%s1 + $0x38] sm:$0xff]
          %v388 = vld [vmem:[%s1 + $0x40] sm:$0xff]
          %v389 = vld [vmem:[%s1 + $0x48] sm:$0xff]
          %v390 = vld [vmem:[%s1 + $0x50] sm:$0xff]
          %v391 = vld [vmem:[%s1 + $0x58] sm:$0xff]
          %v392 = vld [vmem:[%s1 + $0x60] sm:$0xff]
          %v393 = vld [vmem:[%s1 + $0x68] sm:$0xff]
          %v394 = vld [vmem:[%s1 + $0x70] sm:$0xff]
          %v395 = vld [vmem:[%s1 + $0x78] sm:$0xff]
          %v396 = vld [vmem:[%s1 + $0x80] sm:$0xff]
          %v397 = vld [vmem:[%s1 + $0x88] sm:$0xff]
          %v398 = vld [vmem:[%s1 + $0x90] sm:$0xff]
          %v399 = vld [vmem:[%s1 + $0x98] sm:$0xff]
          %v400 = vld [vmem:[%s1 + $0xa0] sm:$0xff]
          %v401 = vld [vmem:[%s1 + $0xa8] sm:$0xff]
          %v402 = vld [vmem:[%s1 + $0xb0] sm:$0xff]
          %v403 = vld [vmem:[%s1 + $0xb8] sm:$0xff]
          %v404 = vld [vmem:[%s1 + $0xc0] sm:$0xff]
          %v405 = vld [vmem:[%s1 + $0xc8] sm:$0xff]
          %v406 = vld [vmem:[%s1 + $0xd0] sm:$0xff]
          %v407 = vld [vmem:[%s1 + $0xd8] sm:$0xff]
          %v408 = vld [vmem:[%s1 + $0xe0] sm:$0xff]
          %v409 = vld [vmem:[%s1 + $0xe8] sm:$0xff]
          %v410 = vld [vmem:[%s1 + $0xf0] sm:$0xff]
          %v411 = vld [vmem:[%s1 + $0xf8] sm:$0xff]
          %v412 = vld [vmem:[%s1 + $0x100] sm:$0xff]
          %v413 = vld [vmem:[%s1 + $0x108] sm:$0xff]
          %v414 = vld [vmem:[%s1 + $0x110] sm:$0xff]
          %v415 = vld [vmem:[%s1 + $0x118] sm:$0xff]
          %v416 = vld [vmem:[%s1 + $0x120] sm:$0xff]
          %v417 = vld [vmem:[%s1 + $0x128] sm:$0xff]
          %v418 = vld [vmem:[%s1 + $0x130] sm:$0xff]
          %v419 = vld [vmem:[%s1 + $0x138] sm:$0xff]
          %v420 = vld [vmem:[%s1 + $0x140] sm:$0xff]
          %v421 = vld [vmem:[%s1 + $0x148] sm:$0xff]
          %v422 = vld [vmem:[%s1 + $0x150] sm:$0xff]
          %v423 = vld [vmem:[%s1 + $0x158] sm:$0xff]
          %v424 = vld [vmem:[%s1 + $0x160] sm:$0xff]
          %v425 = vld [vmem:[%s1 + $0x168] sm:$0xff]
          %v426 = vld [vmem:[%s1 + $0x170] sm:$0xff]
          %v427 = vld [vmem:[%s1 + $0x178] sm:$0xff]
          %v428 = vld [vmem:[%s1 + $0x180] sm:$0xff]
          %v429 = vld [vmem:[%s1 + $0x188] sm:$0xff]
          %v430 = vld [vmem:[%s1 + $0x190] sm:$0xff]
          %v431 = vld [vmem:[%s1 + $0x198] sm:$0xff]
          %v432 = vld [vmem:[%s1 + $0x1a0] sm:$0xff]
          %v433 = vld [vmem:[%s1 + $0x1a8] sm:$0xff]
          %v434 = vld [vmem:[%s1 + $0x1b0] sm:$0xff]
          %v435 = vld [vmem:[%s1 + $0x1b8] sm:$0xff]
          %v436 = vld [vmem:[%s1 + $0x1c0] sm:$0xff]
          %v437 = vld [vmem:[%s1 + $0x1c8] sm:$0xff]
          %v438 = vld [vmem:[%s1 + $0x1d0] sm:$0xff]
          %v439 = vld [vmem:[%s1 + $0x1d8] sm:$0xff]
          %v440 = vld [vmem:[%s1 + $0x1e0] sm:$0xff]
          %v441 = vld [vmem:[%s1 + $0x1e8] sm:$0xff]
          %v442 = vld [vmem:[%s1 + $0x1f0] sm:$0xff]
          %v443 = vld [vmem:[%s1 + $0x1f8] sm:$0xff]
          %v444 = vld [vmem:[%s1 + $0x200] sm:$0xff]
          %v445 = vld [vmem:[%s1 + $0x208] sm:$0xff]
          %v446 = vld [vmem:[%s1 + $0x210] sm:$0xff]
          %v447 = vld [vmem:[%s1 + $0x218] sm:$0xff]
          %v448 = vld [vmem:[%s1 + $0x220] sm:$0xff]
          %v449 = vld [vmem:[%s1 + $0x228] sm:$0xff]
          %v450 = vld [vmem:[%s1 + $0x230] sm:$0xff]
          %v451 = vld [vmem:[%s1 + $0x238] sm:$0xff]
          %v452 = vld [vmem:[%s1 + $0x240] sm:$0xff]
          %v453 = vld [vmem:[%s1 + $0x248] sm:$0xff]
          %v454 = vld [vmem:[%s1 + $0x250] sm:$0xff]
          %v455 = vld [vmem:[%s1 + $0x258] sm:$0xff]
          %v456 = vld [vmem:[%s1 + $0x260] sm:$0xff]
          %v457 = vld [vmem:[%s1 + $0x268] sm:$0xff]
          %v458 = vld [vmem:[%s1 + $0x270] sm:$0xff]
          %v459 = vld [vmem:[%s1 + $0x278] sm:$0xff]
          %v460 = vld [vmem:[%s1 + $0x280] sm:$0xff]
          %v461 = vld [vmem:[%s1 + $0x288] sm:$0xff]
          %v462 = vld [vmem:[%s1 + $0x290] sm:$0xff]
          %v463 = vld [vmem:[%s1 + $0x298] sm:$0xff]
          %v464 = vld [vmem:[%s1 + $0x2a0] sm:$0xff]
          %v465 = vld [vmem:[%s1 + $0x2a8] sm:$0xff]
          %v466 = vld [vmem:[%s1 + $0x2b0] sm:$0xff]
          %v467 = vld [vmem:[%s1 + $0x2b8] sm:$0xff]
          %v468 = vld [vmem:[%s1 + $0x2c0] sm:$0xff]
          %v469 = vld [vmem:[%s1 + $0x2c8] sm:$0xff]
          %v470 = vld [vmem:[%s1 + $0x2d0] sm:$0xff]
          %v471 = vld [vmem:[%s1 + $0x2d8] sm:$0xff]
          %v472 = vld [vmem:[%s1 + $0x2e0] sm:$0xff]
          %v473 = vld [vmem:[%s1 + $0x2e8] sm:$0xff]
          %v474 = vld [vmem:[%s1 + $0x2f0] sm:$0xff]
          %v475 = vld [vmem:[%s1 + $0x2f8] sm:$0xff]
          %v476 = vld [vmem:[%s1 + $0x300] sm:$0xff]
          %v477 = vld [vmem:[%s1 + $0x308] sm:$0xff]
          %v478 = vld [vmem:[%s1 + $0x310] sm:$0xff]
          %v479 = vld [vmem:[%s1 + $0x318] sm:$0xff]
          %v480 = vld [vmem:[%s1 + $0x320] sm:$0xff]
          %v481 = vld [vmem:[%s1 + $0x328] sm:$0xff]
          %v482 = vld [vmem:[%s1 + $0x330] sm:$0xff]
          %v483 = vld [vmem:[%s1 + $0x338] sm:$0xff]
          %v484 = vld [vmem:[%s1 + $0x340] sm:$0xff]
          %v485 = vld [vmem:[%s1 + $0x348] sm:$0xff]
          %v486 = vld [vmem:[%s1 + $0x350] sm:$0xff]
          %v487 = vld [vmem:[%s1 + $0x358] sm:$0xff]
          %v488 = vld [vmem:[%s1 + $0x360] sm:$0xff]
          %v489 = vld [vmem:[%s1 + $0x368] sm:$0xff]
          %v490 = vld [vmem:[%s1 + $0x370] sm:$0xff]
          %v491 = vld [vmem:[%s1 + $0x378] sm:$0xff]
          %v492 = vld [vmem:[%s1 + $0x380] sm:$0xff]
          %v493 = vld [vmem:[%s1 + $0x388] sm:$0xff]
          %v494 = vld [vmem:[%s1 + $0x390] sm:$0xff]
          %v495 = vld [vmem:[%s1 + $0x398] sm:$0xff]
          %v496 = vld [vmem:[%s1 + $0x3a0] sm:$0xff]
          %v497 = vld [vmem:[%s1 + $0x3a8] sm:$0xff]
          %v498 = vld [vmem:[%s1 + $0x3b0] sm:$0xff]
          %v499 = vld [vmem:[%s1 + $0x3b8] sm:$0xff]
          %v500 = vld [vmem:[%s1 + $0x3c0] sm:$0xff]
          %v501 = vld [vmem:[%s1 + $0x3c8] sm:$0xff]
          %v502 = vld [vmem:[%s1 + $0x3d0] sm:$0xff]
          %v503 = vld [vmem:[%s1 + $0x3d8] sm:$0xff]
          %v504 = vld [vmem:[%s1 + $0x3e0] sm:$0xff]
          %v505 = vld [vmem:[%s1 + $0x3e8] sm:$0xff]
          %v506 = vld [vmem:[%s1 + $0x3f0] sm:$0xff]
          %v507 = vld [vmem:[%s1 + $0x3f8] sm:$0xff]
          %v508 = vld [vmem:[%s2] sm:$0x1]
          %v510 = vlaneseq
          %v511 = vshrl.u32 %v510, 7
          %v512 = vsub.s32 0, %v511
          %v513 = vrot.slane %v508, %v512
          %515 = vmatprep.subr.mxu0 0.0
          %516 = vmatpush1.msra.mxu0 %v395
          %517 = vmatprep.subr.mxu0 0.0
          %518 = vmatpush1.msra.mxu0 %v394
          %519 = vmatprep.subr.mxu0 0.0
          %520 = vmatpush1.msra.mxu0 %v393
          %521 = vmatprep.subr.mxu0 0.0
          %522 = vmatpush1.msra.mxu0 %v392
          %523 = vmatprep.subr.mxu0 0.0
          %524 = vmatpush1.msra.mxu0 %v391
          %525 = vmatprep.subr.mxu0 0.0
          %526 = vmatpush1.msra.mxu0 %v390
          %527 = vmatprep.subr.mxu0 0.0
          %528 = vmatpush1.msra.mxu0 %v389
          %529 = vmatprep.subr.mxu0 0.0
          %530 = vmatpush1.msra.mxu0 %v388
          %531 = vmatprep.subr.mxu0 0.0
          %532 = vmatpush1.msra.mxu0 %v387
          %533 = vmatprep.subr.mxu0 0.0
          %534 = vmatpush1.msra.mxu0 %v386
          %535 = vmatprep.subr.mxu0 0.0
          %536 = vmatpush1.msra.mxu0 %v385
          %537 = vmatprep.subr.mxu0 0.0
          %538 = vmatpush1.msra.mxu0 %v384
          %539 = vmatprep.subr.mxu0 0.0
          %540 = vmatpush1.msra.mxu0 %v383
          %541 = vmatprep.subr.mxu0 0.0
          %542 = vmatpush1.msra.mxu0 %v382
          %543 = vmatprep.subr.mxu0 0.0
          %544 = vmatpush1.msra.mxu0 %v381
          %545 = vmatprep.subr.mxu0 0.0
          %546 = vmatpush1.msra.mxu0 %v380
          %547 = vmatprep.subr.mxu0 0.0
          %548 = vmatpush2.msra.mxu0 %v411
          %549 = vmatprep.subr.mxu0 0.0
          %550 = vmatpush2.msra.mxu0 %v410
          %551 = vmatprep.subr.mxu0 0.0
          %552 = vmatpush2.msra.mxu0 %v409
          %553 = vmatprep.subr.mxu0 0.0
          %554 = vmatpush2.msra.mxu0 %v408
          %555 = vmatprep.subr.mxu0 0.0
          %556 = vmatpush2.msra.mxu0 %v407
          %557 = vmatprep.subr.mxu0 0.0
          %558 = vmatpush2.msra.mxu0 %v406
          %559 = vmatprep.subr.mxu0 0.0
          %560 = vmatpush2.msra.mxu0 %v405
          %561 = vmatprep.subr.mxu0 0.0
          %562 = vmatpush2.msra.mxu0 %v404
          %563 = vmatprep.subr.mxu0 0.0
          %564 = vmatpush2.msra.mxu0 %v403
          %565 = vmatprep.subr.mxu0 0.0
          %566 = vmatpush2.msra.mxu0 %v402
          %567 = vmatprep.subr.mxu0 0.0
          %568 = vmatpush2.msra.mxu0 %v401
          %569 = vmatprep.subr.mxu0 0.0
          %570 = vmatpush2.msra.mxu0 %v400
          %571 = vmatprep.subr.mxu0 0.0
          %572 = vmatpush2.msra.mxu0 %v399
          %573 = vmatprep.subr.mxu0 0.0
          %574 = vmatpush2.msra.mxu0 %v398
          %575 = vmatprep.subr.mxu0 0.0
          %576 = vmatpush2.msra.mxu0 %v397
          %577 = vmatprep.subr.mxu0 0.0
          %578 = vmatpush2.msra.mxu0 %v396
          %579 = vmatprep.mubr.f32.mxu0 %v325
          %580 = vmatmul.mubr.f32.gmra.mxu0 %v324
          %v581 = vpop.f32.mrf.mxu0
          %v582 = vadd.f32 %v513, %v581
          %v583 = vpop.f32.mrf.mxu0
          %584 = vmatprep.mubr.f32.mxu0 %v333
          %585 = vmatmul.mubr.f32.gmra.mxu0 %v332
          %v586 = vpop.f32.mrf.mxu0
          %v587 = vadd.f32 %v513, %v586
          %v588 = vpop.f32.mrf.mxu0
          %589 = vmatprep.mubr.f32.mxu0 %v341
          %590 = vmatmul.mubr.f32.gmra.mxu0 %v340
          %v591 = vpop.f32.mrf.mxu0
          %v592 = vadd.f32 %v513, %v591
          %v593 = vpop.f32.mrf.mxu0
          %594 = vmatprep.mubr.f32.mxu0 %v349
          %595 = vmatmul.mubr.f32.gmra.mxu0 %v348
          %v596 = vpop.f32.mrf.mxu0
          %v597 = vadd.f32 %v513, %v596
          %v598 = vpop.f32.mrf.mxu0
          %599 = vmatprep.mubr.f32.mxu0 %v357
          %600 = vmatmul.mubr.f32.gmra.mxu0 %v356
          %v601 = vpop.f32.mrf.mxu0
          %v602 = vadd.f32 %v513, %v601
          %v603 = vpop.f32.mrf.mxu0
          %604 = vmatprep.mubr.f32.mxu0 %v365
          %605 = vmatmul.mubr.f32.gmra.mxu0 %v364
          %v606 = vpop.f32.mrf.mxu0
          %v607 = vadd.f32 %v513, %v606
          %v608 = vpop.f32.mrf.mxu0
          %609 = vmatprep.mubr.f32.mxu0 %v373
          %610 = vmatmul.mubr.f32.gmra.mxu0 %v372
          %v611 = vpop.f32.mrf.mxu0
          %v612 = vadd.f32 %v513, %v611
          %v613 = vpop.f32.mrf.mxu0
          %614 = vdwg.mxu0
          %615 = vmatprep.subr.mxu0 0.0
          %616 = vmatpush1.msra.mxu0 %v427
          %617 = vmatprep.subr.mxu0 0.0
          %618 = vmatpush1.msra.mxu0 %v426
          %619 = vmatprep.subr.mxu0 0.0
          %620 = vmatpush1.msra.mxu0 %v425
          %621 = vmatprep.subr.mxu0 0.0
          %622 = vmatpush1.msra.mxu0 %v424
          %623 = vmatprep.subr.mxu0 0.0
          %624 = vmatpush1.msra.mxu0 %v423
          %625 = vmatprep.subr.mxu0 0.0
          %626 = vmatpush1.msra.mxu0 %v422
          %627 = vmatprep.subr.mxu0 0.0
          %628 = vmatpush1.msra.mxu0 %v421
          %629 = vmatprep.subr.mxu0 0.0
          %630 = vmatpush1.msra.mxu0 %v420
          %631 = vmatprep.subr.mxu0 0.0
          %632 = vmatpush1.msra.mxu0 %v419
          %633 = vmatprep.subr.mxu0 0.0
          %634 = vmatpush1.msra.mxu0 %v418
          %635 = vmatprep.subr.mxu0 0.0
          %636 = vmatpush1.msra.mxu0 %v417
          %637 = vmatprep.subr.mxu0 0.0
          %638 = vmatpush1.msra.mxu0 %v416
          %639 = vmatprep.subr.mxu0 0.0
          %640 = vmatpush1.msra.mxu0 %v415
          %641 = vmatprep.subr.mxu0 0.0
          %642 = vmatpush1.msra.mxu0 %v414
          %643 = vmatprep.subr.mxu0 0.0
          %644 = vmatpush1.msra.mxu0 %v413
          %645 = vmatprep.subr.mxu0 0.0
          %646 = vmatpush1.msra.mxu0 %v412
          %647 = vmatprep.subr.mxu0 0.0
          %648 = vmatpush2.msra.mxu0 %v443
          %649 = vmatprep.subr.mxu0 0.0
          %650 = vmatpush2.msra.mxu0 %v442
          %651 = vmatprep.subr.mxu0 0.0
          %652 = vmatpush2.msra.mxu0 %v441
          %653 = vmatprep.subr.mxu0 0.0
          %654 = vmatpush2.msra.mxu0 %v440
          %655 = vmatprep.subr.mxu0 0.0
          %656 = vmatpush2.msra.mxu0 %v439
          %657 = vmatprep.subr.mxu0 0.0
          %658 = vmatpush2.msra.mxu0 %v438
          %659 = vmatprep.subr.mxu0 0.0
          %660 = vmatpush2.msra.mxu0 %v437
          %661 = vmatprep.subr.mxu0 0.0
          %662 = vmatpush2.msra.mxu0 %v436
          %663 = vmatprep.subr.mxu0 0.0
          %664 = vmatpush2.msra.mxu0 %v435
          %665 = vmatprep.subr.mxu0 0.0
          %666 = vmatpush2.msra.mxu0 %v434
          %667 = vmatprep.subr.mxu0 0.0
          %668 = vmatpush2.msra.mxu0 %v433
          %669 = vmatprep.subr.mxu0 0.0
          %670 = vmatpush2.msra.mxu0 %v432
          %671 = vmatprep.subr.mxu0 0.0
          %672 = vmatpush2.msra.mxu0 %v431
          %673 = vmatprep.subr.mxu0 0.0
          %674 = vmatpush2.msra.mxu0 %v430
          %675 = vmatprep.subr.mxu0 0.0
          %676 = vmatpush2.msra.mxu0 %v429
          %677 = vmatprep.subr.mxu0 0.0
          %678 = vmatpush2.msra.mxu0 %v428
          %679 = vmatprep.mubr.f32.mxu0 %v327
          %680 = vmatmul.mubr.f32.gmra.mxu0 %v326
          %v681 = vpop.f32.mrf.mxu0
          %v682 = vadd.f32 %v582, %v681
          %v683 = vpop.f32.mrf.mxu0
          %684 = vmatprep.mubr.f32.mxu0 %v335
          %685 = vmatmul.mubr.f32.gmra.mxu0 %v334
          %v686 = vpop.f32.mrf.mxu0
          %v687 = vadd.f32 %v587, %v686
          %v688 = vpop.f32.mrf.mxu0
          %689 = vmatprep.mubr.f32.mxu0 %v343
          %690 = vmatmul.mubr.f32.gmra.mxu0 %v342
          %v691 = vpop.f32.mrf.mxu0
          %v692 = vadd.f32 %v592, %v691
          %v693 = vpop.f32.mrf.mxu0
          %694 = vmatprep.mubr.f32.mxu0 %v351
          %695 = vmatmul.mubr.f32.gmra.mxu0 %v350
          %v696 = vpop.f32.mrf.mxu0
          %v697 = vadd.f32 %v597, %v696
          %v698 = vpop.f32.mrf.mxu0
          %699 = vmatprep.mubr.f32.mxu0 %v359
          %700 = vmatmul.mubr.f32.gmra.mxu0 %v358
          %v701 = vpop.f32.mrf.mxu0
          %v702 = vadd.f32 %v602, %v701
          %v703 = vpop.f32.mrf.mxu0
          %704 = vmatprep.mubr.f32.mxu0 %v367
          %705 = vmatmul.mubr.f32.gmra.mxu0 %v366
          %v706 = vpop.f32.mrf.mxu0
          %v707 = vadd.f32 %v607, %v706
          %v708 = vpop.f32.mrf.mxu0
          %709 = vmatprep.mubr.f32.mxu0 %v375
          %710 = vmatmul.mubr.f32.gmra.mxu0 %v374
          %v711 = vpop.f32.mrf.mxu0
          %v712 = vadd.f32 %v612, %v711
          %v713 = vpop.f32.mrf.mxu0
          %714 = vdwg.mxu0
          %715 = vmatprep.subr.mxu0 0.0
          %716 = vmatpush1.msra.mxu0 %v459
          %717 = vmatprep.subr.mxu0 0.0
          %718 = vmatpush1.msra.mxu0 %v458
          %719 = vmatprep.subr.mxu0 0.0
          %720 = vmatpush1.msra.mxu0 %v457
          %721 = vmatprep.subr.mxu0 0.0
          %722 = vmatpush1.msra.mxu0 %v456
          %723 = vmatprep.subr.mxu0 0.0
          %724 = vmatpush1.msra.mxu0 %v455
          %725 = vmatprep.subr.mxu0 0.0
          %726 = vmatpush1.msra.mxu0 %v454
          %727 = vmatprep.subr.mxu0 0.0
          %728 = vmatpush1.msra.mxu0 %v453
          %729 = vmatprep.subr.mxu0 0.0
          %730 = vmatpush1.msra.mxu0 %v452
          %731 = vmatprep.subr.mxu0 0.0
          %732 = vmatpush1.msra.mxu0 %v451
          %733 = vmatprep.subr.mxu0 0.0
          %734 = vmatpush1.msra.mxu0 %v450
          %735 = vmatprep.subr.mxu0 0.0
          %736 = vmatpush1.msra.mxu0 %v449
          %737 = vmatprep.subr.mxu0 0.0
          %738 = vmatpush1.msra.mxu0 %v448
          %739 = vmatprep.subr.mxu0 0.0
          %740 = vmatpush1.msra.mxu0 %v447
          %741 = vmatprep.subr.mxu0 0.0
          %742 = vmatpush1.msra.mxu0 %v446
          %743 = vmatprep.subr.mxu0 0.0
          %744 = vmatpush1.msra.mxu0 %v445
          %745 = vmatprep.subr.mxu0 0.0
          %746 = vmatpush1.msra.mxu0 %v444
          %747 = vmatprep.subr.mxu0 0.0
          %748 = vmatpush2.msra.mxu0 %v475
          %749 = vmatprep.subr.mxu0 0.0
          %750 = vmatpush2.msra.mxu0 %v474
          %751 = vmatprep.subr.mxu0 0.0
          %752 = vmatpush2.msra.mxu0 %v473
          %753 = vmatprep.subr.mxu0 0.0
          %754 = vmatpush2.msra.mxu0 %v472
          %755 = vmatprep.subr.mxu0 0.0
          %756 = vmatpush2.msra.mxu0 %v471
          %757 = vmatprep.subr.mxu0 0.0
          %758 = vmatpush2.msra.mxu0 %v470
          %759 = vmatprep.subr.mxu0 0.0
          %760 = vmatpush2.msra.mxu0 %v469
          %761 = vmatprep.subr.mxu0 0.0
          %762 = vmatpush2.msra.mxu0 %v468
          %763 = vmatprep.subr.mxu0 0.0
          %764 = vmatpush2.msra.mxu0 %v467
          %765 = vmatprep.subr.mxu0 0.0
          %766 = vmatpush2.msra.mxu0 %v466
          %767 = vmatprep.subr.mxu0 0.0
          %768 = vmatpush2.msra.mxu0 %v465
          %769 = vmatprep.subr.mxu0 0.0
          %770 = vmatpush2.msra.mxu0 %v464
          %771 = vmatprep.subr.mxu0 0.0
          %772 = vmatpush2.msra.mxu0 %v463
          %773 = vmatprep.subr.mxu0 0.0
          %774 = vmatpush2.msra.mxu0 %v462
          %775 = vmatprep.subr.mxu0 0.0
          %776 = vmatpush2.msra.mxu0 %v461
          %777 = vmatprep.subr.mxu0 0.0
          %778 = vmatpush2.msra.mxu0 %v460
          %779 = vmatprep.mubr.f32.mxu0 %v329
          %780 = vmatmul.mubr.f32.gmra.mxu0 %v328
          %v781 = vpop.f32.mrf.mxu0
          %v782 = vadd.f32 %v682, %v781
          %v783 = vpop.f32.mrf.mxu0
          %784 = vmatprep.mubr.f32.mxu0 %v337
          %785 = vmatmul.mubr.f32.gmra.mxu0 %v336
          %v786 = vpop.f32.mrf.mxu0
          %v787 = vadd.f32 %v687, %v786
          %v788 = vpop.f32.mrf.mxu0
          %789 = vmatprep.mubr.f32.mxu0 %v345
          %790 = vmatmul.mubr.f32.gmra.mxu0 %v344
          %v791 = vpop.f32.mrf.mxu0
          %v792 = vadd.f32 %v692, %v791
          %v793 = vpop.f32.mrf.mxu0
          %794 = vmatprep.mubr.f32.mxu0 %v353
          %795 = vmatmul.mubr.f32.gmra.mxu0 %v352
          %v796 = vpop.f32.mrf.mxu0
          %v797 = vadd.f32 %v697, %v796
          %v798 = vpop.f32.mrf.mxu0
          %799 = vmatprep.mubr.f32.mxu0 %v361
          %800 = vmatmul.mubr.f32.gmra.mxu0 %v360
          %v801 = vpop.f32.mrf.mxu0
          %v802 = vadd.f32 %v702, %v801
          %v803 = vpop.f32.mrf.mxu0
          %804 = vmatprep.mubr.f32.mxu0 %v369
          %805 = vmatmul.mubr.f32.gmra.mxu0 %v368
          %v806 = vpop.f32.mrf.mxu0
          %v807 = vadd.f32 %v707, %v806
          %v808 = vpop.f32.mrf.mxu0
          %809 = vmatprep.mubr.f32.mxu0 %v377
          %810 = vmatmul.mubr.f32.gmra.mxu0 %v376
          %v811 = vpop.f32.mrf.mxu0
          %v812 = vadd.f32 %v712, %v811
          %v813 = vpop.f32.mrf.mxu0
          %814 = vdwg.mxu0
          %815 = vmatprep.subr.mxu0 0.0
          %816 = vmatpush1.msra.mxu0 %v491
          %817 = vmatprep.subr.mxu0 0.0
          %818 = vmatpush1.msra.mxu0 %v490
          %819 = vmatprep.subr.mxu0 0.0
          %820 = vmatpush1.msra.mxu0 %v489
          %821 = vmatprep.subr.mxu0 0.0
          %822 = vmatpush1.msra.mxu0 %v488
          %823 = vmatprep.subr.mxu0 0.0
          %824 = vmatpush1.msra.mxu0 %v487
          %825 = vmatprep.subr.mxu0 0.0
          %826 = vmatpush1.msra.mxu0 %v486
          %827 = vmatprep.subr.mxu0 0.0
          %828 = vmatpush1.msra.mxu0 %v485
          %829 = vmatprep.subr.mxu0 0.0
          %830 = vmatpush1.msra.mxu0 %v484
          %831 = vmatprep.subr.mxu0 0.0
          %832 = vmatpush1.msra.mxu0 %v483
          %833 = vmatprep.subr.mxu0 0.0
          %834 = vmatpush1.msra.mxu0 %v482
          %835 = vmatprep.subr.mxu0 0.0
          %836 = vmatpush1.msra.mxu0 %v481
          %837 = vmatprep.subr.mxu0 0.0
          %838 = vmatpush1.msra.mxu0 %v480
          %839 = vmatprep.subr.mxu0 0.0
          %840 = vmatpush1.msra.mxu0 %v479
          %841 = vmatprep.subr.mxu0 0.0
          %842 = vmatpush1.msra.mxu0 %v478
          %843 = vmatprep.subr.mxu0 0.0
          %844 = vmatpush1.msra.mxu0 %v477
          %845 = vmatprep.subr.mxu0 0.0
          %846 = vmatpush1.msra.mxu0 %v476
          %847 = vmatprep.subr.mxu0 0.0
          %848 = vmatpush2.msra.mxu0 %v507
          %849 = vmatprep.subr.mxu0 0.0
          %850 = vmatpush2.msra.mxu0 %v506
          %851 = vmatprep.subr.mxu0 0.0
          %852 = vmatpush2.msra.mxu0 %v505
          %853 = vmatprep.subr.mxu0 0.0
          %854 = vmatpush2.msra.mxu0 %v504
          %855 = vmatprep.subr.mxu0 0.0
          %856 = vmatpush2.msra.mxu0 %v503
          %857 = vmatprep.subr.mxu0 0.0
          %858 = vmatpush2.msra.mxu0 %v502
          %859 = vmatprep.subr.mxu0 0.0
          %860 = vmatpush2.msra.mxu0 %v501
          %861 = vmatprep.subr.mxu0 0.0
          %862 = vmatpush2.msra.mxu0 %v500
          %863 = vmatprep.subr.mxu0 0.0
          %864 = vmatpush2.msra.mxu0 %v499
          %865 = vmatprep.subr.mxu0 0.0
          %866 = vmatpush2.msra.mxu0 %v498
          %867 = vmatprep.subr.mxu0 0.0
          %868 = vmatpush2.msra.mxu0 %v497
          %869 = vmatprep.subr.mxu0 0.0
          %870 = vmatpush2.msra.mxu0 %v496
          %871 = vmatprep.subr.mxu0 0.0
          %872 = vmatpush2.msra.mxu0 %v495
          %873 = vmatprep.subr.mxu0 0.0
          %874 = vmatpush2.msra.mxu0 %v494
          %875 = vmatprep.subr.mxu0 0.0
          %876 = vmatpush2.msra.mxu0 %v493
          %877 = vmatprep.subr.mxu0 0.0
          %878 = vmatpush2.msra.mxu0 %v492
          %879 = vmatprep.mubr.f32.mxu0 %v331
          %880 = vmatmul.mubr.f32.gmra.mxu0 %v330
          %v881 = vpop.f32.mrf.mxu0
          %v882 = vadd.f32 %v782, %v881
          %v883 = vpop.f32.mrf.mxu0
          %884 = vmatprep.mubr.f32.mxu0 %v339
          %885 = vmatmul.mubr.f32.gmra.mxu0 %v338
          %v886 = vpop.f32.mrf.mxu0
          %v887 = vadd.f32 %v787, %v886
          %v888 = vpop.f32.mrf.mxu0
          %889 = vmatprep.mubr.f32.mxu0 %v347
          %890 = vmatmul.mubr.f32.gmra.mxu0 %v346
          %v891 = vpop.f32.mrf.mxu0
          %v892 = vadd.f32 %v792, %v891
          %v893 = vpop.f32.mrf.mxu0
          %894 = vmatprep.mubr.f32.mxu0 %v355
          %895 = vmatmul.mubr.f32.gmra.mxu0 %v354
          %v896 = vpop.f32.mrf.mxu0
          %v897 = vadd.f32 %v797, %v896
          %v898 = vpop.f32.mrf.mxu0
          %899 = vmatprep.mubr.f32.mxu0 %v363
          %900 = vmatmul.mubr.f32.gmra.mxu0 %v362
          %v901 = vpop.f32.mrf.mxu0
          %v902 = vadd.f32 %v802, %v901
          %v903 = vpop.f32.mrf.mxu0
          %904 = vmatprep.mubr.f32.mxu0 %v371
          %905 = vmatmul.mubr.f32.gmra.mxu0 %v370
          %v906 = vpop.f32.mrf.mxu0
          %v907 = vadd.f32 %v807, %v906
          %v908 = vpop.f32.mrf.mxu0
          %909 = vmatprep.mubr.f32.mxu0 %v379
          %910 = vmatmul.mubr.f32.gmra.mxu0 %v378
          %v911 = vpop.f32.mrf.mxu0
          %v912 = vadd.f32 %v812, %v911
          %v913 = vpop.f32.mrf.mxu0
          %914 = vdwg.mxu0
          %vm915 = vcmp.gt.f32.partialorder %v882, 0.0
          %vm916 = vcmp.gt.f32.partialorder %v887, 0.0
          %vm917 = vcmp.gt.f32.partialorder %v892, 0.0
          %vm918 = vcmp.gt.f32.partialorder %v897, 0.0
          %vm919 = vcmp.gt.f32.partialorder %v902, 0.0
          %vm920 = vcmp.gt.f32.partialorder %v907, 0.0
          %vm921 = vcmp.gt.f32.partialorder %v912, 0.0
          %v922 = vmul.f32 %v882, 0.2
          %v923 = vmul.f32 %v887, 0.2
          %v924 = vmul.f32 %v892, 0.2
          %v925 = vmul.f32 %v897, 0.2
          %v926 = vmul.f32 %v902, 0.2
          %v927 = vmul.f32 %v907, 0.2
          %v928 = vmul.f32 %v912, 0.2
          %v929 = vsel %vm915, %v882, %v922
          %v930 = vsel %vm916, %v887, %v923
          %v931 = vsel %vm917, %v892, %v924
          %v932 = vsel %vm918, %v897, %v925
          %v933 = vsel %vm919, %v902, %v926
          %v934 = vsel %vm920, %v907, %v927
          %v935 = vsel %vm921, %v912, %v928
          %936 = vst [vmem:[#allocation2] sm:$0xff] %v929
          %937 = vst [vmem:[#allocation2 + $0x8] sm:$0xff] %v930
          %938 = vst [vmem:[#allocation2 + $0x10] sm:$0xff] %v931
          %939 = vst [vmem:[#allocation2 + $0x18] sm:$0xff] %v932
          %940 = vst [vmem:[#allocation2 + $0x20] sm:$0xff] %v933
          %941 = vst [vmem:[#allocation2 + $0x28] sm:$0xff] %v934
          %942 = vst [vmem:[#allocation2 + $0x30] sm:$0x3] %v935
          %943 = vst [vmem:[#allocation3] sm:$0xff] 0.0
          %944 = vst [vmem:[#allocation3 + $0x8] sm:$0xff] 0.0
        $region52: #{encoder_cnn_forward.3} parent=47 // pred_fallthru
          _
        %s945 = smul.u32 %s23, 10
        %s946 = scalar_lea.vmem [#allocation2], %s945
        %v947 = vld [vmem:[%s946] sm:$0x3]
        %v948 = vld [vmem:[%s318] sm:$0xff]
        %v949 = vld [vmem:[%s318 + $0x8] sm:$0xff]
        %v950 = vld [vmem:[%s318 + $0x10] sm:$0xff]
        %v951 = vld [vmem:[%s318 + $0x18] sm:$0xff]
        %v952 = vld [vmem:[%s318 + $0x20] sm:$0xff]
        %v953 = vld [vmem:[%s318 + $0x28] sm:$0xff]
        %v954 = vld [vmem:[%s318 + $0x30] sm:$0xff]
        %v955 = vld [vmem:[%s318 + $0x38] sm:$0xff]
        %v956 = vld [vmem:[%s318 + $0x40] sm:$0xff]
        %v957 = vld [vmem:[%s318 + $0x48] sm:$0xff]
        %v958 = vld [vmem:[%s318 + $0x50] sm:$0xff]
        %v959 = vld [vmem:[%s318 + $0x58] sm:$0xff]
        %v960 = vld [vmem:[%s318 + $0x60] sm:$0xff]
        %v961 = vld [vmem:[%s318 + $0x68] sm:$0xff]
        %v962 = vld [vmem:[%s318 + $0x70] sm:$0xff]
        %v963 = vld [vmem:[%s318 + $0x78] sm:$0xff]
        %v964 = vld [vmem:[%s318 + $0x80] sm:$0xff]
        %v965 = vld [vmem:[%s318 + $0x88] sm:$0xff]
        %v966 = vld [vmem:[%s318 + $0x90] sm:$0xff]
        %v967 = vld [vmem:[%s318 + $0x98] sm:$0xff]
        %v968 = vld [vmem:[%s318 + $0xa0] sm:$0xff]
        %v969 = vld [vmem:[%s318 + $0xa8] sm:$0xff]
        %v970 = vld [vmem:[%s318 + $0xb0] sm:$0xff]
        %v971 = vld [vmem:[%s318 + $0xb8] sm:$0xff]
        %v972 = vld [vmem:[%s318 + $0xc0] sm:$0xff]
        %v973 = vld [vmem:[%s318 + $0xc8] sm:$0xff]
        %v974 = vld [vmem:[%s318 + $0xd0] sm:$0xff]
        %v975 = vld [vmem:[%s318 + $0xd8] sm:$0xff]
        %v976 = vld [vmem:[%s318 + $0xe0] sm:$0xff]
        %v977 = vld [vmem:[%s318 + $0xe8] sm:$0xff]
        %v978 = vld [vmem:[%s318 + $0xf0] sm:$0xff]
        %v979 = vld [vmem:[%s318 + $0xf8] sm:$0xff]
        %v980 = vld [vmem:[%s318 + $0x100] sm:$0xff]
        %v981 = vld [vmem:[%s318 + $0x108] sm:$0xff]
        %v982 = vld [vmem:[%s318 + $0x110] sm:$0xff]
        %v983 = vld [vmem:[%s318 + $0x118] sm:$0xff]
        %v984 = vld [vmem:[%s318 + $0x120] sm:$0xff]
        %v985 = vld [vmem:[%s318 + $0x128] sm:$0xff]
        %v986 = vld [vmem:[%s318 + $0x130] sm:$0xff]
        %v987 = vld [vmem:[%s318 + $0x138] sm:$0xff]
        %v988 = vld [vmem:[%s318 + $0x140] sm:$0xff]
        %v989 = vld [vmem:[%s318 + $0x148] sm:$0xff]
        %v990 = vld [vmem:[%s318 + $0x150] sm:$0xff]
        %v991 = vld [vmem:[%s318 + $0x158] sm:$0xff]
        %v992 = vld [vmem:[%s318 + $0x160] sm:$0xff]
        %v993 = vld [vmem:[%s318 + $0x168] sm:$0xff]
        %v994 = vld [vmem:[%s318 + $0x170] sm:$0xff]
        %v995 = vld [vmem:[%s318 + $0x178] sm:$0xff]
        %v996 = vld [vmem:[%s318 + $0x180] sm:$0xff]
        %v997 = vld [vmem:[%s318 + $0x188] sm:$0xff]
        %v998 = vld [vmem:[%s318 + $0x190] sm:$0xff]
        %v999 = vld [vmem:[%s318 + $0x198] sm:$0xff]
        %v1000 = vld [vmem:[%s318 + $0x1a0] sm:$0xff]
        %v1001 = vld [vmem:[%s318 + $0x1a8] sm:$0xff]
        %v1002 = vld [vmem:[%s318 + $0x1b0] sm:$0xff]
        %v1003 = vld [vmem:[%s318 + $0x1b8] sm:$0xff]
        %v1004 = vld [vmem:[%s318 + $0x1c0] sm:$0xff]
        %v1005 = vld [vmem:[%s318 + $0x1c8] sm:$0xff]
        %v1006 = vld [vmem:[%s318 + $0x1d0] sm:$0xff]
        %v1007 = vld [vmem:[%s318 + $0x1d8] sm:$0xff]
        %v1008 = vld [vmem:[%s318 + $0x1e0] sm:$0xff]
        %v1009 = vld [vmem:[%s318 + $0x1e8] sm:$0xff]
        %v1010 = vld [vmem:[%s318 + $0x1f0] sm:$0xff]
        %v1011 = vld [vmem:[%s318 + $0x1f8] sm:$0xff]
        %v1012 = vunpack.c.l.bf16 %v948
        %v1013 = vunpack.c.h.bf16 %v948
        %v1014 = vunpack.c.l.bf16 %v949
        %v1015 = vunpack.c.h.bf16 %v949
        %v1016 = vunpack.c.l.bf16 %v950
        %v1017 = vunpack.c.h.bf16 %v950
        %v1018 = vunpack.c.l.bf16 %v951
        %v1019 = vunpack.c.h.bf16 %v951
        %v1020 = vunpack.c.l.bf16 %v952
        %v1021 = vunpack.c.h.bf16 %v952
        %v1022 = vunpack.c.l.bf16 %v953
        %v1023 = vunpack.c.h.bf16 %v953
        %v1024 = vunpack.c.l.bf16 %v954
        %v1025 = vunpack.c.h.bf16 %v954
        %v1026 = vunpack.c.l.bf16 %v955
        %v1027 = vunpack.c.h.bf16 %v955
        %v1028 = vunpack.c.l.bf16 %v956
        %v1029 = vunpack.c.h.bf16 %v956
        %v1030 = vunpack.c.l.bf16 %v957
        %v1031 = vunpack.c.h.bf16 %v957
        %v1032 = vunpack.c.l.bf16 %v958
        %v1033 = vunpack.c.h.bf16 %v958
        %v1034 = vunpack.c.l.bf16 %v959
        %v1035 = vunpack.c.h.bf16 %v959
        %v1036 = vunpack.c.l.bf16 %v960
        %v1037 = vunpack.c.h.bf16 %v960
        %v1038 = vunpack.c.l.bf16 %v961
        %v1039 = vunpack.c.h.bf16 %v961
        %v1040 = vunpack.c.l.bf16 %v962
        %v1041 = vunpack.c.h.bf16 %v962
        %v1042 = vunpack.c.l.bf16 %v963
        %v1043 = vunpack.c.h.bf16 %v963
        %v1044 = vunpack.c.l.bf16 %v964
        %v1045 = vunpack.c.h.bf16 %v964
        %v1046 = vunpack.c.l.bf16 %v965
        %v1047 = vunpack.c.h.bf16 %v965
        %v1048 = vunpack.c.l.bf16 %v966
        %v1049 = vunpack.c.h.bf16 %v966
        %v1050 = vunpack.c.l.bf16 %v967
        %v1051 = vunpack.c.h.bf16 %v967
        %v1052 = vunpack.c.l.bf16 %v968
        %v1053 = vunpack.c.h.bf16 %v968
        %v1054 = vunpack.c.l.bf16 %v969
        %v1055 = vunpack.c.h.bf16 %v969
        %v1056 = vunpack.c.l.bf16 %v970
        %v1057 = vunpack.c.h.bf16 %v970
        %v1058 = vunpack.c.l.bf16 %v971
        %v1059 = vunpack.c.h.bf16 %v971
        %v1060 = vunpack.c.l.bf16 %v972
        %v1061 = vunpack.c.h.bf16 %v972
        %v1062 = vunpack.c.l.bf16 %v973
        %v1063 = vunpack.c.h.bf16 %v973
        %v1064 = vunpack.c.l.bf16 %v974
        %v1065 = vunpack.c.h.bf16 %v974
        %v1066 = vunpack.c.l.bf16 %v975
        %v1067 = vunpack.c.h.bf16 %v975
        %v1068 = vunpack.c.l.bf16 %v976
        %v1069 = vunpack.c.h.bf16 %v976
        %v1070 = vunpack.c.l.bf16 %v977
        %v1071 = vunpack.c.h.bf16 %v977
        %v1072 = vunpack.c.l.bf16 %v978
        %v1073 = vunpack.c.h.bf16 %v978
        %v1074 = vunpack.c.l.bf16 %v979
        %v1075 = vunpack.c.h.bf16 %v979
        %v1076 = vunpack.c.l.bf16 %v980
        %v1077 = vunpack.c.h.bf16 %v980
        %v1078 = vunpack.c.l.bf16 %v981
        %v1079 = vunpack.c.h.bf16 %v981
        %v1080 = vunpack.c.l.bf16 %v982
        %v1081 = vunpack.c.h.bf16 %v982
        %v1082 = vunpack.c.l.bf16 %v983
        %v1083 = vunpack.c.h.bf16 %v983
        %v1084 = vunpack.c.l.bf16 %v984
        %v1085 = vunpack.c.h.bf16 %v984
        %v1086 = vunpack.c.l.bf16 %v985
        %v1087 = vunpack.c.h.bf16 %v985
        %v1088 = vunpack.c.l.bf16 %v986
        %v1089 = vunpack.c.h.bf16 %v986
        %v1090 = vunpack.c.l.bf16 %v987
        %v1091 = vunpack.c.h.bf16 %v987
        %v1092 = vunpack.c.l.bf16 %v988
        %v1093 = vunpack.c.h.bf16 %v988
        %v1094 = vunpack.c.l.bf16 %v989
        %v1095 = vunpack.c.h.bf16 %v989
        %v1096 = vunpack.c.l.bf16 %v990
        %v1097 = vunpack.c.h.bf16 %v990
        %v1098 = vunpack.c.l.bf16 %v991
        %v1099 = vunpack.c.h.bf16 %v991
        %v1100 = vunpack.c.l.bf16 %v992
        %v1101 = vunpack.c.h.bf16 %v992
        %v1102 = vunpack.c.l.bf16 %v993
        %v1103 = vunpack.c.h.bf16 %v993
        %v1104 = vunpack.c.l.bf16 %v994
        %v1105 = vunpack.c.h.bf16 %v994
        %v1106 = vunpack.c.l.bf16 %v995
        %v1107 = vunpack.c.h.bf16 %v995
        %v1108 = vunpack.c.l.bf16 %v996
        %v1109 = vunpack.c.h.bf16 %v996
        %v1110 = vunpack.c.l.bf16 %v997
        %v1111 = vunpack.c.h.bf16 %v997
        %v1112 = vunpack.c.l.bf16 %v998
        %v1113 = vunpack.c.h.bf16 %v998
        %v1114 = vunpack.c.l.bf16 %v999
        %v1115 = vunpack.c.h.bf16 %v999
        %v1116 = vunpack.c.l.bf16 %v1000
        %v1117 = vunpack.c.h.bf16 %v1000
        %v1118 = vunpack.c.l.bf16 %v1001
        %v1119 = vunpack.c.h.bf16 %v1001
        %v1120 = vunpack.c.l.bf16 %v1002
        %v1121 = vunpack.c.h.bf16 %v1002
        %v1122 = vunpack.c.l.bf16 %v1003
        %v1123 = vunpack.c.h.bf16 %v1003
        %v1124 = vunpack.c.l.bf16 %v1004
        %v1125 = vunpack.c.h.bf16 %v1004
        %v1126 = vunpack.c.l.bf16 %v1005
        %v1127 = vunpack.c.h.bf16 %v1005
        %v1128 = vunpack.c.l.bf16 %v1006
        %v1129 = vunpack.c.h.bf16 %v1006
        %v1130 = vunpack.c.l.bf16 %v1007
        %v1131 = vunpack.c.h.bf16 %v1007
        %v1132 = vunpack.c.l.bf16 %v1008
        %v1133 = vunpack.c.h.bf16 %v1008
        %v1134 = vunpack.c.l.bf16 %v1009
        %v1135 = vunpack.c.h.bf16 %v1009
        %v1136 = vunpack.c.l.bf16 %v1010
        %v1137 = vunpack.c.h.bf16 %v1010
        %v1138 = vunpack.c.l.bf16 %v1011
        %v1139 = vunpack.c.h.bf16 %v1011
        %v1140 = vld [vmem:[#allocation3] sm:$0xff]
        %v1141 = vld [vmem:[#allocation3 + $0x8] sm:$0xff]
        %1142 = vmatprep.subr.mxu0 %v1133
        %1143 = vmatpush1.msra.mxu0 %v1132
        %1144 = vmatprep.subr.mxu0 %v1125
        %1145 = vmatpush1.msra.mxu0 %v1124
        %1146 = vmatprep.subr.mxu0 %v1117
        %1147 = vmatpush1.msra.mxu0 %v1116
        %1148 = vmatprep.subr.mxu0 %v1109
        %1149 = vmatpush1.msra.mxu0 %v1108
        %1150 = vmatprep.subr.mxu0 %v1101
        %1151 = vmatpush1.msra.mxu0 %v1100
        %1152 = vmatprep.subr.mxu0 %v1093
        %1153 = vmatpush1.msra.mxu0 %v1092
        %1154 = vmatprep.subr.mxu0 %v1085
        %1155 = vmatpush1.msra.mxu0 %v1084
        %1156 = vmatprep.subr.mxu0 %v1077
        %1157 = vmatpush1.msra.mxu0 %v1076
        %1158 = vmatprep.subr.mxu0 %v1069
        %1159 = vmatpush1.msra.mxu0 %v1068
        %1160 = vmatprep.subr.mxu0 %v1061
        %1161 = vmatpush1.msra.mxu0 %v1060
        %1162 = vmatprep.subr.mxu0 %v1053
        %1163 = vmatpush1.msra.mxu0 %v1052
        %1164 = vmatprep.subr.mxu0 %v1045
        %1165 = vmatpush1.msra.mxu0 %v1044
        %1166 = vmatprep.subr.mxu0 %v1037
        %1167 = vmatpush1.msra.mxu0 %v1036
        %1168 = vmatprep.subr.mxu0 %v1029
        %1169 = vmatpush1.msra.mxu0 %v1028
        %1170 = vmatprep.subr.mxu0 %v1021
        %1171 = vmatpush1.msra.mxu0 %v1020
        %1172 = vmatprep.subr.mxu0 %v1013
        %1173 = vmatpush1.msra.mxu0 %v1012
        %1174 = vmatprep.subr.mxu0 0.0
        %1175 = vmatpush2.msra.mxu0 0.0
        %1176 = vmatprep.subr.mxu0 0.0
        %1177 = vmatpush2.msra.mxu0 0.0
        %1178 = vmatprep.subr.mxu0 0.0
        %1179 = vmatpush2.msra.mxu0 0.0
        %1180 = vmatprep.subr.mxu0 0.0
        %1181 = vmatpush2.msra.mxu0 0.0
        %1182 = vmatprep.subr.mxu0 0.0
        %1183 = vmatpush2.msra.mxu0 0.0
        %1184 = vmatprep.subr.mxu0 0.0
        %1185 = vmatpush2.msra.mxu0 0.0
        %1186 = vmatprep.subr.mxu0 0.0
        %1187 = vmatpush2.msra.mxu0 0.0
        %1188 = vmatprep.subr.mxu0 0.0
        %1189 = vmatpush2.msra.mxu0 0.0
        %1190 = vmatprep.subr.mxu0 0.0
        %1191 = vmatpush2.msra.mxu0 0.0
        %1192 = vmatprep.subr.mxu0 0.0
        %1193 = vmatpush2.msra.mxu0 0.0
        %1194 = vmatprep.subr.mxu0 0.0
        %1195 = vmatpush2.msra.mxu0 0.0
        %1196 = vmatprep.subr.mxu0 0.0
        %1197 = vmatpush2.msra.mxu0 0.0
        %1198 = vmatprep.subr.mxu0 0.0
        %1199 = vmatpush2.msra.mxu0 0.0
        %1200 = vmatprep.subr.mxu0 0.0
        %1201 = vmatpush2.msra.mxu0 0.0
        %1202 = vmatprep.subr.mxu0 0.0
        %1203 = vmatpush2.msra.mxu0 0.0
        %1204 = vmatprep.subr.mxu0 0.0
        %1205 = vmatpush2.msra.mxu0 0.0
        %1206 = vmatprep.mubr.f32.mxu0 0.0
        %1207 = vmatmul.mubr.f32.gmra.mxu0 %v947
        %v1208 = vpop.f32.mrf.mxu0
        %v1209 = vadd.f32 0.0, %v1208
        %v1210 = vpop.f32.mrf.mxu0
        %v1211 = vadd.f32 0.0, %v1210
        %1212 = vdwg.mxu0
        %1213 = vmatprep.subr.mxu0 %v1135
        %1214 = vmatpush1.msra.mxu0 %v1134
        %1215 = vmatprep.subr.mxu0 %v1127
        %1216 = vmatpush1.msra.mxu0 %v1126
        %1217 = vmatprep.subr.mxu0 %v1119
        %1218 = vmatpush1.msra.mxu0 %v1118
        %1219 = vmatprep.subr.mxu0 %v1111
        %1220 = vmatpush1.msra.mxu0 %v1110
        %1221 = vmatprep.subr.mxu0 %v1103
        %1222 = vmatpush1.msra.mxu0 %v1102
        %1223 = vmatprep.subr.mxu0 %v1095
        %1224 = vmatpush1.msra.mxu0 %v1094
        %1225 = vmatprep.subr.mxu0 %v1087
        %1226 = vmatpush1.msra.mxu0 %v1086
        %1227 = vmatprep.subr.mxu0 %v1079
        %1228 = vmatpush1.msra.mxu0 %v1078
        %1229 = vmatprep.subr.mxu0 %v1071
        %1230 = vmatpush1.msra.mxu0 %v1070
        %1231 = vmatprep.subr.mxu0 %v1063
        %1232 = vmatpush1.msra.mxu0 %v1062
        %1233 = vmatprep.subr.mxu0 %v1055
        %1234 = vmatpush1.msra.mxu0 %v1054
        %1235 = vmatprep.subr.mxu0 %v1047
        %1236 = vmatpush1.msra.mxu0 %v1046
        %1237 = vmatprep.subr.mxu0 %v1039
        %1238 = vmatpush1.msra.mxu0 %v1038
        %1239 = vmatprep.subr.mxu0 %v1031
        %1240 = vmatpush1.msra.mxu0 %v1030
        %1241 = vmatprep.subr.mxu0 %v1023
        %1242 = vmatpush1.msra.mxu0 %v1022
        %1243 = vmatprep.subr.mxu0 %v1015
        %1244 = vmatpush1.msra.mxu0 %v1014
        %1245 = vmatprep.subr.mxu0 0.0
        %1246 = vmatpush2.msra.mxu0 0.0
        %1247 = vmatprep.subr.mxu0 0.0
        %1248 = vmatpush2.msra.mxu0 0.0
        %1249 = vmatprep.subr.mxu0 0.0
        %1250 = vmatpush2.msra.mxu0 0.0
        %1251 = vmatprep.subr.mxu0 0.0
        %1252 = vmatpush2.msra.mxu0 0.0
        %1253 = vmatprep.subr.mxu0 0.0
        %1254 = vmatpush2.msra.mxu0 0.0
        %1255 = vmatprep.subr.mxu0 0.0
        %1256 = vmatpush2.msra.mxu0 0.0
        %1257 = vmatprep.subr.mxu0 0.0
        %1258 = vmatpush2.msra.mxu0 0.0
        %1259 = vmatprep.subr.mxu0 0.0
        %1260 = vmatpush2.msra.mxu0 0.0
        %1261 = vmatprep.subr.mxu0 0.0
        %1262 = vmatpush2.msra.mxu0 0.0
        %1263 = vmatprep.subr.mxu0 0.0
        %1264 = vmatpush2.msra.mxu0 0.0
        %1265 = vmatprep.subr.mxu0 0.0
        %1266 = vmatpush2.msra.mxu0 0.0
        %1267 = vmatprep.subr.mxu0 0.0
        %1268 = vmatpush2.msra.mxu0 0.0
        %1269 = vmatprep.subr.mxu0 0.0
        %1270 = vmatpush2.msra.mxu0 0.0
        %1271 = vmatprep.subr.mxu0 0.0
        %1272 = vmatpush2.msra.mxu0 0.0
        %1273 = vmatprep.subr.mxu0 0.0
        %1274 = vmatpush2.msra.mxu0 0.0
        %1275 = vmatprep.subr.mxu0 0.0
        %1276 = vmatpush2.msra.mxu0 0.0
        %1277 = vmatprep.mubr.f32.mxu0 0.0
        %1278 = vmatmul.mubr.f32.gmra.mxu0 %v947
        %v1279 = vpop.f32.mrf.mxu0
        %v1280 = vadd.f32 0.0, %v1279
        %v1281 = vpop.f32.mrf.mxu0
        %v1282 = vadd.f32 0.0, %v1281
        %1283 = vdwg.mxu0
        %1284 = vmatprep.subr.mxu0 %v1137
        %1285 = vmatpush1.msra.mxu0 %v1136
        %1286 = vmatprep.subr.mxu0 %v1129
        %1287 = vmatpush1.msra.mxu0 %v1128
        %1288 = vmatprep.subr.mxu0 %v1121
        %1289 = vmatpush1.msra.mxu0 %v1120
        %1290 = vmatprep.subr.mxu0 %v1113
        %1291 = vmatpush1.msra.mxu0 %v1112
        %1292 = vmatprep.subr.mxu0 %v1105
        %1293 = vmatpush1.msra.mxu0 %v1104
        %1294 = vmatprep.subr.mxu0 %v1097
        %1295 = vmatpush1.msra.mxu0 %v1096
        %1296 = vmatprep.subr.mxu0 %v1089
        %1297 = vmatpush1.msra.mxu0 %v1088
        %1298 = vmatprep.subr.mxu0 %v1081
        %1299 = vmatpush1.msra.mxu0 %v1080
        %1300 = vmatprep.subr.mxu0 %v1073
        %1301 = vmatpush1.msra.mxu0 %v1072
        %1302 = vmatprep.subr.mxu0 %v1065
        %1303 = vmatpush1.msra.mxu0 %v1064
        %1304 = vmatprep.subr.mxu0 %v1057
        %1305 = vmatpush1.msra.mxu0 %v1056
        %1306 = vmatprep.subr.mxu0 %v1049
        %1307 = vmatpush1.msra.mxu0 %v1048
        %1308 = vmatprep.subr.mxu0 %v1041
        %1309 = vmatpush1.msra.mxu0 %v1040
        %1310 = vmatprep.subr.mxu0 %v1033
        %1311 = vmatpush1.msra.mxu0 %v1032
        %1312 = vmatprep.subr.mxu0 %v1025
        %1313 = vmatpush1.msra.mxu0 %v1024
        %1314 = vmatprep.subr.mxu0 %v1017
        %1315 = vmatpush1.msra.mxu0 %v1016
        %1316 = vmatprep.subr.mxu0 0.0
        %1317 = vmatpush2.msra.mxu0 0.0
        %1318 = vmatprep.subr.mxu0 0.0
        %1319 = vmatpush2.msra.mxu0 0.0
        %1320 = vmatprep.subr.mxu0 0.0
        %1321 = vmatpush2.msra.mxu0 0.0
        %1322 = vmatprep.subr.mxu0 0.0
        %1323 = vmatpush2.msra.mxu0 0.0
        %1324 = vmatprep.subr.mxu0 0.0
        %1325 = vmatpush2.msra.mxu0 0.0
        %1326 = vmatprep.subr.mxu0 0.0
        %1327 = vmatpush2.msra.mxu0 0.0
        %1328 = vmatprep.subr.mxu0 0.0
        %1329 = vmatpush2.msra.mxu0 0.0
        %1330 = vmatprep.subr.mxu0 0.0
        %1331 = vmatpush2.msra.mxu0 0.0
        %1332 = vmatprep.subr.mxu0 0.0
        %1333 = vmatpush2.msra.mxu0 0.0
        %1334 = vmatprep.subr.mxu0 0.0
        %1335 = vmatpush2.msra.mxu0 0.0
        %1336 = vmatprep.subr.mxu0 0.0
        %1337 = vmatpush2.msra.mxu0 0.0
        %1338 = vmatprep.subr.mxu0 0.0
        %1339 = vmatpush2.msra.mxu0 0.0
        %1340 = vmatprep.subr.mxu0 0.0
        %1341 = vmatpush2.msra.mxu0 0.0
        %1342 = vmatprep.subr.mxu0 0.0
        %1343 = vmatpush2.msra.mxu0 0.0
        %1344 = vmatprep.subr.mxu0 0.0
        %1345 = vmatpush2.msra.mxu0 0.0
        %1346 = vmatprep.subr.mxu0 0.0
        %1347 = vmatpush2.msra.mxu0 0.0
        %1348 = vmatprep.mubr.f32.mxu0 0.0
        %1349 = vmatmul.mubr.f32.gmra.mxu0 %v947
        %v1350 = vpop.f32.mrf.mxu0
        %v1351 = vadd.f32 0.0, %v1350
        %v1352 = vpop.f32.mrf.mxu0
        %v1353 = vadd.f32 0.0, %v1352
        %1354 = vdwg.mxu0
        %1355 = vmatprep.subr.mxu0 %v1139
        %1356 = vmatpush1.msra.mxu0 %v1138
        %1357 = vmatprep.subr.mxu0 %v1131
        %1358 = vmatpush1.msra.mxu0 %v1130
        %1359 = vmatprep.subr.mxu0 %v1123
        %1360 = vmatpush1.msra.mxu0 %v1122
        %1361 = vmatprep.subr.mxu0 %v1115
        %1362 = vmatpush1.msra.mxu0 %v1114
        %1363 = vmatprep.subr.mxu0 %v1107
        %1364 = vmatpush1.msra.mxu0 %v1106
        %1365 = vmatprep.subr.mxu0 %v1099
        %1366 = vmatpush1.msra.mxu0 %v1098
        %1367 = vmatprep.subr.mxu0 %v1091
        %1368 = vmatpush1.msra.mxu0 %v1090
        %1369 = vmatprep.subr.mxu0 %v1083
        %1370 = vmatpush1.msra.mxu0 %v1082
        %1371 = vmatprep.subr.mxu0 %v1075
        %1372 = vmatpush1.msra.mxu0 %v1074
        %1373 = vmatprep.subr.mxu0 %v1067
        %1374 = vmatpush1.msra.mxu0 %v1066
        %1375 = vmatprep.subr.mxu0 %v1059
        %1376 = vmatpush1.msra.mxu0 %v1058
        %1377 = vmatprep.subr.mxu0 %v1051
        %1378 = vmatpush1.msra.mxu0 %v1050
        %1379 = vmatprep.subr.mxu0 %v1043
        %1380 = vmatpush1.msra.mxu0 %v1042
        %1381 = vmatprep.subr.mxu0 %v1035
        %1382 = vmatpush1.msra.mxu0 %v1034
        %1383 = vmatprep.subr.mxu0 %v1027
        %1384 = vmatpush1.msra.mxu0 %v1026
        %1385 = vmatprep.subr.mxu0 %v1019
        %1386 = vmatpush1.msra.mxu0 %v1018
        %1387 = vmatprep.subr.mxu0 0.0
        %1388 = vmatpush2.msra.mxu0 0.0
        %1389 = vmatprep.subr.mxu0 0.0
        %1390 = vmatpush2.msra.mxu0 0.0
        %1391 = vmatprep.subr.mxu0 0.0
        %1392 = vmatpush2.msra.mxu0 0.0
        %1393 = vmatprep.subr.mxu0 0.0
        %1394 = vmatpush2.msra.mxu0 0.0
        %1395 = vmatprep.subr.mxu0 0.0
        %1396 = vmatpush2.msra.mxu0 0.0
        %1397 = vmatprep.subr.mxu0 0.0
        %1398 = vmatpush2.msra.mxu0 0.0
        %1399 = vmatprep.subr.mxu0 0.0
        %1400 = vmatpush2.msra.mxu0 0.0
        %1401 = vmatprep.subr.mxu0 0.0
        %1402 = vmatpush2.msra.mxu0 0.0
        %1403 = vmatprep.subr.mxu0 0.0
        %1404 = vmatpush2.msra.mxu0 0.0
        %1405 = vmatprep.subr.mxu0 0.0
        %1406 = vmatpush2.msra.mxu0 0.0
        %1407 = vmatprep.subr.mxu0 0.0
        %1408 = vmatpush2.msra.mxu0 0.0
        %1409 = vmatprep.subr.mxu0 0.0
        %1410 = vmatpush2.msra.mxu0 0.0
        %1411 = vmatprep.subr.mxu0 0.0
        %1412 = vmatpush2.msra.mxu0 0.0
        %1413 = vmatprep.subr.mxu0 0.0
        %1414 = vmatpush2.msra.mxu0 0.0
        %1415 = vmatprep.subr.mxu0 0.0
        %1416 = vmatpush2.msra.mxu0 0.0
        %1417 = vmatprep.subr.mxu0 0.0
        %1418 = vmatpush2.msra.mxu0 0.0
        %1419 = vmatprep.mubr.f32.mxu0 0.0
        %1420 = vmatmul.mubr.f32.gmra.mxu0 %v947
        %v1421 = vpop.f32.mrf.mxu0
        %v1422 = vadd.f32 0.0, %v1421
        %v1423 = vpop.f32.mrf.mxu0
        %v1424 = vadd.f32 0.0, %v1423
        %1425 = vdwg.mxu0
        %v1434 = vcombine.low %v1209, %v1211
        %v1435 = vcombine.low %v1280, %v1282
        %v1437 = vunpack.c.l.s4 1983009808
        %v1438 = vunpack.c.0.s8 %v1437
        %v1439 = vlaneseq
        %v1440 = vshrl.u32 %v1439, 7
        %v1441 = vsub.s32 %v1438, %v1440
        %v1442 = vrot.slane %v1434, %v1441
        %v1444 = vunpack.c.l.s4 1983009808
        %v1445 = vunpack.c.0.s8 %v1444
        %v1446 = vlaneseq
        %v1447 = vshrl.u32 %v1446, 7
        %v1448 = vsub.s32 %v1445, %v1447
        %v1449 = vrot.slane %v1435, %v1448
        %v1450 = vcombine.low %v1442, %v1449
        %v1451 = vcombine.low %v1351, %v1353
        %v1452 = vcombine.low %v1422, %v1424
        %v1454 = vunpack.c.l.s4 1983009808
        %v1455 = vunpack.c.0.s8 %v1454
        %v1456 = vlaneseq
        %v1457 = vshrl.u32 %v1456, 7
        %v1458 = vsub.s32 %v1455, %v1457
        %v1459 = vrot.slane %v1451, %v1458
        %v1461 = vunpack.c.l.s4 1983009808
        %v1462 = vunpack.c.0.s8 %v1461
        %v1463 = vlaneseq
        %v1464 = vshrl.u32 %v1463, 7
        %v1465 = vsub.s32 %v1462, %v1464
        %v1466 = vrot.slane %v1452, %v1465
        %v1467 = vcombine.low %v1459, %v1466
        %v1470 = vadd.f32 %v1140, %v1450
        %v1471 = vadd.f32 %v1141, %v1467
        %1472 = vst [vmem:[#allocation3] sm:$0xff] %v1470
        %1473 = vst [vmem:[#allocation3 + $0x8] sm:$0xff] %v1471
        %s1474 = smul.u32 %s23, 5
        %s1475 = sadd.s32 %s1474, 1
        %s1476 = smul.u32 %s1475, 2
        %s1477 = scalar_lea.vmem [#allocation2], %s1476
        %v1478 = vld [vmem:[%s1477] sm:$0x3]
        %v1479 = vld [vmem:[%s318 + $0x200] sm:$0xff]
        %v1480 = vld [vmem:[%s318 + $0x208] sm:$0xff]
        %v1481 = vld [vmem:[%s318 + $0x210] sm:$0xff]
        %v1482 = vld [vmem:[%s318 + $0x218] sm:$0xff]
        %v1483 = vld [vmem:[%s318 + $0x220] sm:$0xff]
        %v1484 = vld [vmem:[%s318 + $0x228] sm:$0xff]
        %v1485 = vld [vmem:[%s318 + $0x230] sm:$0xff]
        %v1486 = vld [vmem:[%s318 + $0x238] sm:$0xff]
        %v1487 = vld [vmem:[%s318 + $0x240] sm:$0xff]
        %v1488 = vld [vmem:[%s318 + $0x248] sm:$0xff]
        %v1489 = vld [vmem:[%s318 + $0x250] sm:$0xff]
        %v1490 = vld [vmem:[%s318 + $0x258] sm:$0xff]
        %v1491 = vld [vmem:[%s318 + $0x260] sm:$0xff]
        %v1492 = vld [vmem:[%s318 + $0x268] sm:$0xff]
        %v1493 = vld [vmem:[%s318 + $0x270] sm:$0xff]
        %v1494 = vld [vmem:[%s318 + $0x278] sm:$0xff]
        %v1495 = vld [vmem:[%s318 + $0x280] sm:$0xff]
        %v1496 = vld [vmem:[%s318 + $0x288] sm:$0xff]
        %v1497 = vld [vmem:[%s318 + $0x290] sm:$0xff]
        %v1498 = vld [vmem:[%s318 + $0x298] sm:$0xff]
        %v1499 = vld [vmem:[%s318 + $0x2a0] sm:$0xff]
        %v1500 = vld [vmem:[%s318 + $0x2a8] sm:$0xff]
        %v1501 = vld [vmem:[%s318 + $0x2b0] sm:$0xff]
        %v1502 = vld [vmem:[%s318 + $0x2b8] sm:$0xff]
        %v1503 = vld [vmem:[%s318 + $0x2c0] sm:$0xff]
        %v1504 = vld [vmem:[%s318 + $0x2c8] sm:$0xff]
        %v1505 = vld [vmem:[%s318 + $0x2d0] sm:$0xff]
        %v1506 = vld [vmem:[%s318 + $0x2d8] sm:$0xff]
        %v1507 = vld [vmem:[%s318 + $0x2e0] sm:$0xff]
        %v1508 = vld [vmem:[%s318 + $0x2e8] sm:$0xff]
        %v1509 = vld [vmem:[%s318 + $0x2f0] sm:$0xff]
        %v1510 = vld [vmem:[%s318 + $0x2f8] sm:$0xff]
        %v1511 = vld [vmem:[%s318 + $0x300] sm:$0xff]
        %v1512 = vld [vmem:[%s318 + $0x308] sm:$0xff]
        %v1513 = vld [vmem:[%s318 + $0x310] sm:$0xff]
        %v1514 = vld [vmem:[%s318 + $0x318] sm:$0xff]
        %v1515 = vld [vmem:[%s318 + $0x320] sm:$0xff]
        %v1516 = vld [vmem:[%s318 + $0x328] sm:$0xff]
        %v1517 = vld [vmem:[%s318 + $0x330] sm:$0xff]
        %v1518 = vld [vmem:[%s318 + $0x338] sm:$0xff]
        %v1519 = vld [vmem:[%s318 + $0x340] sm:$0xff]
        %v1520 = vld [vmem:[%s318 + $0x348] sm:$0xff]
        %v1521 = vld [vmem:[%s318 + $0x350] sm:$0xff]
        %v1522 = vld [vmem:[%s318 + $0x358] sm:$0xff]
        %v1523 = vld [vmem:[%s318 + $0x360] sm:$0xff]
        %v1524 = vld [vmem:[%s318 + $0x368] sm:$0xff]
        %v1525 = vld [vmem:[%s318 + $0x370] sm:$0xff]
        %v1526 = vld [vmem:[%s318 + $0x378] sm:$0xff]
        %v1527 = vld [vmem:[%s318 + $0x380] sm:$0xff]
        %v1528 = vld [vmem:[%s318 + $0x388] sm:$0xff]
        %v1529 = vld [vmem:[%s318 + $0x390] sm:$0xff]
        %v1530 = vld [vmem:[%s318 + $0x398] sm:$0xff]
        %v1531 = vld [vmem:[%s318 + $0x3a0] sm:$0xff]
        %v1532 = vld [vmem:[%s318 + $0x3a8] sm:$0xff]
        %v1533 = vld [vmem:[%s318 + $0x3b0] sm:$0xff]
        %v1534 = vld [vmem:[%s318 + $0x3b8] sm:$0xff]
        %v1535 = vld [vmem:[%s318 + $0x3c0] sm:$0xff]
        %v1536 = vld [vmem:[%s318 + $0x3c8] sm:$0xff]
        %v1537 = vld [vmem:[%s318 + $0x3d0] sm:$0xff]
        %v1538 = vld [vmem:[%s318 + $0x3d8] sm:$0xff]
        %v1539 = vld [vmem:[%s318 + $0x3e0] sm:$0xff]
        %v1540 = vld [vmem:[%s318 + $0x3e8] sm:$0xff]
        %v1541 = vld [vmem:[%s318 + $0x3f0] sm:$0xff]
        %v1542 = vld [vmem:[%s318 + $0x3f8] sm:$0xff]
        %v1543 = vunpack.c.l.bf16 %v1479
        %v1544 = vunpack.c.h.bf16 %v1479
        %v1545 = vunpack.c.l.bf16 %v1480
        %v1546 = vunpack.c.h.bf16 %v1480
        %v1547 = vunpack.c.l.bf16 %v1481
        %v1548 = vunpack.c.h.bf16 %v1481
        %v1549 = vunpack.c.l.bf16 %v1482
        %v1550 = vunpack.c.h.bf16 %v1482
        %v1551 = vunpack.c.l.bf16 %v1483
        %v1552 = vunpack.c.h.bf16 %v1483
        %v1553 = vunpack.c.l.bf16 %v1484
        %v1554 = vunpack.c.h.bf16 %v1484
        %v1555 = vunpack.c.l.bf16 %v1485
        %v1556 = vunpack.c.h.bf16 %v1485
        %v1557 = vunpack.c.l.bf16 %v1486
        %v1558 = vunpack.c.h.bf16 %v1486
        %v1559 = vunpack.c.l.bf16 %v1487
        %v1560 = vunpack.c.h.bf16 %v1487
        %v1561 = vunpack.c.l.bf16 %v1488
        %v1562 = vunpack.c.h.bf16 %v1488
        %v1563 = vunpack.c.l.bf16 %v1489
        %v1564 = vunpack.c.h.bf16 %v1489
        %v1565 = vunpack.c.l.bf16 %v1490
        %v1566 = vunpack.c.h.bf16 %v1490
        %v1567 = vunpack.c.l.bf16 %v1491
        %v1568 = vunpack.c.h.bf16 %v1491
        %v1569 = vunpack.c.l.bf16 %v1492
        %v1570 = vunpack.c.h.bf16 %v1492
        %v1571 = vunpack.c.l.bf16 %v1493
        %v1572 = vunpack.c.h.bf16 %v1493
        %v1573 = vunpack.c.l.bf16 %v1494
        %v1574 = vunpack.c.h.bf16 %v1494
        %v1575 = vunpack.c.l.bf16 %v1495
        %v1576 = vunpack.c.h.bf16 %v1495
        %v1577 = vunpack.c.l.bf16 %v1496
        %v1578 = vunpack.c.h.bf16 %v1496
        %v1579 = vunpack.c.l.bf16 %v1497
        %v1580 = vunpack.c.h.bf16 %v1497
        %v1581 = vunpack.c.l.bf16 %v1498
        %v1582 = vunpack.c.h.bf16 %v1498
        %v1583 = vunpack.c.l.bf16 %v1499
        %v1584 = vunpack.c.h.bf16 %v1499
        %v1585 = vunpack.c.l.bf16 %v1500
        %v1586 = vunpack.c.h.bf16 %v1500
        %v1587 = vunpack.c.l.bf16 %v1501
        %v1588 = vunpack.c.h.bf16 %v1501
        %v1589 = vunpack.c.l.bf16 %v1502
        %v1590 = vunpack.c.h.bf16 %v1502
        %v1591 = vunpack.c.l.bf16 %v1503
        %v1592 = vunpack.c.h.bf16 %v1503
        %v1593 = vunpack.c.l.bf16 %v1504
        %v1594 = vunpack.c.h.bf16 %v1504
        %v1595 = vunpack.c.l.bf16 %v1505
        %v1596 = vunpack.c.h.bf16 %v1505
        %v1597 = vunpack.c.l.bf16 %v1506
        %v1598 = vunpack.c.h.bf16 %v1506
        %v1599 = vunpack.c.l.bf16 %v1507
        %v1600 = vunpack.c.h.bf16 %v1507
        %v1601 = vunpack.c.l.bf16 %v1508
        %v1602 = vunpack.c.h.bf16 %v1508
        %v1603 = vunpack.c.l.bf16 %v1509
        %v1604 = vunpack.c.h.bf16 %v1509
        %v1605 = vunpack.c.l.bf16 %v1510
        %v1606 = vunpack.c.h.bf16 %v1510
        %v1607 = vunpack.c.l.bf16 %v1511
        %v1608 = vunpack.c.h.bf16 %v1511
        %v1609 = vunpack.c.l.bf16 %v1512
        %v1610 = vunpack.c.h.bf16 %v1512
        %v1611 = vunpack.c.l.bf16 %v1513
        %v1612 = vunpack.c.h.bf16 %v1513
        %v1613 = vunpack.c.l.bf16 %v1514
        %v1614 = vunpack.c.h.bf16 %v1514
        %v1615 = vunpack.c.l.bf16 %v1515
        %v1616 = vunpack.c.h.bf16 %v1515
        %v1617 = vunpack.c.l.bf16 %v1516
        %v1618 = vunpack.c.h.bf16 %v1516
        %v1619 = vunpack.c.l.bf16 %v1517
        %v1620 = vunpack.c.h.bf16 %v1517
        %v1621 = vunpack.c.l.bf16 %v1518
        %v1622 = vunpack.c.h.bf16 %v1518
        %v1623 = vunpack.c.l.bf16 %v1519
        %v1624 = vunpack.c.h.bf16 %v1519
        %v1625 = vunpack.c.l.bf16 %v1520
        %v1626 = vunpack.c.h.bf16 %v1520
        %v1627 = vunpack.c.l.bf16 %v1521
        %v1628 = vunpack.c.h.bf16 %v1521
        %v1629 = vunpack.c.l.bf16 %v1522
        %v1630 = vunpack.c.h.bf16 %v1522
        %v1631 = vunpack.c.l.bf16 %v1523
        %v1632 = vunpack.c.h.bf16 %v1523
        %v1633 = vunpack.c.l.bf16 %v1524
        %v1634 = vunpack.c.h.bf16 %v1524
        %v1635 = vunpack.c.l.bf16 %v1525
        %v1636 = vunpack.c.h.bf16 %v1525
        %v1637 = vunpack.c.l.bf16 %v1526
        %v1638 = vunpack.c.h.bf16 %v1526
        %v1639 = vunpack.c.l.bf16 %v1527
        %v1640 = vunpack.c.h.bf16 %v1527
        %v1641 = vunpack.c.l.bf16 %v1528
        %v1642 = vunpack.c.h.bf16 %v1528
        %v1643 = vunpack.c.l.bf16 %v1529
        %v1644 = vunpack.c.h.bf16 %v1529
        %v1645 = vunpack.c.l.bf16 %v1530
        %v1646 = vunpack.c.h.bf16 %v1530
        %v1647 = vunpack.c.l.bf16 %v1531
        %v1648 = vunpack.c.h.bf16 %v1531
        %v1649 = vunpack.c.l.bf16 %v1532
        %v1650 = vunpack.c.h.bf16 %v1532
        %v1651 = vunpack.c.l.bf16 %v1533
        %v1652 = vunpack.c.h.bf16 %v1533
        %v1653 = vunpack.c.l.bf16 %v1534
        %v1654 = vunpack.c.h.bf16 %v1534
        %v1655 = vunpack.c.l.bf16 %v1535
        %v1656 = vunpack.c.h.bf16 %v1535
        %v1657 = vunpack.c.l.bf16 %v1536
        %v1658 = vunpack.c.h.bf16 %v1536
        %v1659 = vunpack.c.l.bf16 %v1537
        %v1660 = vunpack.c.h.bf16 %v1537
        %v1661 = vunpack.c.l.bf16 %v1538
        %v1662 = vunpack.c.h.bf16 %v1538
        %v1663 = vunpack.c.l.bf16 %v1539
        %v1664 = vunpack.c.h.bf16 %v1539
        %v1665 = vunpack.c.l.bf16 %v1540
        %v1666 = vunpack.c.h.bf16 %v1540
        %v1667 = vunpack.c.l.bf16 %v1541
        %v1668 = vunpack.c.h.bf16 %v1541
        %v1669 = vunpack.c.l.bf16 %v1542
        %v1670 = vunpack.c.h.bf16 %v1542
        %v1671 = vld [vmem:[#allocation3] sm:$0xff]
        %v1672 = vld [vmem:[#allocation3 + $0x8] sm:$0xff]
        %1673 = vmatprep.subr.mxu0 %v1664
        %1674 = vmatpush1.msra.mxu0 %v1663
        %1675 = vmatprep.subr.mxu0 %v1656
        %1676 = vmatpush1.msra.mxu0 %v1655
        %1677 = vmatprep.subr.mxu0 %v1648
        %1678 = vmatpush1.msra.mxu0 %v1647
        %1679 = vmatprep.subr.mxu0 %v1640
        %1680 = vmatpush1.msra.mxu0 %v1639
        %1681 = vmatprep.subr.mxu0 %v1632
        %1682 = vmatpush1.msra.mxu0 %v1631
        %1683 = vmatprep.subr.mxu0 %v1624
        %1684 = vmatpush1.msra.mxu0 %v1623
        %1685 = vmatprep.subr.mxu0 %v1616
        %1686 = vmatpush1.msra.mxu0 %v1615
        %1687 = vmatprep.subr.mxu0 %v1608
        %1688 = vmatpush1.msra.mxu0 %v1607
        %1689 = vmatprep.subr.mxu0 %v1600
        %1690 = vmatpush1.msra.mxu0 %v1599
        %1691 = vmatprep.subr.mxu0 %v1592
        %1692 = vmatpush1.msra.mxu0 %v1591
        %1693 = vmatprep.subr.mxu0 %v1584
        %1694 = vmatpush1.msra.mxu0 %v1583
        %1695 = vmatprep.subr.mxu0 %v1576
        %1696 = vmatpush1.msra.mxu0 %v1575
        %1697 = vmatprep.subr.mxu0 %v1568
        %1698 = vmatpush1.msra.mxu0 %v1567
        %1699 = vmatprep.subr.mxu0 %v1560
        %1700 = vmatpush1.msra.mxu0 %v1559
        %1701 = vmatprep.subr.mxu0 %v1552
        %1702 = vmatpush1.msra.mxu0 %v1551
        %1703 = vmatprep.subr.mxu0 %v1544
        %1704 = vmatpush1.msra.mxu0 %v1543
        %1705 = vmatprep.subr.mxu0 0.0
        %1706 = vmatpush2.msra.mxu0 0.0
        %1707 = vmatprep.subr.mxu0 0.0
        %1708 = vmatpush2.msra.mxu0 0.0
        %1709 = vmatprep.subr.mxu0 0.0
        %1710 = vmatpush2.msra.mxu0 0.0
        %1711 = vmatprep.subr.mxu0 0.0
        %1712 = vmatpush2.msra.mxu0 0.0
        %1713 = vmatprep.subr.mxu0 0.0
        %1714 = vmatpush2.msra.mxu0 0.0
        %1715 = vmatprep.subr.mxu0 0.0
        %1716 = vmatpush2.msra.mxu0 0.0
        %1717 = vmatprep.subr.mxu0 0.0
        %1718 = vmatpush2.msra.mxu0 0.0
        %1719 = vmatprep.subr.mxu0 0.0
        %1720 = vmatpush2.msra.mxu0 0.0
        %1721 = vmatprep.subr.mxu0 0.0
        %1722 = vmatpush2.msra.mxu0 0.0
        %1723 = vmatprep.subr.mxu0 0.0
        %1724 = vmatpush2.msra.mxu0 0.0
        %1725 = vmatprep.subr.mxu0 0.0
        %1726 = vmatpush2.msra.mxu0 0.0
        %1727 = vmatprep.subr.mxu0 0.0
        %1728 = vmatpush2.msra.mxu0 0.0
        %1729 = vmatprep.subr.mxu0 0.0
        %1730 = vmatpush2.msra.mxu0 0.0
        %1731 = vmatprep.subr.mxu0 0.0
        %1732 = vmatpush2.msra.mxu0 0.0
        %1733 = vmatprep.subr.mxu0 0.0
        %1734 = vmatpush2.msra.mxu0 0.0
        %1735 = vmatprep.subr.mxu0 0.0
        %1736 = vmatpush2.msra.mxu0 0.0
        %1737 = vmatprep.mubr.f32.mxu0 0.0
        %1738 = vmatmul.mubr.f32.gmra.mxu0 %v1478
        %v1739 = vpop.f32.mrf.mxu0
        %v1740 = vadd.f32 0.0, %v1739
        %v1741 = vpop.f32.mrf.mxu0
        %v1742 = vadd.f32 0.0, %v1741
        %1743 = vdwg.mxu0
        %1744 = vmatprep.subr.mxu0 %v1666
        %1745 = vmatpush1.msra.mxu0 %v1665
        %1746 = vmatprep.subr.mxu0 %v1658
        %1747 = vmatpush1.msra.mxu0 %v1657
        %1748 = vmatprep.subr.mxu0 %v1650
        %1749 = vmatpush1.msra.mxu0 %v1649
        %1750 = vmatprep.subr.mxu0 %v1642
        %1751 = vmatpush1.msra.mxu0 %v1641
        %1752 = vmatprep.subr.mxu0 %v1634
        %1753 = vmatpush1.msra.mxu0 %v1633
        %1754 = vmatprep.subr.mxu0 %v1626
        %1755 = vmatpush1.msra.mxu0 %v1625
        %1756 = vmatprep.subr.mxu0 %v1618
        %1757 = vmatpush1.msra.mxu0 %v1617
        %1758 = vmatprep.subr.mxu0 %v1610
        %1759 = vmatpush1.msra.mxu0 %v1609
        %1760 = vmatprep.subr.mxu0 %v1602
        %1761 = vmatpush1.msra.mxu0 %v1601
        %1762 = vmatprep.subr.mxu0 %v1594
        %1763 = vmatpush1.msra.mxu0 %v1593
        %1764 = vmatprep.subr.mxu0 %v1586
        %1765 = vmatpush1.msra.mxu0 %v1585
        %1766 = vmatprep.subr.mxu0 %v1578
        %1767 = vmatpush1.msra.mxu0 %v1577
        %1768 = vmatprep.subr.mxu0 %v1570
        %1769 = vmatpush1.msra.mxu0 %v1569
        %1770 = vmatprep.subr.mxu0 %v1562
        %1771 = vmatpush1.msra.mxu0 %v1561
        %1772 = vmatprep.subr.mxu0 %v1554
        %1773 = vmatpush1.msra.mxu0 %v1553
        %1774 = vmatprep.subr.mxu0 %v1546
        %1775 = vmatpush1.msra.mxu0 %v1545
        %1776 = vmatprep.subr.mxu0 0.0
        %1777 = vmatpush2.msra.mxu0 0.0
        %1778 = vmatprep.subr.mxu0 0.0
        %1779 = vmatpush2.msra.mxu0 0.0
        %1780 = vmatprep.subr.mxu0 0.0
        %1781 = vmatpush2.msra.mxu0 0.0
        %1782 = vmatprep.subr.mxu0 0.0
        %1783 = vmatpush2.msra.mxu0 0.0
        %1784 = vmatprep.subr.mxu0 0.0
        %1785 = vmatpush2.msra.mxu0 0.0
        %1786 = vmatprep.subr.mxu0 0.0
        %1787 = vmatpush2.msra.mxu0 0.0
        %1788 = vmatprep.subr.mxu0 0.0
        %1789 = vmatpush2.msra.mxu0 0.0
        %1790 = vmatprep.subr.mxu0 0.0
        %1791 = vmatpush2.msra.mxu0 0.0
        %1792 = vmatprep.subr.mxu0 0.0
        %1793 = vmatpush2.msra.mxu0 0.0
        %1794 = vmatprep.subr.mxu0 0.0
        %1795 = vmatpush2.msra.mxu0 0.0
        %1796 = vmatprep.subr.mxu0 0.0
        %1797 = vmatpush2.msra.mxu0 0.0
        %1798 = vmatprep.subr.mxu0 0.0
        %1799 = vmatpush2.msra.mxu0 0.0
        %1800 = vmatprep.subr.mxu0 0.0
        %1801 = vmatpush2.msra.mxu0 0.0
        %1802 = vmatprep.subr.mxu0 0.0
        %1803 = vmatpush2.msra.mxu0 0.0
        %1804 = vmatprep.subr.mxu0 0.0
        %1805 = vmatpush2.msra.mxu0 0.0
        %1806 = vmatprep.subr.mxu0 0.0
        %1807 = vmatpush2.msra.mxu0 0.0
        %1808 = vmatprep.mubr.f32.mxu0 0.0
        %1809 = vmatmul.mubr.f32.gmra.mxu0 %v1478
        %v1810 = vpop.f32.mrf.mxu0
        %v1811 = vadd.f32 0.0, %v1810
        %v1812 = vpop.f32.mrf.mxu0
        %v1813 = vadd.f32 0.0, %v1812
        %1814 = vdwg.mxu0
        %1815 = vmatprep.subr.mxu0 %v1668
        %1816 = vmatpush1.msra.mxu0 %v1667
        %1817 = vmatprep.subr.mxu0 %v1660
        %1818 = vmatpush1.msra.mxu0 %v1659
        %1819 = vmatprep.subr.mxu0 %v1652
        %1820 = vmatpush1.msra.mxu0 %v1651
        %1821 = vmatprep.subr.mxu0 %v1644
        %1822 = vmatpush1.msra.mxu0 %v1643
        %1823 = vmatprep.subr.mxu0 %v1636
        %1824 = vmatpush1.msra.mxu0 %v1635
        %1825 = vmatprep.subr.mxu0 %v1628
        %1826 = vmatpush1.msra.mxu0 %v1627
        %1827 = vmatprep.subr.mxu0 %v1620
        %1828 = vmatpush1.msra.mxu0 %v1619
        %1829 = vmatprep.subr.mxu0 %v1612
        %1830 = vmatpush1.msra.mxu0 %v1611
        %1831 = vmatprep.subr.mxu0 %v1604
        %1832 = vmatpush1.msra.mxu0 %v1603
        %1833 = vmatprep.subr.mxu0 %v1596
        %1834 = vmatpush1.msra.mxu0 %v1595
        %1835 = vmatprep.subr.mxu0 %v1588
        %1836 = vmatpush1.msra.mxu0 %v1587
        %1837 = vmatprep.subr.mxu0 %v1580
        %1838 = vmatpush1.msra.mxu0 %v1579
        %1839 = vmatprep.subr.mxu0 %v1572
        %1840 = vmatpush1.msra.mxu0 %v1571
        %1841 = vmatprep.subr.mxu0 %v1564
        %1842 = vmatpush1.msra.mxu0 %v1563
        %1843 = vmatprep.subr.mxu0 %v1556
        %1844 = vmatpush1.msra.mxu0 %v1555
        %1845 = vmatprep.subr.mxu0 %v1548
        %1846 = vmatpush1.msra.mxu0 %v1547
        %1847 = vmatprep.subr.mxu0 0.0
        %1848 = vmatpush2.msra.mxu0 0.0
        %1849 = vmatprep.subr.mxu0 0.0
        %1850 = vmatpush2.msra.mxu0 0.0
        %1851 = vmatprep.subr.mxu0 0.0
        %1852 = vmatpush2.msra.mxu0 0.0
        %1853 = vmatprep.subr.mxu0 0.0
        %1854 = vmatpush2.msra.mxu0 0.0
        %1855 = vmatprep.subr.mxu0 0.0
        %1856 = vmatpush2.msra.mxu0 0.0
        %1857 = vmatprep.subr.mxu0 0.0
        %1858 = vmatpush2.msra.mxu0 0.0
        %1859 = vmatprep.subr.mxu0 0.0
        %1860 = vmatpush2.msra.mxu0 0.0
        %1861 = vmatprep.subr.mxu0 0.0
        %1862 = vmatpush2.msra.mxu0 0.0
        %1863 = vmatprep.subr.mxu0 0.0
        %1864 = vmatpush2.msra.mxu0 0.0
        %1865 = vmatprep.subr.mxu0 0.0
        %1866 = vmatpush2.msra.mxu0 0.0
        %1867 = vmatprep.subr.mxu0 0.0
        %1868 = vmatpush2.msra.mxu0 0.0
        %1869 = vmatprep.subr.mxu0 0.0
        %1870 = vmatpush2.msra.mxu0 0.0
        %1871 = vmatprep.subr.mxu0 0.0
        %1872 = vmatpush2.msra.mxu0 0.0
        %1873 = vmatprep.subr.mxu0 0.0
        %1874 = vmatpush2.msra.mxu0 0.0
        %1875 = vmatprep.subr.mxu0 0.0
        %1876 = vmatpush2.msra.mxu0 0.0
        %1877 = vmatprep.subr.mxu0 0.0
        %1878 = vmatpush2.msra.mxu0 0.0
        %1879 = vmatprep.mubr.f32.mxu0 0.0
        %1880 = vmatmul.mubr.f32.gmra.mxu0 %v1478
        %v1881 = vpop.f32.mrf.mxu0
        %v1882 = vadd.f32 0.0, %v1881
        %v1883 = vpop.f32.mrf.mxu0
        %v1884 = vadd.f32 0.0, %v1883
        %1885 = vdwg.mxu0
        %1886 = vmatprep.subr.mxu0 %v1670
        %1887 = vmatpush1.msra.mxu0 %v1669
        %1888 = vmatprep.subr.mxu0 %v1662
        %1889 = vmatpush1.msra.mxu0 %v1661
        %1890 = vmatprep.subr.mxu0 %v1654
        %1891 = vmatpush1.msra.mxu0 %v1653
        %1892 = vmatprep.subr.mxu0 %v1646
        %1893 = vmatpush1.msra.mxu0 %v1645
        %1894 = vmatprep.subr.mxu0 %v1638
        %1895 = vmatpush1.msra.mxu0 %v1637
        %1896 = vmatprep.subr.mxu0 %v1630
        %1897 = vmatpush1.msra.mxu0 %v1629
        %1898 = vmatprep.subr.mxu0 %v1622
        %1899 = vmatpush1.msra.mxu0 %v1621
        %1900 = vmatprep.subr.mxu0 %v1614
        %1901 = vmatpush1.msra.mxu0 %v1613
        %1902 = vmatprep.subr.mxu0 %v1606
        %1903 = vmatpush1.msra.mxu0 %v1605
        %1904 = vmatprep.subr.mxu0 %v1598
        %1905 = vmatpush1.msra.mxu0 %v1597
        %1906 = vmatprep.subr.mxu0 %v1590
        %1907 = vmatpush1.msra.mxu0 %v1589
        %1908 = vmatprep.subr.mxu0 %v1582
        %1909 = vmatpush1.msra.mxu0 %v1581
        %1910 = vmatprep.subr.mxu0 %v1574
        %1911 = vmatpush1.msra.mxu0 %v1573
        %1912 = vmatprep.subr.mxu0 %v1566
        %1913 = vmatpush1.msra.mxu0 %v1565
        %1914 = vmatprep.subr.mxu0 %v1558
        %1915 = vmatpush1.msra.mxu0 %v1557
        %1916 = vmatprep.subr.mxu0 %v1550
        %1917 = vmatpush1.msra.mxu0 %v1549
        %1918 = vmatprep.subr.mxu0 0.0
        %1919 = vmatpush2.msra.mxu0 0.0
        %1920 = vmatprep.subr.mxu0 0.0
        %1921 = vmatpush2.msra.mxu0 0.0
        %1922 = vmatprep.subr.mxu0 0.0
        %1923 = vmatpush2.msra.mxu0 0.0
        %1924 = vmatprep.subr.mxu0 0.0
        %1925 = vmatpush2.msra.mxu0 0.0
        %1926 = vmatprep.subr.mxu0 0.0
        %1927 = vmatpush2.msra.mxu0 0.0
        %1928 = vmatprep.subr.mxu0 0.0
        %1929 = vmatpush2.msra.mxu0 0.0
        %1930 = vmatprep.subr.mxu0 0.0
        %1931 = vmatpush2.msra.mxu0 0.0
        %1932 = vmatprep.subr.mxu0 0.0
        %1933 = vmatpush2.msra.mxu0 0.0
        %1934 = vmatprep.subr.mxu0 0.0
        %1935 = vmatpush2.msra.mxu0 0.0
        %1936 = vmatprep.subr.mxu0 0.0
        %1937 = vmatpush2.msra.mxu0 0.0
        %1938 = vmatprep.subr.mxu0 0.0
        %1939 = vmatpush2.msra.mxu0 0.0
        %1940 = vmatprep.subr.mxu0 0.0
        %1941 = vmatpush2.msra.mxu0 0.0
        %1942 = vmatprep.subr.mxu0 0.0
        %1943 = vmatpush2.msra.mxu0 0.0
        %1944 = vmatprep.subr.mxu0 0.0
        %1945 = vmatpush2.msra.mxu0 0.0
        %1946 = vmatprep.subr.mxu0 0.0
        %1947 = vmatpush2.msra.mxu0 0.0
        %1948 = vmatprep.subr.mxu0 0.0
        %1949 = vmatpush2.msra.mxu0 0.0
        %1950 = vmatprep.mubr.f32.mxu0 0.0
        %1951 = vmatmul.mubr.f32.gmra.mxu0 %v1478
        %v1952 = vpop.f32.mrf.mxu0
        %v1953 = vadd.f32 0.0, %v1952
        %v1954 = vpop.f32.mrf.mxu0
        %v1955 = vadd.f32 0.0, %v1954
        %1956 = vdwg.mxu0
        %v1965 = vcombine.low %v1740, %v1742
        %v1966 = vcombine.low %v1811, %v1813
        %v1968 = vunpack.c.l.s4 1983009808
        %v1969 = vunpack.c.0.s8 %v1968
        %v1970 = vlaneseq
        %v1971 = vshrl.u32 %v1970, 7
        %v1972 = vsub.s32 %v1969, %v1971
        %v1973 = vrot.slane %v1965, %v1972
        %v1975 = vunpack.c.l.s4 1983009808
        %v1976 = vunpack.c.0.s8 %v1975
        %v1977 = vlaneseq
        %v1978 = vshrl.u32 %v1977, 7
        %v1979 = vsub.s32 %v1976, %v1978
        %v1980 = vrot.slane %v1966, %v1979
        %v1981 = vcombine.low %v1973, %v1980
        %v1982 = vcombine.low %v1882, %v1884
        %v1983 = vcombine.low %v1953, %v1955
        %v1985 = vunpack.c.l.s4 1983009808
        %v1986 = vunpack.c.0.s8 %v1985
        %v1987 = vlaneseq
        %v1988 = vshrl.u32 %v1987, 7
        %v1989 = vsub.s32 %v1986, %v1988
        %v1990 = vrot.slane %v1982, %v1989
        %v1992 = vunpack.c.l.s4 1983009808
        %v1993 = vunpack.c.0.s8 %v1992
        %v1994 = vlaneseq
        %v1995 = vshrl.u32 %v1994, 7
        %v1996 = vsub.s32 %v1993, %v1995
        %v1997 = vrot.slane %v1983, %v1996
        %v1998 = vcombine.low %v1990, %v1997
        %v2001 = vadd.f32 %v1671, %v1981
        %v2002 = vadd.f32 %v1672, %v1998
        %2003 = vst [vmem:[#allocation3] sm:$0xff] %v2001
        %2004 = vst [vmem:[#allocation3 + $0x8] sm:$0xff] %v2002
        %s2005 = sadd.s32 %s1474, 2
        %s2006 = smul.u32 %s2005, 2
        %s2007 = scalar_lea.vmem [#allocation2], %s2006
        %v2008 = vld [vmem:[%s2007] sm:$0x3]
        %v2009 = vld [vmem:[%s318 + $0x400] sm:$0xff]
        %v2010 = vld [vmem:[%s318 + $0x408] sm:$0xff]
        %v2011 = vld [vmem:[%s318 + $0x410] sm:$0xff]
        %v2012 = vld [vmem:[%s318 + $0x418] sm:$0xff]
        %v2013 = vld [vmem:[%s318 + $0x420] sm:$0xff]
        %v2014 = vld [vmem:[%s318 + $0x428] sm:$0xff]
        %v2015 = vld [vmem:[%s318 + $0x430] sm:$0xff]
        %v2016 = vld [vmem:[%s318 + $0x438] sm:$0xff]
        %v2017 = vld [vmem:[%s318 + $0x440] sm:$0xff]
        %v2018 = vld [vmem:[%s318 + $0x448] sm:$0xff]
        %v2019 = vld [vmem:[%s318 + $0x450] sm:$0xff]
        %v2020 = vld [vmem:[%s318 + $0x458] sm:$0xff]
        %v2021 = vld [vmem:[%s318 + $0x460] sm:$0xff]
        %v2022 = vld [vmem:[%s318 + $0x468] sm:$0xff]
        %v2023 = vld [vmem:[%s318 + $0x470] sm:$0xff]
        %v2024 = vld [vmem:[%s318 + $0x478] sm:$0xff]
        %v2025 = vld [vmem:[%s318 + $0x480] sm:$0xff]
        %v2026 = vld [vmem:[%s318 + $0x488] sm:$0xff]
        %v2027 = vld [vmem:[%s318 + $0x490] sm:$0xff]
        %v2028 = vld [vmem:[%s318 + $0x498] sm:$0xff]
        %v2029 = vld [vmem:[%s318 + $0x4a0] sm:$0xff]
        %v2030 = vld [vmem:[%s318 + $0x4a8] sm:$0xff]
        %v2031 = vld [vmem:[%s318 + $0x4b0] sm:$0xff]
        %v2032 = vld [vmem:[%s318 + $0x4b8] sm:$0xff]
        %v2033 = vld [vmem:[%s318 + $0x4c0] sm:$0xff]
        %v2034 = vld [vmem:[%s318 + $0x4c8] sm:$0xff]
        %v2035 = vld [vmem:[%s318 + $0x4d0] sm:$0xff]
        %v2036 = vld [vmem:[%s318 + $0x4d8] sm:$0xff]
        %v2037 = vld [vmem:[%s318 + $0x4e0] sm:$0xff]
        %v2038 = vld [vmem:[%s318 + $0x4e8] sm:$0xff]
        %v2039 = vld [vmem:[%s318 + $0x4f0] sm:$0xff]
        %v2040 = vld [vmem:[%s318 + $0x4f8] sm:$0xff]
        %v2041 = vld [vmem:[%s318 + $0x500] sm:$0xff]
        %v2042 = vld [vmem:[%s318 + $0x508] sm:$0xff]
        %v2043 = vld [vmem:[%s318 + $0x510] sm:$0xff]
        %v2044 = vld [vmem:[%s318 + $0x518] sm:$0xff]
        %v2045 = vld [vmem:[%s318 + $0x520] sm:$0xff]
        %v2046 = vld [vmem:[%s318 + $0x528] sm:$0xff]
        %v2047 = vld [vmem:[%s318 + $0x530] sm:$0xff]
        %v2048 = vld [vmem:[%s318 + $0x538] sm:$0xff]
        %v2049 = vld [vmem:[%s318 + $0x540] sm:$0xff]
        %v2050 = vld [vmem:[%s318 + $0x548] sm:$0xff]
        %v2051 = vld [vmem:[%s318 + $0x550] sm:$0xff]
        %v2052 = vld [vmem:[%s318 + $0x558] sm:$0xff]
        %v2053 = vld [vmem:[%s318 + $0x560] sm:$0xff]
        %v2054 = vld [vmem:[%s318 + $0x568] sm:$0xff]
        %v2055 = vld [vmem:[%s318 + $0x570] sm:$0xff]
        %v2056 = vld [vmem:[%s318 + $0x578] sm:$0xff]
        %v2057 = vld [vmem:[%s318 + $0x580] sm:$0xff]
        %v2058 = vld [vmem:[%s318 + $0x588] sm:$0xff]
        %v2059 = vld [vmem:[%s318 + $0x590] sm:$0xff]
        %v2060 = vld [vmem:[%s318 + $0x598] sm:$0xff]
        %v2061 = vld [vmem:[%s318 + $0x5a0] sm:$0xff]
        %v2062 = vld [vmem:[%s318 + $0x5a8] sm:$0xff]
        %v2063 = vld [vmem:[%s318 + $0x5b0] sm:$0xff]
        %v2064 = vld [vmem:[%s318 + $0x5b8] sm:$0xff]
        %v2065 = vld [vmem:[%s318 + $0x5c0] sm:$0xff]
        %v2066 = vld [vmem:[%s318 + $0x5c8] sm:$0xff]
        %v2067 = vld [vmem:[%s318 + $0x5d0] sm:$0xff]
        %v2068 = vld [vmem:[%s318 + $0x5d8] sm:$0xff]
        %v2069 = vld [vmem:[%s318 + $0x5e0] sm:$0xff]
        %v2070 = vld [vmem:[%s318 + $0x5e8] sm:$0xff]
        %v2071 = vld [vmem:[%s318 + $0x5f0] sm:$0xff]
        %v2072 = vld [vmem:[%s318 + $0x5f8] sm:$0xff]
        %v2073 = vunpack.c.l.bf16 %v2009
        %v2074 = vunpack.c.h.bf16 %v2009
        %v2075 = vunpack.c.l.bf16 %v2010
        %v2076 = vunpack.c.h.bf16 %v2010
        %v2077 = vunpack.c.l.bf16 %v2011
        %v2078 = vunpack.c.h.bf16 %v2011
        %v2079 = vunpack.c.l.bf16 %v2012
        %v2080 = vunpack.c.h.bf16 %v2012
        %v2081 = vunpack.c.l.bf16 %v2013
        %v2082 = vunpack.c.h.bf16 %v2013
        %v2083 = vunpack.c.l.bf16 %v2014
        %v2084 = vunpack.c.h.bf16 %v2014
        %v2085 = vunpack.c.l.bf16 %v2015
        %v2086 = vunpack.c.h.bf16 %v2015
        %v2087 = vunpack.c.l.bf16 %v2016
        %v2088 = vunpack.c.h.bf16 %v2016
        %v2089 = vunpack.c.l.bf16 %v2017
        %v2090 = vunpack.c.h.bf16 %v2017
        %v2091 = vunpack.c.l.bf16 %v2018
        %v2092 = vunpack.c.h.bf16 %v2018
        %v2093 = vunpack.c.l.bf16 %v2019
        %v2094 = vunpack.c.h.bf16 %v2019
        %v2095 = vunpack.c.l.bf16 %v2020
        %v2096 = vunpack.c.h.bf16 %v2020
        %v2097 = vunpack.c.l.bf16 %v2021
        %v2098 = vunpack.c.h.bf16 %v2021
        %v2099 = vunpack.c.l.bf16 %v2022
        %v2100 = vunpack.c.h.bf16 %v2022
        %v2101 = vunpack.c.l.bf16 %v2023
        %v2102 = vunpack.c.h.bf16 %v2023
        %v2103 = vunpack.c.l.bf16 %v2024
        %v2104 = vunpack.c.h.bf16 %v2024
        %v2105 = vunpack.c.l.bf16 %v2025
        %v2106 = vunpack.c.h.bf16 %v2025
        %v2107 = vunpack.c.l.bf16 %v2026
        %v2108 = vunpack.c.h.bf16 %v2026
        %v2109 = vunpack.c.l.bf16 %v2027
        %v2110 = vunpack.c.h.bf16 %v2027
        %v2111 = vunpack.c.l.bf16 %v2028
        %v2112 = vunpack.c.h.bf16 %v2028
        %v2113 = vunpack.c.l.bf16 %v2029
        %v2114 = vunpack.c.h.bf16 %v2029
        %v2115 = vunpack.c.l.bf16 %v2030
        %v2116 = vunpack.c.h.bf16 %v2030
        %v2117 = vunpack.c.l.bf16 %v2031
        %v2118 = vunpack.c.h.bf16 %v2031
        %v2119 = vunpack.c.l.bf16 %v2032
        %v2120 = vunpack.c.h.bf16 %v2032
        %v2121 = vunpack.c.l.bf16 %v2033
        %v2122 = vunpack.c.h.bf16 %v2033
        %v2123 = vunpack.c.l.bf16 %v2034
        %v2124 = vunpack.c.h.bf16 %v2034
        %v2125 = vunpack.c.l.bf16 %v2035
        %v2126 = vunpack.c.h.bf16 %v2035
        %v2127 = vunpack.c.l.bf16 %v2036
        %v2128 = vunpack.c.h.bf16 %v2036
        %v2129 = vunpack.c.l.bf16 %v2037
        %v2130 = vunpack.c.h.bf16 %v2037
        %v2131 = vunpack.c.l.bf16 %v2038
        %v2132 = vunpack.c.h.bf16 %v2038
        %v2133 = vunpack.c.l.bf16 %v2039
        %v2134 = vunpack.c.h.bf16 %v2039
        %v2135 = vunpack.c.l.bf16 %v2040
        %v2136 = vunpack.c.h.bf16 %v2040
        %v2137 = vunpack.c.l.bf16 %v2041
        %v2138 = vunpack.c.h.bf16 %v2041
        %v2139 = vunpack.c.l.bf16 %v2042
        %v2140 = vunpack.c.h.bf16 %v2042
        %v2141 = vunpack.c.l.bf16 %v2043
        %v2142 = vunpack.c.h.bf16 %v2043
        %v2143 = vunpack.c.l.bf16 %v2044
        %v2144 = vunpack.c.h.bf16 %v2044
        %v2145 = vunpack.c.l.bf16 %v2045
        %v2146 = vunpack.c.h.bf16 %v2045
        %v2147 = vunpack.c.l.bf16 %v2046
        %v2148 = vunpack.c.h.bf16 %v2046
        %v2149 = vunpack.c.l.bf16 %v2047
        %v2150 = vunpack.c.h.bf16 %v2047
        %v2151 = vunpack.c.l.bf16 %v2048
        %v2152 = vunpack.c.h.bf16 %v2048
        %v2153 = vunpack.c.l.bf16 %v2049
        %v2154 = vunpack.c.h.bf16 %v2049
        %v2155 = vunpack.c.l.bf16 %v2050
        %v2156 = vunpack.c.h.bf16 %v2050
        %v2157 = vunpack.c.l.bf16 %v2051
        %v2158 = vunpack.c.h.bf16 %v2051
        %v2159 = vunpack.c.l.bf16 %v2052
        %v2160 = vunpack.c.h.bf16 %v2052
        %v2161 = vunpack.c.l.bf16 %v2053
        %v2162 = vunpack.c.h.bf16 %v2053
        %v2163 = vunpack.c.l.bf16 %v2054
        %v2164 = vunpack.c.h.bf16 %v2054
        %v2165 = vunpack.c.l.bf16 %v2055
        %v2166 = vunpack.c.h.bf16 %v2055
        %v2167 = vunpack.c.l.bf16 %v2056
        %v2168 = vunpack.c.h.bf16 %v2056
        %v2169 = vunpack.c.l.bf16 %v2057
        %v2170 = vunpack.c.h.bf16 %v2057
        %v2171 = vunpack.c.l.bf16 %v2058
        %v2172 = vunpack.c.h.bf16 %v2058
        %v2173 = vunpack.c.l.bf16 %v2059
        %v2174 = vunpack.c.h.bf16 %v2059
        %v2175 = vunpack.c.l.bf16 %v2060
        %v2176 = vunpack.c.h.bf16 %v2060
        %v2177 = vunpack.c.l.bf16 %v2061
        %v2178 = vunpack.c.h.bf16 %v2061
        %v2179 = vunpack.c.l.bf16 %v2062
        %v2180 = vunpack.c.h.bf16 %v2062
        %v2181 = vunpack.c.l.bf16 %v2063
        %v2182 = vunpack.c.h.bf16 %v2063
        %v2183 = vunpack.c.l.bf16 %v2064
        %v2184 = vunpack.c.h.bf16 %v2064
        %v2185 = vunpack.c.l.bf16 %v2065
        %v2186 = vunpack.c.h.bf16 %v2065
        %v2187 = vunpack.c.l.bf16 %v2066
        %v2188 = vunpack.c.h.bf16 %v2066
        %v2189 = vunpack.c.l.bf16 %v2067
        %v2190 = vunpack.c.h.bf16 %v2067
        %v2191 = vunpack.c.l.bf16 %v2068
        %v2192 = vunpack.c.h.bf16 %v2068
        %v2193 = vunpack.c.l.bf16 %v2069
        %v2194 = vunpack.c.h.bf16 %v2069
        %v2195 = vunpack.c.l.bf16 %v2070
        %v2196 = vunpack.c.h.bf16 %v2070
        %v2197 = vunpack.c.l.bf16 %v2071
        %v2198 = vunpack.c.h.bf16 %v2071
        %v2199 = vunpack.c.l.bf16 %v2072
        %v2200 = vunpack.c.h.bf16 %v2072
        %v2201 = vld [vmem:[#allocation3] sm:$0xff]
        %v2202 = vld [vmem:[#allocation3 + $0x8] sm:$0xff]
        %2203 = vmatprep.subr.mxu0 %v2194
        %2204 = vmatpush1.msra.mxu0 %v2193
        %2205 = vmatprep.subr.mxu0 %v2186
        %2206 = vmatpush1.msra.mxu0 %v2185
        %2207 = vmatprep.subr.mxu0 %v2178
        %2208 = vmatpush1.msra.mxu0 %v2177
        %2209 = vmatprep.subr.mxu0 %v2170
        %2210 = vmatpush1.msra.mxu0 %v2169
        %2211 = vmatprep.subr.mxu0 %v2162
        %2212 = vmatpush1.msra.mxu0 %v2161
        %2213 = vmatprep.subr.mxu0 %v2154
        %2214 = vmatpush1.msra.mxu0 %v2153
        %2215 = vmatprep.subr.mxu0 %v2146
        %2216 = vmatpush1.msra.mxu0 %v2145
        %2217 = vmatprep.subr.mxu0 %v2138
        %2218 = vmatpush1.msra.mxu0 %v2137
        %2219 = vmatprep.subr.mxu0 %v2130
        %2220 = vmatpush1.msra.mxu0 %v2129
        %2221 = vmatprep.subr.mxu0 %v2122
        %2222 = vmatpush1.msra.mxu0 %v2121
        %2223 = vmatprep.subr.mxu0 %v2114
        %2224 = vmatpush1.msra.mxu0 %v2113
        %2225 = vmatprep.subr.mxu0 %v2106
        %2226 = vmatpush1.msra.mxu0 %v2105
        %2227 = vmatprep.subr.mxu0 %v2098
        %2228 = vmatpush1.msra.mxu0 %v2097
        %2229 = vmatprep.subr.mxu0 %v2090
        %2230 = vmatpush1.msra.mxu0 %v2089
        %2231 = vmatprep.subr.mxu0 %v2082
        %2232 = vmatpush1.msra.mxu0 %v2081
        %2233 = vmatprep.subr.mxu0 %v2074
        %2234 = vmatpush1.msra.mxu0 %v2073
        %2235 = vmatprep.subr.mxu0 0.0
        %2236 = vmatpush2.msra.mxu0 0.0
        %2237 = vmatprep.subr.mxu0 0.0
        %2238 = vmatpush2.msra.mxu0 0.0
        %2239 = vmatprep.subr.mxu0 0.0
        %2240 = vmatpush2.msra.mxu0 0.0
        %2241 = vmatprep.subr.mxu0 0.0
        %2242 = vmatpush2.msra.mxu0 0.0
        %2243 = vmatprep.subr.mxu0 0.0
        %2244 = vmatpush2.msra.mxu0 0.0
        %2245 = vmatprep.subr.mxu0 0.0
        %2246 = vmatpush2.msra.mxu0 0.0
        %2247 = vmatprep.subr.mxu0 0.0
        %2248 = vmatpush2.msra.mxu0 0.0
        %2249 = vmatprep.subr.mxu0 0.0
        %2250 = vmatpush2.msra.mxu0 0.0
        %2251 = vmatprep.subr.mxu0 0.0
        %2252 = vmatpush2.msra.mxu0 0.0
        %2253 = vmatprep.subr.mxu0 0.0
        %2254 = vmatpush2.msra.mxu0 0.0
        %2255 = vmatprep.subr.mxu0 0.0
        %2256 = vmatpush2.msra.mxu0 0.0
        %2257 = vmatprep.subr.mxu0 0.0
        %2258 = vmatpush2.msra.mxu0 0.0
        %2259 = vmatprep.subr.mxu0 0.0
        %2260 = vmatpush2.msra.mxu0 0.0
        %2261 = vmatprep.subr.mxu0 0.0
        %2262 = vmatpush2.msra.mxu0 0.0
        %2263 = vmatprep.subr.mxu0 0.0
        %2264 = vmatpush2.msra.mxu0 0.0
        %2265 = vmatprep.subr.mxu0 0.0
        %2266 = vmatpush2.msra.mxu0 0.0
        %2267 = vmatprep.mubr.f32.mxu0 0.0
        %2268 = vmatmul.mubr.f32.gmra.mxu0 %v2008
        %v2269 = vpop.f32.mrf.mxu0
        %v2270 = vadd.f32 0.0, %v2269
        %v2271 = vpop.f32.mrf.mxu0
        %v2272 = vadd.f32 0.0, %v2271
        %2273 = vdwg.mxu0
        %2274 = vmatprep.subr.mxu0 %v2196
        %2275 = vmatpush1.msra.mxu0 %v2195
        %2276 = vmatprep.subr.mxu0 %v2188
        %2277 = vmatpush1.msra.mxu0 %v2187
        %2278 = vmatprep.subr.mxu0 %v2180
        %2279 = vmatpush1.msra.mxu0 %v2179
        %2280 = vmatprep.subr.mxu0 %v2172
        %2281 = vmatpush1.msra.mxu0 %v2171
        %2282 = vmatprep.subr.mxu0 %v2164
        %2283 = vmatpush1.msra.mxu0 %v2163
        %2284 = vmatprep.subr.mxu0 %v2156
        %2285 = vmatpush1.msra.mxu0 %v2155
        %2286 = vmatprep.subr.mxu0 %v2148
        %2287 = vmatpush1.msra.mxu0 %v2147
        %2288 = vmatprep.subr.mxu0 %v2140
        %2289 = vmatpush1.msra.mxu0 %v2139
        %2290 = vmatprep.subr.mxu0 %v2132
        %2291 = vmatpush1.msra.mxu0 %v2131
        %2292 = vmatprep.subr.mxu0 %v2124
        %2293 = vmatpush1.msra.mxu0 %v2123
        %2294 = vmatprep.subr.mxu0 %v2116
        %2295 = vmatpush1.msra.mxu0 %v2115
        %2296 = vmatprep.subr.mxu0 %v2108
        %2297 = vmatpush1.msra.mxu0 %v2107
        %2298 = vmatprep.subr.mxu0 %v2100
        %2299 = vmatpush1.msra.mxu0 %v2099
        %2300 = vmatprep.subr.mxu0 %v2092
        %2301 = vmatpush1.msra.mxu0 %v2091
        %2302 = vmatprep.subr.mxu0 %v2084
        %2303 = vmatpush1.msra.mxu0 %v2083
        %2304 = vmatprep.subr.mxu0 %v2076
        %2305 = vmatpush1.msra.mxu0 %v2075
        %2306 = vmatprep.subr.mxu0 0.0
        %2307 = vmatpush2.msra.mxu0 0.0
        %2308 = vmatprep.subr.mxu0 0.0
        %2309 = vmatpush2.msra.mxu0 0.0
        %2310 = vmatprep.subr.mxu0 0.0
        %2311 = vmatpush2.msra.mxu0 0.0
        %2312 = vmatprep.subr.mxu0 0.0
        %2313 = vmatpush2.msra.mxu0 0.0
        %2314 = vmatprep.subr.mxu0 0.0
        %2315 = vmatpush2.msra.mxu0 0.0
        %2316 = vmatprep.subr.mxu0 0.0
        %2317 = vmatpush2.msra.mxu0 0.0
        %2318 = vmatprep.subr.mxu0 0.0
        %2319 = vmatpush2.msra.mxu0 0.0
        %2320 = vmatprep.subr.mxu0 0.0
        %2321 = vmatpush2.msra.mxu0 0.0
        %2322 = vmatprep.subr.mxu0 0.0
        %2323 = vmatpush2.msra.mxu0 0.0
        %2324 = vmatprep.subr.mxu0 0.0
        %2325 = vmatpush2.msra.mxu0 0.0
        %2326 = vmatprep.subr.mxu0 0.0
        %2327 = vmatpush2.msra.mxu0 0.0
        %2328 = vmatprep.subr.mxu0 0.0
        %2329 = vmatpush2.msra.mxu0 0.0
        %2330 = vmatprep.subr.mxu0 0.0
        %2331 = vmatpush2.msra.mxu0 0.0
        %2332 = vmatprep.subr.mxu0 0.0
        %2333 = vmatpush2.msra.mxu0 0.0
        %2334 = vmatprep.subr.mxu0 0.0
        %2335 = vmatpush2.msra.mxu0 0.0
        %2336 = vmatprep.subr.mxu0 0.0
        %2337 = vmatpush2.msra.mxu0 0.0
        %2338 = vmatprep.mubr.f32.mxu0 0.0
        %2339 = vmatmul.mubr.f32.gmra.mxu0 %v2008
        %v2340 = vpop.f32.mrf.mxu0
        %v2341 = vadd.f32 0.0, %v2340
        %v2342 = vpop.f32.mrf.mxu0
        %v2343 = vadd.f32 0.0, %v2342
        %2344 = vdwg.mxu0
        %2345 = vmatprep.subr.mxu0 %v2198
        %2346 = vmatpush1.msra.mxu0 %v2197
        %2347 = vmatprep.subr.mxu0 %v2190
        %2348 = vmatpush1.msra.mxu0 %v2189
        %2349 = vmatprep.subr.mxu0 %v2182
        %2350 = vmatpush1.msra.mxu0 %v2181
        %2351 = vmatprep.subr.mxu0 %v2174
        %2352 = vmatpush1.msra.mxu0 %v2173
        %2353 = vmatprep.subr.mxu0 %v2166
        %2354 = vmatpush1.msra.mxu0 %v2165
        %2355 = vmatprep.subr.mxu0 %v2158
        %2356 = vmatpush1.msra.mxu0 %v2157
        %2357 = vmatprep.subr.mxu0 %v2150
        %2358 = vmatpush1.msra.mxu0 %v2149
        %2359 = vmatprep.subr.mxu0 %v2142
        %2360 = vmatpush1.msra.mxu0 %v2141
        %2361 = vmatprep.subr.mxu0 %v2134
        %2362 = vmatpush1.msra.mxu0 %v2133
        %2363 = vmatprep.subr.mxu0 %v2126
        %2364 = vmatpush1.msra.mxu0 %v2125
        %2365 = vmatprep.subr.mxu0 %v2118
        %2366 = vmatpush1.msra.mxu0 %v2117
        %2367 = vmatprep.subr.mxu0 %v2110
        %2368 = vmatpush1.msra.mxu0 %v2109
        %2369 = vmatprep.subr.mxu0 %v2102
        %2370 = vmatpush1.msra.mxu0 %v2101
        %2371 = vmatprep.subr.mxu0 %v2094
        %2372 = vmatpush1.msra.mxu0 %v2093
        %2373 = vmatprep.subr.mxu0 %v2086
        %2374 = vmatpush1.msra.mxu0 %v2085
        %2375 = vmatprep.subr.mxu0 %v2078
        %2376 = vmatpush1.msra.mxu0 %v2077
        %2377 = vmatprep.subr.mxu0 0.0
        %2378 = vmatpush2.msra.mxu0 0.0
        %2379 = vmatprep.subr.mxu0 0.0
        %2380 = vmatpush2.msra.mxu0 0.0
        %2381 = vmatprep.subr.mxu0 0.0
        %2382 = vmatpush2.msra.mxu0 0.0
        %2383 = vmatprep.subr.mxu0 0.0
        %2384 = vmatpush2.msra.mxu0 0.0
        %2385 = vmatprep.subr.mxu0 0.0
        %2386 = vmatpush2.msra.mxu0 0.0
        %2387 = vmatprep.subr.mxu0 0.0
        %2388 = vmatpush2.msra.mxu0 0.0
        %2389 = vmatprep.subr.mxu0 0.0
        %2390 = vmatpush2.msra.mxu0 0.0
        %2391 = vmatprep.subr.mxu0 0.0
        %2392 = vmatpush2.msra.mxu0 0.0
        %2393 = vmatprep.subr.mxu0 0.0
        %2394 = vmatpush2.msra.mxu0 0.0
        %2395 = vmatprep.subr.mxu0 0.0
        %2396 = vmatpush2.msra.mxu0 0.0
        %2397 = vmatprep.subr.mxu0 0.0
        %2398 = vmatpush2.msra.mxu0 0.0
        %2399 = vmatprep.subr.mxu0 0.0
        %2400 = vmatpush2.msra.mxu0 0.0
        %2401 = vmatprep.subr.mxu0 0.0
        %2402 = vmatpush2.msra.mxu0 0.0
        %2403 = vmatprep.subr.mxu0 0.0
        %2404 = vmatpush2.msra.mxu0 0.0
        %2405 = vmatprep.subr.mxu0 0.0
        %2406 = vmatpush2.msra.mxu0 0.0
        %2407 = vmatprep.subr.mxu0 0.0
        %2408 = vmatpush2.msra.mxu0 0.0
        %2409 = vmatprep.mubr.f32.mxu0 0.0
        %2410 = vmatmul.mubr.f32.gmra.mxu0 %v2008
        %v2411 = vpop.f32.mrf.mxu0
        %v2412 = vadd.f32 0.0, %v2411
        %v2413 = vpop.f32.mrf.mxu0
        %v2414 = vadd.f32 0.0, %v2413
        %2415 = vdwg.mxu0
        %2416 = vmatprep.subr.mxu0 %v2200
        %2417 = vmatpush1.msra.mxu0 %v2199
        %2418 = vmatprep.subr.mxu0 %v2192
        %2419 = vmatpush1.msra.mxu0 %v2191
        %2420 = vmatprep.subr.mxu0 %v2184
        %2421 = vmatpush1.msra.mxu0 %v2183
        %2422 = vmatprep.subr.mxu0 %v2176
        %2423 = vmatpush1.msra.mxu0 %v2175
        %2424 = vmatprep.subr.mxu0 %v2168
        %2425 = vmatpush1.msra.mxu0 %v2167
        %2426 = vmatprep.subr.mxu0 %v2160
        %2427 = vmatpush1.msra.mxu0 %v2159
        %2428 = vmatprep.subr.mxu0 %v2152
        %2429 = vmatpush1.msra.mxu0 %v2151
        %2430 = vmatprep.subr.mxu0 %v2144
        %2431 = vmatpush1.msra.mxu0 %v2143
        %2432 = vmatprep.subr.mxu0 %v2136
        %2433 = vmatpush1.msra.mxu0 %v2135
        %2434 = vmatprep.subr.mxu0 %v2128
        %2435 = vmatpush1.msra.mxu0 %v2127
        %2436 = vmatprep.subr.mxu0 %v2120
        %2437 = vmatpush1.msra.mxu0 %v2119
        %2438 = vmatprep.subr.mxu0 %v2112
        %2439 = vmatpush1.msra.mxu0 %v2111
        %2440 = vmatprep.subr.mxu0 %v2104
        %2441 = vmatpush1.msra.mxu0 %v2103
        %2442 = vmatprep.subr.mxu0 %v2096
        %2443 = vmatpush1.msra.mxu0 %v2095
        %2444 = vmatprep.subr.mxu0 %v2088
        %2445 = vmatpush1.msra.mxu0 %v2087
        %2446 = vmatprep.subr.mxu0 %v2080
        %2447 = vmatpush1.msra.mxu0 %v2079
        %2448 = vmatprep.subr.mxu0 0.0
        %2449 = vmatpush2.msra.mxu0 0.0
        %2450 = vmatprep.subr.mxu0 0.0
        %2451 = vmatpush2.msra.mxu0 0.0
        %2452 = vmatprep.subr.mxu0 0.0
        %2453 = vmatpush2.msra.mxu0 0.0
        %2454 = vmatprep.subr.mxu0 0.0
        %2455 = vmatpush2.msra.mxu0 0.0
        %2456 = vmatprep.subr.mxu0 0.0
        %2457 = vmatpush2.msra.mxu0 0.0
        %2458 = vmatprep.subr.mxu0 0.0
        %2459 = vmatpush2.msra.mxu0 0.0
        %2460 = vmatprep.subr.mxu0 0.0
        %2461 = vmatpush2.msra.mxu0 0.0
        %2462 = vmatprep.subr.mxu0 0.0
        %2463 = vmatpush2.msra.mxu0 0.0
        %2464 = vmatprep.subr.mxu0 0.0
        %2465 = vmatpush2.msra.mxu0 0.0
        %2466 = vmatprep.subr.mxu0 0.0
        %2467 = vmatpush2.msra.mxu0 0.0
        %2468 = vmatprep.subr.mxu0 0.0
        %2469 = vmatpush2.msra.mxu0 0.0
        %2470 = vmatprep.subr.mxu0 0.0
        %2471 = vmatpush2.msra.mxu0 0.0
        %2472 = vmatprep.subr.mxu0 0.0
        %2473 = vmatpush2.msra.mxu0 0.0
        %2474 = vmatprep.subr.mxu0 0.0
        %2475 = vmatpush2.msra.mxu0 0.0
        %2476 = vmatprep.subr.mxu0 0.0
        %2477 = vmatpush2.msra.mxu0 0.0
        %2478 = vmatprep.subr.mxu0 0.0
        %2479 = vmatpush2.msra.mxu0 0.0
        %2480 = vmatprep.mubr.f32.mxu0 0.0
        %2481 = vmatmul.mubr.f32.gmra.mxu0 %v2008
        %v2482 = vpop.f32.mrf.mxu0
        %v2483 = vadd.f32 0.0, %v2482
        %v2484 = vpop.f32.mrf.mxu0
        %v2485 = vadd.f32 0.0, %v2484
        %2486 = vdwg.mxu0
        %v2495 = vcombine.low %v2270, %v2272
        %v2496 = vcombine.low %v2341, %v2343
        %v2498 = vunpack.c.l.s4 1983009808
        %v2499 = vunpack.c.0.s8 %v2498
        %v2500 = vlaneseq
        %v2501 = vshrl.u32 %v2500, 7
        %v2502 = vsub.s32 %v2499, %v2501
        %v2503 = vrot.slane %v2495, %v2502
        %v2505 = vunpack.c.l.s4 1983009808
        %v2506 = vunpack.c.0.s8 %v2505
        %v2507 = vlaneseq
        %v2508 = vshrl.u32 %v2507, 7
        %v2509 = vsub.s32 %v2506, %v2508
        %v2510 = vrot.slane %v2496, %v2509
        %v2511 = vcombine.low %v2503, %v2510
        %v2512 = vcombine.low %v2412, %v2414
        %v2513 = vcombine.low %v2483, %v2485
        %v2515 = vunpack.c.l.s4 1983009808
        %v2516 = vunpack.c.0.s8 %v2515
        %v2517 = vlaneseq
        %v2518 = vshrl.u32 %v2517, 7
        %v2519 = vsub.s32 %v2516, %v2518
        %v2520 = vrot.slane %v2512, %v2519
        %v2522 = vunpack.c.l.s4 1983009808
        %v2523 = vunpack.c.0.s8 %v2522
        %v2524 = vlaneseq
        %v2525 = vshrl.u32 %v2524, 7
        %v2526 = vsub.s32 %v2523, %v2525
        %v2527 = vrot.slane %v2513, %v2526
        %v2528 = vcombine.low %v2520, %v2527
        %v2531 = vadd.f32 %v2201, %v2511
        %v2532 = vadd.f32 %v2202, %v2528
        %2533 = vst [vmem:[#allocation3] sm:$0xff] %v2531
        %2534 = vst [vmem:[#allocation3 + $0x8] sm:$0xff] %v2532
        %s2535 = sadd.s32 %s1474, 3
        %s2536 = smul.u32 %s2535, 2
        %s2537 = scalar_lea.vmem [#allocation2], %s2536
        %v2538 = vld [vmem:[%s2537] sm:$0x3]
        %v2539 = vld [vmem:[%s318 + $0x600] sm:$0xff]
        %v2540 = vld [vmem:[%s318 + $0x608] sm:$0xff]
        %v2541 = vld [vmem:[%s318 + $0x610] sm:$0xff]
        %v2542 = vld [vmem:[%s318 + $0x618] sm:$0xff]
        %v2543 = vld [vmem:[%s318 + $0x620] sm:$0xff]
        %v2544 = vld [vmem:[%s318 + $0x628] sm:$0xff]
        %v2545 = vld [vmem:[%s318 + $0x630] sm:$0xff]
        %v2546 = vld [vmem:[%s318 + $0x638] sm:$0xff]
        %v2547 = vld [vmem:[%s318 + $0x640] sm:$0xff]
        %v2548 = vld [vmem:[%s318 + $0x648] sm:$0xff]
        %v2549 = vld [vmem:[%s318 + $0x650] sm:$0xff]
        %v2550 = vld [vmem:[%s318 + $0x658] sm:$0xff]
        %v2551 = vld [vmem:[%s318 + $0x660] sm:$0xff]
        %v2552 = vld [vmem:[%s318 + $0x668] sm:$0xff]
        %v2553 = vld [vmem:[%s318 + $0x670] sm:$0xff]
        %v2554 = vld [vmem:[%s318 + $0x678] sm:$0xff]
        %v2555 = vld [vmem:[%s318 + $0x680] sm:$0xff]
        %v2556 = vld [vmem:[%s318 + $0x688] sm:$0xff]
        %v2557 = vld [vmem:[%s318 + $0x690] sm:$0xff]
        %v2558 = vld [vmem:[%s318 + $0x698] sm:$0xff]
        %v2559 = vld [vmem:[%s318 + $0x6a0] sm:$0xff]
        %v2560 = vld [vmem:[%s318 + $0x6a8] sm:$0xff]
        %v2561 = vld [vmem:[%s318 + $0x6b0] sm:$0xff]
        %v2562 = vld [vmem:[%s318 + $0x6b8] sm:$0xff]
        %v2563 = vld [vmem:[%s318 + $0x6c0] sm:$0xff]
        %v2564 = vld [vmem:[%s318 + $0x6c8] sm:$0xff]
        %v2565 = vld [vmem:[%s318 + $0x6d0] sm:$0xff]
        %v2566 = vld [vmem:[%s318 + $0x6d8] sm:$0xff]
        %v2567 = vld [vmem:[%s318 + $0x6e0] sm:$0xff]
        %v2568 = vld [vmem:[%s318 + $0x6e8] sm:$0xff]
        %v2569 = vld [vmem:[%s318 + $0x6f0] sm:$0xff]
        %v2570 = vld [vmem:[%s318 + $0x6f8] sm:$0xff]
        %v2571 = vld [vmem:[%s318 + $0x700] sm:$0xff]
        %v2572 = vld [vmem:[%s318 + $0x708] sm:$0xff]
        %v2573 = vld [vmem:[%s318 + $0x710] sm:$0xff]
        %v2574 = vld [vmem:[%s318 + $0x718] sm:$0xff]
        %v2575 = vld [vmem:[%s318 + $0x720] sm:$0xff]
        %v2576 = vld [vmem:[%s318 + $0x728] sm:$0xff]
        %v2577 = vld [vmem:[%s318 + $0x730] sm:$0xff]
        %v2578 = vld [vmem:[%s318 + $0x738] sm:$0xff]
        %v2579 = vld [vmem:[%s318 + $0x740] sm:$0xff]
        %v2580 = vld [vmem:[%s318 + $0x748] sm:$0xff]
        %v2581 = vld [vmem:[%s318 + $0x750] sm:$0xff]
        %v2582 = vld [vmem:[%s318 + $0x758] sm:$0xff]
        %v2583 = vld [vmem:[%s318 + $0x760] sm:$0xff]
        %v2584 = vld [vmem:[%s318 + $0x768] sm:$0xff]
        %v2585 = vld [vmem:[%s318 + $0x770] sm:$0xff]
        %v2586 = vld [vmem:[%s318 + $0x778] sm:$0xff]
        %v2587 = vld [vmem:[%s318 + $0x780] sm:$0xff]
        %v2588 = vld [vmem:[%s318 + $0x788] sm:$0xff]
        %v2589 = vld [vmem:[%s318 + $0x790] sm:$0xff]
        %v2590 = vld [vmem:[%s318 + $0x798] sm:$0xff]
        %v2591 = vld [vmem:[%s318 + $0x7a0] sm:$0xff]
        %v2592 = vld [vmem:[%s318 + $0x7a8] sm:$0xff]
        %v2593 = vld [vmem:[%s318 + $0x7b0] sm:$0xff]
        %v2594 = vld [vmem:[%s318 + $0x7b8] sm:$0xff]
        %v2595 = vld [vmem:[%s318 + $0x7c0] sm:$0xff]
        %v2596 = vld [vmem:[%s318 + $0x7c8] sm:$0xff]
        %v2597 = vld [vmem:[%s318 + $0x7d0] sm:$0xff]
        %v2598 = vld [vmem:[%s318 + $0x7d8] sm:$0xff]
        %v2599 = vld [vmem:[%s318 + $0x7e0] sm:$0xff]
        %v2600 = vld [vmem:[%s318 + $0x7e8] sm:$0xff]
        %v2601 = vld [vmem:[%s318 + $0x7f0] sm:$0xff]
        %v2602 = vld [vmem:[%s318 + $0x7f8] sm:$0xff]
        %v2603 = vunpack.c.l.bf16 %v2539
        %v2604 = vunpack.c.h.bf16 %v2539
        %v2605 = vunpack.c.l.bf16 %v2540
        %v2606 = vunpack.c.h.bf16 %v2540
        %v2607 = vunpack.c.l.bf16 %v2541
        %v2608 = vunpack.c.h.bf16 %v2541
        %v2609 = vunpack.c.l.bf16 %v2542
        %v2610 = vunpack.c.h.bf16 %v2542
        %v2611 = vunpack.c.l.bf16 %v2543
        %v2612 = vunpack.c.h.bf16 %v2543
        %v2613 = vunpack.c.l.bf16 %v2544
        %v2614 = vunpack.c.h.bf16 %v2544
        %v2615 = vunpack.c.l.bf16 %v2545
        %v2616 = vunpack.c.h.bf16 %v2545
        %v2617 = vunpack.c.l.bf16 %v2546
        %v2618 = vunpack.c.h.bf16 %v2546
        %v2619 = vunpack.c.l.bf16 %v2547
        %v2620 = vunpack.c.h.bf16 %v2547
        %v2621 = vunpack.c.l.bf16 %v2548
        %v2622 = vunpack.c.h.bf16 %v2548
        %v2623 = vunpack.c.l.bf16 %v2549
        %v2624 = vunpack.c.h.bf16 %v2549
        %v2625 = vunpack.c.l.bf16 %v2550
        %v2626 = vunpack.c.h.bf16 %v2550
        %v2627 = vunpack.c.l.bf16 %v2551
        %v2628 = vunpack.c.h.bf16 %v2551
        %v2629 = vunpack.c.l.bf16 %v2552
        %v2630 = vunpack.c.h.bf16 %v2552
        %v2631 = vunpack.c.l.bf16 %v2553
        %v2632 = vunpack.c.h.bf16 %v2553
        %v2633 = vunpack.c.l.bf16 %v2554
        %v2634 = vunpack.c.h.bf16 %v2554
        %v2635 = vunpack.c.l.bf16 %v2555
        %v2636 = vunpack.c.h.bf16 %v2555
        %v2637 = vunpack.c.l.bf16 %v2556
        %v2638 = vunpack.c.h.bf16 %v2556
        %v2639 = vunpack.c.l.bf16 %v2557
        %v2640 = vunpack.c.h.bf16 %v2557
        %v2641 = vunpack.c.l.bf16 %v2558
        %v2642 = vunpack.c.h.bf16 %v2558
        %v2643 = vunpack.c.l.bf16 %v2559
        %v2644 = vunpack.c.h.bf16 %v2559
        %v2645 = vunpack.c.l.bf16 %v2560
        %v2646 = vunpack.c.h.bf16 %v2560
        %v2647 = vunpack.c.l.bf16 %v2561
        %v2648 = vunpack.c.h.bf16 %v2561
        %v2649 = vunpack.c.l.bf16 %v2562
        %v2650 = vunpack.c.h.bf16 %v2562
        %v2651 = vunpack.c.l.bf16 %v2563
        %v2652 = vunpack.c.h.bf16 %v2563
        %v2653 = vunpack.c.l.bf16 %v2564
        %v2654 = vunpack.c.h.bf16 %v2564
        %v2655 = vunpack.c.l.bf16 %v2565
        %v2656 = vunpack.c.h.bf16 %v2565
        %v2657 = vunpack.c.l.bf16 %v2566
        %v2658 = vunpack.c.h.bf16 %v2566
        %v2659 = vunpack.c.l.bf16 %v2567
        %v2660 = vunpack.c.h.bf16 %v2567
        %v2661 = vunpack.c.l.bf16 %v2568
        %v2662 = vunpack.c.h.bf16 %v2568
        %v2663 = vunpack.c.l.bf16 %v2569
        %v2664 = vunpack.c.h.bf16 %v2569
        %v2665 = vunpack.c.l.bf16 %v2570
        %v2666 = vunpack.c.h.bf16 %v2570
        %v2667 = vunpack.c.l.bf16 %v2571
        %v2668 = vunpack.c.h.bf16 %v2571
        %v2669 = vunpack.c.l.bf16 %v2572
        %v2670 = vunpack.c.h.bf16 %v2572
        %v2671 = vunpack.c.l.bf16 %v2573
        %v2672 = vunpack.c.h.bf16 %v2573
        %v2673 = vunpack.c.l.bf16 %v2574
        %v2674 = vunpack.c.h.bf16 %v2574
        %v2675 = vunpack.c.l.bf16 %v2575
        %v2676 = vunpack.c.h.bf16 %v2575
        %v2677 = vunpack.c.l.bf16 %v2576
        %v2678 = vunpack.c.h.bf16 %v2576
        %v2679 = vunpack.c.l.bf16 %v2577
        %v2680 = vunpack.c.h.bf16 %v2577
        %v2681 = vunpack.c.l.bf16 %v2578
        %v2682 = vunpack.c.h.bf16 %v2578
        %v2683 = vunpack.c.l.bf16 %v2579
        %v2684 = vunpack.c.h.bf16 %v2579
        %v2685 = vunpack.c.l.bf16 %v2580
        %v2686 = vunpack.c.h.bf16 %v2580
        %v2687 = vunpack.c.l.bf16 %v2581
        %v2688 = vunpack.c.h.bf16 %v2581
        %v2689 = vunpack.c.l.bf16 %v2582
        %v2690 = vunpack.c.h.bf16 %v2582
        %v2691 = vunpack.c.l.bf16 %v2583
        %v2692 = vunpack.c.h.bf16 %v2583
        %v2693 = vunpack.c.l.bf16 %v2584
        %v2694 = vunpack.c.h.bf16 %v2584
        %v2695 = vunpack.c.l.bf16 %v2585
        %v2696 = vunpack.c.h.bf16 %v2585
        %v2697 = vunpack.c.l.bf16 %v2586
        %v2698 = vunpack.c.h.bf16 %v2586
        %v2699 = vunpack.c.l.bf16 %v2587
        %v2700 = vunpack.c.h.bf16 %v2587
        %v2701 = vunpack.c.l.bf16 %v2588
        %v2702 = vunpack.c.h.bf16 %v2588
        %v2703 = vunpack.c.l.bf16 %v2589
        %v2704 = vunpack.c.h.bf16 %v2589
        %v2705 = vunpack.c.l.bf16 %v2590
        %v2706 = vunpack.c.h.bf16 %v2590
        %v2707 = vunpack.c.l.bf16 %v2591
        %v2708 = vunpack.c.h.bf16 %v2591
        %v2709 = vunpack.c.l.bf16 %v2592
        %v2710 = vunpack.c.h.bf16 %v2592
        %v2711 = vunpack.c.l.bf16 %v2593
        %v2712 = vunpack.c.h.bf16 %v2593
        %v2713 = vunpack.c.l.bf16 %v2594
        %v2714 = vunpack.c.h.bf16 %v2594
        %v2715 = vunpack.c.l.bf16 %v2595
        %v2716 = vunpack.c.h.bf16 %v2595
        %v2717 = vunpack.c.l.bf16 %v2596
        %v2718 = vunpack.c.h.bf16 %v2596
        %v2719 = vunpack.c.l.bf16 %v2597
        %v2720 = vunpack.c.h.bf16 %v2597
        %v2721 = vunpack.c.l.bf16 %v2598
        %v2722 = vunpack.c.h.bf16 %v2598
        %v2723 = vunpack.c.l.bf16 %v2599
        %v2724 = vunpack.c.h.bf16 %v2599
        %v2725 = vunpack.c.l.bf16 %v2600
        %v2726 = vunpack.c.h.bf16 %v2600
        %v2727 = vunpack.c.l.bf16 %v2601
        %v2728 = vunpack.c.h.bf16 %v2601
        %v2729 = vunpack.c.l.bf16 %v2602
        %v2730 = vunpack.c.h.bf16 %v2602
        %v2731 = vld [vmem:[#allocation3] sm:$0xff]
        %v2732 = vld [vmem:[#allocation3 + $0x8] sm:$0xff]
        %2733 = vmatprep.subr.mxu0 %v2724
        %2734 = vmatpush1.msra.mxu0 %v2723
        %2735 = vmatprep.subr.mxu0 %v2716
        %2736 = vmatpush1.msra.mxu0 %v2715
        %2737 = vmatprep.subr.mxu0 %v2708
        %2738 = vmatpush1.msra.mxu0 %v2707
        %2739 = vmatprep.subr.mxu0 %v2700
        %2740 = vmatpush1.msra.mxu0 %v2699
        %2741 = vmatprep.subr.mxu0 %v2692
        %2742 = vmatpush1.msra.mxu0 %v2691
        %2743 = vmatprep.subr.mxu0 %v2684
        %2744 = vmatpush1.msra.mxu0 %v2683
        %2745 = vmatprep.subr.mxu0 %v2676
        %2746 = vmatpush1.msra.mxu0 %v2675
        %2747 = vmatprep.subr.mxu0 %v2668
        %2748 = vmatpush1.msra.mxu0 %v2667
        %2749 = vmatprep.subr.mxu0 %v2660
        %2750 = vmatpush1.msra.mxu0 %v2659
        %2751 = vmatprep.subr.mxu0 %v2652
        %2752 = vmatpush1.msra.mxu0 %v2651
        %2753 = vmatprep.subr.mxu0 %v2644
        %2754 = vmatpush1.msra.mxu0 %v2643
        %2755 = vmatprep.subr.mxu0 %v2636
        %2756 = vmatpush1.msra.mxu0 %v2635
        %2757 = vmatprep.subr.mxu0 %v2628
        %2758 = vmatpush1.msra.mxu0 %v2627
        %2759 = vmatprep.subr.mxu0 %v2620
        %2760 = vmatpush1.msra.mxu0 %v2619
        %2761 = vmatprep.subr.mxu0 %v2612
        %2762 = vmatpush1.msra.mxu0 %v2611
        %2763 = vmatprep.subr.mxu0 %v2604
        %2764 = vmatpush1.msra.mxu0 %v2603
        %2765 = vmatprep.subr.mxu0 0.0
        %2766 = vmatpush2.msra.mxu0 0.0
        %2767 = vmatprep.subr.mxu0 0.0
        %2768 = vmatpush2.msra.mxu0 0.0
        %2769 = vmatprep.subr.mxu0 0.0
        %2770 = vmatpush2.msra.mxu0 0.0
        %2771 = vmatprep.subr.mxu0 0.0
        %2772 = vmatpush2.msra.mxu0 0.0
        %2773 = vmatprep.subr.mxu0 0.0
        %2774 = vmatpush2.msra.mxu0 0.0
        %2775 = vmatprep.subr.mxu0 0.0
        %2776 = vmatpush2.msra.mxu0 0.0
        %2777 = vmatprep.subr.mxu0 0.0
        %2778 = vmatpush2.msra.mxu0 0.0
        %2779 = vmatprep.subr.mxu0 0.0
        %2780 = vmatpush2.msra.mxu0 0.0
        %2781 = vmatprep.subr.mxu0 0.0
        %2782 = vmatpush2.msra.mxu0 0.0
        %2783 = vmatprep.subr.mxu0 0.0
        %2784 = vmatpush2.msra.mxu0 0.0
        %2785 = vmatprep.subr.mxu0 0.0
        %2786 = vmatpush2.msra.mxu0 0.0
        %2787 = vmatprep.subr.mxu0 0.0
        %2788 = vmatpush2.msra.mxu0 0.0
        %2789 = vmatprep.subr.mxu0 0.0
        %2790 = vmatpush2.msra.mxu0 0.0
        %2791 = vmatprep.subr.mxu0 0.0
        %2792 = vmatpush2.msra.mxu0 0.0
        %2793 = vmatprep.subr.mxu0 0.0
        %2794 = vmatpush2.msra.mxu0 0.0
        %2795 = vmatprep.subr.mxu0 0.0
        %2796 = vmatpush2.msra.mxu0 0.0
        %2797 = vmatprep.mubr.f32.mxu0 0.0
        %2798 = vmatmul.mubr.f32.gmra.mxu0 %v2538
        %v2799 = vpop.f32.mrf.mxu0
        %v2800 = vadd.f32 0.0, %v2799
        %v2801 = vpop.f32.mrf.mxu0
        %v2802 = vadd.f32 0.0, %v2801
        %2803 = vdwg.mxu0
        %2804 = vmatprep.subr.mxu0 %v2726
        %2805 = vmatpush1.msra.mxu0 %v2725
        %2806 = vmatprep.subr.mxu0 %v2718
        %2807 = vmatpush1.msra.mxu0 %v2717
        %2808 = vmatprep.subr.mxu0 %v2710
        %2809 = vmatpush1.msra.mxu0 %v2709
        %2810 = vmatprep.subr.mxu0 %v2702
        %2811 = vmatpush1.msra.mxu0 %v2701
        %2812 = vmatprep.subr.mxu0 %v2694
        %2813 = vmatpush1.msra.mxu0 %v2693
        %2814 = vmatprep.subr.mxu0 %v2686
        %2815 = vmatpush1.msra.mxu0 %v2685
        %2816 = vmatprep.subr.mxu0 %v2678
        %2817 = vmatpush1.msra.mxu0 %v2677
        %2818 = vmatprep.subr.mxu0 %v2670
        %2819 = vmatpush1.msra.mxu0 %v2669
        %2820 = vmatprep.subr.mxu0 %v2662
        %2821 = vmatpush1.msra.mxu0 %v2661
        %2822 = vmatprep.subr.mxu0 %v2654
        %2823 = vmatpush1.msra.mxu0 %v2653
        %2824 = vmatprep.subr.mxu0 %v2646
        %2825 = vmatpush1.msra.mxu0 %v2645
        %2826 = vmatprep.subr.mxu0 %v2638
        %2827 = vmatpush1.msra.mxu0 %v2637
        %2828 = vmatprep.subr.mxu0 %v2630
        %2829 = vmatpush1.msra.mxu0 %v2629
        %2830 = vmatprep.subr.mxu0 %v2622
        %2831 = vmatpush1.msra.mxu0 %v2621
        %2832 = vmatprep.subr.mxu0 %v2614
        %2833 = vmatpush1.msra.mxu0 %v2613
        %2834 = vmatprep.subr.mxu0 %v2606
        %2835 = vmatpush1.msra.mxu0 %v2605
        %2836 = vmatprep.subr.mxu0 0.0
        %2837 = vmatpush2.msra.mxu0 0.0
        %2838 = vmatprep.subr.mxu0 0.0
        %2839 = vmatpush2.msra.mxu0 0.0
        %2840 = vmatprep.subr.mxu0 0.0
        %2841 = vmatpush2.msra.mxu0 0.0
        %2842 = vmatprep.subr.mxu0 0.0
        %2843 = vmatpush2.msra.mxu0 0.0
        %2844 = vmatprep.subr.mxu0 0.0
        %2845 = vmatpush2.msra.mxu0 0.0
        %2846 = vmatprep.subr.mxu0 0.0
        %2847 = vmatpush2.msra.mxu0 0.0
        %2848 = vmatprep.subr.mxu0 0.0
        %2849 = vmatpush2.msra.mxu0 0.0
        %2850 = vmatprep.subr.mxu0 0.0
        %2851 = vmatpush2.msra.mxu0 0.0
        %2852 = vmatprep.subr.mxu0 0.0
        %2853 = vmatpush2.msra.mxu0 0.0
        %2854 = vmatprep.subr.mxu0 0.0
        %2855 = vmatpush2.msra.mxu0 0.0
        %2856 = vmatprep.subr.mxu0 0.0
        %2857 = vmatpush2.msra.mxu0 0.0
        %2858 = vmatprep.subr.mxu0 0.0
        %2859 = vmatpush2.msra.mxu0 0.0
        %2860 = vmatprep.subr.mxu0 0.0
        %2861 = vmatpush2.msra.mxu0 0.0
        %2862 = vmatprep.subr.mxu0 0.0
        %2863 = vmatpush2.msra.mxu0 0.0
        %2864 = vmatprep.subr.mxu0 0.0
        %2865 = vmatpush2.msra.mxu0 0.0
        %2866 = vmatprep.subr.mxu0 0.0
        %2867 = vmatpush2.msra.mxu0 0.0
        %2868 = vmatprep.mubr.f32.mxu0 0.0
        %2869 = vmatmul.mubr.f32.gmra.mxu0 %v2538
        %v2870 = vpop.f32.mrf.mxu0
        %v2871 = vadd.f32 0.0, %v2870
        %v2872 = vpop.f32.mrf.mxu0
        %v2873 = vadd.f32 0.0, %v2872
        %2874 = vdwg.mxu0
        %2875 = vmatprep.subr.mxu0 %v2728
        %2876 = vmatpush1.msra.mxu0 %v2727
        %2877 = vmatprep.subr.mxu0 %v2720
        %2878 = vmatpush1.msra.mxu0 %v2719
        %2879 = vmatprep.subr.mxu0 %v2712
        %2880 = vmatpush1.msra.mxu0 %v2711
        %2881 = vmatprep.subr.mxu0 %v2704
        %2882 = vmatpush1.msra.mxu0 %v2703
        %2883 = vmatprep.subr.mxu0 %v2696
        %2884 = vmatpush1.msra.mxu0 %v2695
        %2885 = vmatprep.subr.mxu0 %v2688
        %2886 = vmatpush1.msra.mxu0 %v2687
        %2887 = vmatprep.subr.mxu0 %v2680
        %2888 = vmatpush1.msra.mxu0 %v2679
        %2889 = vmatprep.subr.mxu0 %v2672
        %2890 = vmatpush1.msra.mxu0 %v2671
        %2891 = vmatprep.subr.mxu0 %v2664
        %2892 = vmatpush1.msra.mxu0 %v2663
        %2893 = vmatprep.subr.mxu0 %v2656
        %2894 = vmatpush1.msra.mxu0 %v2655
        %2895 = vmatprep.subr.mxu0 %v2648
        %2896 = vmatpush1.msra.mxu0 %v2647
        %2897 = vmatprep.subr.mxu0 %v2640
        %2898 = vmatpush1.msra.mxu0 %v2639
        %2899 = vmatprep.subr.mxu0 %v2632
        %2900 = vmatpush1.msra.mxu0 %v2631
        %2901 = vmatprep.subr.mxu0 %v2624
        %2902 = vmatpush1.msra.mxu0 %v2623
        %2903 = vmatprep.subr.mxu0 %v2616
        %2904 = vmatpush1.msra.mxu0 %v2615
        %2905 = vmatprep.subr.mxu0 %v2608
        %2906 = vmatpush1.msra.mxu0 %v2607
        %2907 = vmatprep.subr.mxu0 0.0
        %2908 = vmatpush2.msra.mxu0 0.0
        %2909 = vmatprep.subr.mxu0 0.0
        %2910 = vmatpush2.msra.mxu0 0.0
        %2911 = vmatprep.subr.mxu0 0.0
        %2912 = vmatpush2.msra.mxu0 0.0
        %2913 = vmatprep.subr.mxu0 0.0
        %2914 = vmatpush2.msra.mxu0 0.0
        %2915 = vmatprep.subr.mxu0 0.0
        %2916 = vmatpush2.msra.mxu0 0.0
        %2917 = vmatprep.subr.mxu0 0.0
        %2918 = vmatpush2.msra.mxu0 0.0
        %2919 = vmatprep.subr.mxu0 0.0
        %2920 = vmatpush2.msra.mxu0 0.0
        %2921 = vmatprep.subr.mxu0 0.0
        %2922 = vmatpush2.msra.mxu0 0.0
        %2923 = vmatprep.subr.mxu0 0.0
        %2924 = vmatpush2.msra.mxu0 0.0
        %2925 = vmatprep.subr.mxu0 0.0
        %2926 = vmatpush2.msra.mxu0 0.0
        %2927 = vmatprep.subr.mxu0 0.0
        %2928 = vmatpush2.msra.mxu0 0.0
        %2929 = vmatprep.subr.mxu0 0.0
        %2930 = vmatpush2.msra.mxu0 0.0
        %2931 = vmatprep.subr.mxu0 0.0
        %2932 = vmatpush2.msra.mxu0 0.0
        %2933 = vmatprep.subr.mxu0 0.0
        %2934 = vmatpush2.msra.mxu0 0.0
        %2935 = vmatprep.subr.mxu0 0.0
        %2936 = vmatpush2.msra.mxu0 0.0
        %2937 = vmatprep.subr.mxu0 0.0
        %2938 = vmatpush2.msra.mxu0 0.0
        %2939 = vmatprep.mubr.f32.mxu0 0.0
        %2940 = vmatmul.mubr.f32.gmra.mxu0 %v2538
        %v2941 = vpop.f32.mrf.mxu0
        %v2942 = vadd.f32 0.0, %v2941
        %v2943 = vpop.f32.mrf.mxu0
        %v2944 = vadd.f32 0.0, %v2943
        %2945 = vdwg.mxu0
        %2946 = vmatprep.subr.mxu0 %v2730
        %2947 = vmatpush1.msra.mxu0 %v2729
        %2948 = vmatprep.subr.mxu0 %v2722
        %2949 = vmatpush1.msra.mxu0 %v2721
        %2950 = vmatprep.subr.mxu0 %v2714
        %2951 = vmatpush1.msra.mxu0 %v2713
        %2952 = vmatprep.subr.mxu0 %v2706
        %2953 = vmatpush1.msra.mxu0 %v2705
        %2954 = vmatprep.subr.mxu0 %v2698
        %2955 = vmatpush1.msra.mxu0 %v2697
        %2956 = vmatprep.subr.mxu0 %v2690
        %2957 = vmatpush1.msra.mxu0 %v2689
        %2958 = vmatprep.subr.mxu0 %v2682
        %2959 = vmatpush1.msra.mxu0 %v2681
        %2960 = vmatprep.subr.mxu0 %v2674
        %2961 = vmatpush1.msra.mxu0 %v2673
        %2962 = vmatprep.subr.mxu0 %v2666
        %2963 = vmatpush1.msra.mxu0 %v2665
        %2964 = vmatprep.subr.mxu0 %v2658
        %2965 = vmatpush1.msra.mxu0 %v2657
        %2966 = vmatprep.subr.mxu0 %v2650
        %2967 = vmatpush1.msra.mxu0 %v2649
        %2968 = vmatprep.subr.mxu0 %v2642
        %2969 = vmatpush1.msra.mxu0 %v2641
        %2970 = vmatprep.subr.mxu0 %v2634
        %2971 = vmatpush1.msra.mxu0 %v2633
        %2972 = vmatprep.subr.mxu0 %v2626
        %2973 = vmatpush1.msra.mxu0 %v2625
        %2974 = vmatprep.subr.mxu0 %v2618
        %2975 = vmatpush1.msra.mxu0 %v2617
        %2976 = vmatprep.subr.mxu0 %v2610
        %2977 = vmatpush1.msra.mxu0 %v2609
        %2978 = vmatprep.subr.mxu0 0.0
        %2979 = vmatpush2.msra.mxu0 0.0
        %2980 = vmatprep.subr.mxu0 0.0
        %2981 = vmatpush2.msra.mxu0 0.0
        %2982 = vmatprep.subr.mxu0 0.0
        %2983 = vmatpush2.msra.mxu0 0.0
        %2984 = vmatprep.subr.mxu0 0.0
        %2985 = vmatpush2.msra.mxu0 0.0
        %2986 = vmatprep.subr.mxu0 0.0
        %2987 = vmatpush2.msra.mxu0 0.0
        %2988 = vmatprep.subr.mxu0 0.0
        %2989 = vmatpush2.msra.mxu0 0.0
        %2990 = vmatprep.subr.mxu0 0.0
        %2991 = vmatpush2.msra.mxu0 0.0
        %2992 = vmatprep.subr.mxu0 0.0
        %2993 = vmatpush2.msra.mxu0 0.0
        %2994 = vmatprep.subr.mxu0 0.0
        %2995 = vmatpush2.msra.mxu0 0.0
        %2996 = vmatprep.subr.mxu0 0.0
        %2997 = vmatpush2.msra.mxu0 0.0
        %2998 = vmatprep.subr.mxu0 0.0
        %2999 = vmatpush2.msra.mxu0 0.0
        %3000 = vmatprep.subr.mxu0 0.0
        %3001 = vmatpush2.msra.mxu0 0.0
        %3002 = vmatprep.subr.mxu0 0.0
        %3003 = vmatpush2.msra.mxu0 0.0
        %3004 = vmatprep.subr.mxu0 0.0
        %3005 = vmatpush2.msra.mxu0 0.0
        %3006 = vmatprep.subr.mxu0 0.0
        %3007 = vmatpush2.msra.mxu0 0.0
        %3008 = vmatprep.subr.mxu0 0.0
        %3009 = vmatpush2.msra.mxu0 0.0
        %3010 = vmatprep.mubr.f32.mxu0 0.0
        %3011 = vmatmul.mubr.f32.gmra.mxu0 %v2538
        %v3012 = vpop.f32.mrf.mxu0
        %v3013 = vadd.f32 0.0, %v3012
        %v3014 = vpop.f32.mrf.mxu0
        %v3015 = vadd.f32 0.0, %v3014
        %3016 = vdwg.mxu0
        %v3025 = vcombine.low %v2800, %v2802
        %v3026 = vcombine.low %v2871, %v2873
        %v3028 = vunpack.c.l.s4 1983009808
        %v3029 = vunpack.c.0.s8 %v3028
        %v3030 = vlaneseq
        %v3031 = vshrl.u32 %v3030, 7
        %v3032 = vsub.s32 %v3029, %v3031
        %v3033 = vrot.slane %v3025, %v3032
        %v3035 = vunpack.c.l.s4 1983009808
        %v3036 = vunpack.c.0.s8 %v3035
        %v3037 = vlaneseq
        %v3038 = vshrl.u32 %v3037, 7
        %v3039 = vsub.s32 %v3036, %v3038
        %v3040 = vrot.slane %v3026, %v3039
        %v3041 = vcombine.low %v3033, %v3040
        %v3042 = vcombine.low %v2942, %v2944
        %v3043 = vcombine.low %v3013, %v3015
        %v3045 = vunpack.c.l.s4 1983009808
        %v3046 = vunpack.c.0.s8 %v3045
        %v3047 = vlaneseq
        %v3048 = vshrl.u32 %v3047, 7
        %v3049 = vsub.s32 %v3046, %v3048
        %v3050 = vrot.slane %v3042, %v3049
        %v3052 = vunpack.c.l.s4 1983009808
        %v3053 = vunpack.c.0.s8 %v3052
        %v3054 = vlaneseq
        %v3055 = vshrl.u32 %v3054, 7
        %v3056 = vsub.s32 %v3053, %v3055
        %v3057 = vrot.slane %v3043, %v3056
        %v3058 = vcombine.low %v3050, %v3057
        %v3061 = vadd.f32 %v2731, %v3041
        %v3062 = vadd.f32 %v2732, %v3058
        %3063 = vst [vmem:[#allocation3] sm:$0xff] %v3061
        %3064 = vst [vmem:[#allocation3 + $0x8] sm:$0xff] %v3062
        %s3065 = sadd.s32 %s1474, 4
        %s3066 = smul.u32 %s3065, 2
        %s3067 = scalar_lea.vmem [#allocation2], %s3066
        %v3068 = vld [vmem:[%s3067] sm:$0x3]
        %v3069 = vld [vmem:[%s318 + $0x800] sm:$0xff]
        %v3070 = vld [vmem:[%s318 + $0x808] sm:$0xff]
        %v3071 = vld [vmem:[%s318 + $0x810] sm:$0xff]
        %v3072 = vld [vmem:[%s318 + $0x818] sm:$0xff]
        %v3073 = vld [vmem:[%s318 + $0x820] sm:$0xff]
        %v3074 = vld [vmem:[%s318 + $0x828] sm:$0xff]
        %v3075 = vld [vmem:[%s318 + $0x830] sm:$0xff]
        %v3076 = vld [vmem:[%s318 + $0x838] sm:$0xff]
        %v3077 = vld [vmem:[%s318 + $0x840] sm:$0xff]
        %v3078 = vld [vmem:[%s318 + $0x848] sm:$0xff]
        %v3079 = vld [vmem:[%s318 + $0x850] sm:$0xff]
        %v3080 = vld [vmem:[%s318 + $0x858] sm:$0xff]
        %v3081 = vld [vmem:[%s318 + $0x860] sm:$0xff]
        %v3082 = vld [vmem:[%s318 + $0x868] sm:$0xff]
        %v3083 = vld [vmem:[%s318 + $0x870] sm:$0xff]
        %v3084 = vld [vmem:[%s318 + $0x878] sm:$0xff]
        %v3085 = vld [vmem:[%s318 + $0x880] sm:$0xff]
        %v3086 = vld [vmem:[%s318 + $0x888] sm:$0xff]
        %v3087 = vld [vmem:[%s318 + $0x890] sm:$0xff]
        %v3088 = vld [vmem:[%s318 + $0x898] sm:$0xff]
        %v3089 = vld [vmem:[%s318 + $0x8a0] sm:$0xff]
        %v3090 = vld [vmem:[%s318 + $0x8a8] sm:$0xff]
        %v3091 = vld [vmem:[%s318 + $0x8b0] sm:$0xff]
        %v3092 = vld [vmem:[%s318 + $0x8b8] sm:$0xff]
        %v3093 = vld [vmem:[%s318 + $0x8c0] sm:$0xff]
        %v3094 = vld [vmem:[%s318 + $0x8c8] sm:$0xff]
        %v3095 = vld [vmem:[%s318 + $0x8d0] sm:$0xff]
        %v3096 = vld [vmem:[%s318 + $0x8d8] sm:$0xff]
        %v3097 = vld [vmem:[%s318 + $0x8e0] sm:$0xff]
        %v3098 = vld [vmem:[%s318 + $0x8e8] sm:$0xff]
        %v3099 = vld [vmem:[%s318 + $0x8f0] sm:$0xff]
        %v3100 = vld [vmem:[%s318 + $0x8f8] sm:$0xff]
        %v3101 = vld [vmem:[%s318 + $0x900] sm:$0xff]
        %v3102 = vld [vmem:[%s318 + $0x908] sm:$0xff]
        %v3103 = vld [vmem:[%s318 + $0x910] sm:$0xff]
        %v3104 = vld [vmem:[%s318 + $0x918] sm:$0xff]
        %v3105 = vld [vmem:[%s318 + $0x920] sm:$0xff]
        %v3106 = vld [vmem:[%s318 + $0x928] sm:$0xff]
        %v3107 = vld [vmem:[%s318 + $0x930] sm:$0xff]
        %v3108 = vld [vmem:[%s318 + $0x938] sm:$0xff]
        %v3109 = vld [vmem:[%s318 + $0x940] sm:$0xff]
        %v3110 = vld [vmem:[%s318 + $0x948] sm:$0xff]
        %v3111 = vld [vmem:[%s318 + $0x950] sm:$0xff]
        %v3112 = vld [vmem:[%s318 + $0x958] sm:$0xff]
        %v3113 = vld [vmem:[%s318 + $0x960] sm:$0xff]
        %v3114 = vld [vmem:[%s318 + $0x968] sm:$0xff]
        %v3115 = vld [vmem:[%s318 + $0x970] sm:$0xff]
        %v3116 = vld [vmem:[%s318 + $0x978] sm:$0xff]
        %v3117 = vld [vmem:[%s318 + $0x980] sm:$0xff]
        %v3118 = vld [vmem:[%s318 + $0x988] sm:$0xff]
        %v3119 = vld [vmem:[%s318 + $0x990] sm:$0xff]
        %v3120 = vld [vmem:[%s318 + $0x998] sm:$0xff]
        %v3121 = vld [vmem:[%s318 + $0x9a0] sm:$0xff]
        %v3122 = vld [vmem:[%s318 + $0x9a8] sm:$0xff]
        %v3123 = vld [vmem:[%s318 + $0x9b0] sm:$0xff]
        %v3124 = vld [vmem:[%s318 + $0x9b8] sm:$0xff]
        %v3125 = vld [vmem:[%s318 + $0x9c0] sm:$0xff]
        %v3126 = vld [vmem:[%s318 + $0x9c8] sm:$0xff]
        %v3127 = vld [vmem:[%s318 + $0x9d0] sm:$0xff]
        %v3128 = vld [vmem:[%s318 + $0x9d8] sm:$0xff]
        %v3129 = vld [vmem:[%s318 + $0x9e0] sm:$0xff]
        %v3130 = vld [vmem:[%s318 + $0x9e8] sm:$0xff]
        %v3131 = vld [vmem:[%s318 + $0x9f0] sm:$0xff]
        %v3132 = vld [vmem:[%s318 + $0x9f8] sm:$0xff]
        %v3133 = vunpack.c.l.bf16 %v3069
        %v3134 = vunpack.c.h.bf16 %v3069
        %v3135 = vunpack.c.l.bf16 %v3070
        %v3136 = vunpack.c.h.bf16 %v3070
        %v3137 = vunpack.c.l.bf16 %v3071
        %v3138 = vunpack.c.h.bf16 %v3071
        %v3139 = vunpack.c.l.bf16 %v3072
        %v3140 = vunpack.c.h.bf16 %v3072
        %v3141 = vunpack.c.l.bf16 %v3073
        %v3142 = vunpack.c.h.bf16 %v3073
        %v3143 = vunpack.c.l.bf16 %v3074
        %v3144 = vunpack.c.h.bf16 %v3074
        %v3145 = vunpack.c.l.bf16 %v3075
        %v3146 = vunpack.c.h.bf16 %v3075
        %v3147 = vunpack.c.l.bf16 %v3076
        %v3148 = vunpack.c.h.bf16 %v3076
        %v3149 = vunpack.c.l.bf16 %v3077
        %v3150 = vunpack.c.h.bf16 %v3077
        %v3151 = vunpack.c.l.bf16 %v3078
        %v3152 = vunpack.c.h.bf16 %v3078
        %v3153 = vunpack.c.l.bf16 %v3079
        %v3154 = vunpack.c.h.bf16 %v3079
        %v3155 = vunpack.c.l.bf16 %v3080
        %v3156 = vunpack.c.h.bf16 %v3080
        %v3157 = vunpack.c.l.bf16 %v3081
        %v3158 = vunpack.c.h.bf16 %v3081
        %v3159 = vunpack.c.l.bf16 %v3082
        %v3160 = vunpack.c.h.bf16 %v3082
        %v3161 = vunpack.c.l.bf16 %v3083
        %v3162 = vunpack.c.h.bf16 %v3083
        %v3163 = vunpack.c.l.bf16 %v3084
        %v3164 = vunpack.c.h.bf16 %v3084
        %v3165 = vunpack.c.l.bf16 %v3085
        %v3166 = vunpack.c.h.bf16 %v3085
        %v3167 = vunpack.c.l.bf16 %v3086
        %v3168 = vunpack.c.h.bf16 %v3086
        %v3169 = vunpack.c.l.bf16 %v3087
        %v3170 = vunpack.c.h.bf16 %v3087
        %v3171 = vunpack.c.l.bf16 %v3088
        %v3172 = vunpack.c.h.bf16 %v3088
        %v3173 = vunpack.c.l.bf16 %v3089
        %v3174 = vunpack.c.h.bf16 %v3089
        %v3175 = vunpack.c.l.bf16 %v3090
        %v3176 = vunpack.c.h.bf16 %v3090
        %v3177 = vunpack.c.l.bf16 %v3091
        %v3178 = vunpack.c.h.bf16 %v3091
        %v3179 = vunpack.c.l.bf16 %v3092
        %v3180 = vunpack.c.h.bf16 %v3092
        %v3181 = vunpack.c.l.bf16 %v3093
        %v3182 = vunpack.c.h.bf16 %v3093
        %v3183 = vunpack.c.l.bf16 %v3094
        %v3184 = vunpack.c.h.bf16 %v3094
        %v3185 = vunpack.c.l.bf16 %v3095
        %v3186 = vunpack.c.h.bf16 %v3095
        %v3187 = vunpack.c.l.bf16 %v3096
        %v3188 = vunpack.c.h.bf16 %v3096
        %v3189 = vunpack.c.l.bf16 %v3097
        %v3190 = vunpack.c.h.bf16 %v3097
        %v3191 = vunpack.c.l.bf16 %v3098
        %v3192 = vunpack.c.h.bf16 %v3098
        %v3193 = vunpack.c.l.bf16 %v3099
        %v3194 = vunpack.c.h.bf16 %v3099
        %v3195 = vunpack.c.l.bf16 %v3100
        %v3196 = vunpack.c.h.bf16 %v3100
        %v3197 = vunpack.c.l.bf16 %v3101
        %v3198 = vunpack.c.h.bf16 %v3101
        %v3199 = vunpack.c.l.bf16 %v3102
        %v3200 = vunpack.c.h.bf16 %v3102
        %v3201 = vunpack.c.l.bf16 %v3103
        %v3202 = vunpack.c.h.bf16 %v3103
        %v3203 = vunpack.c.l.bf16 %v3104
        %v3204 = vunpack.c.h.bf16 %v3104
        %v3205 = vunpack.c.l.bf16 %v3105
        %v3206 = vunpack.c.h.bf16 %v3105
        %v3207 = vunpack.c.l.bf16 %v3106
        %v3208 = vunpack.c.h.bf16 %v3106
        %v3209 = vunpack.c.l.bf16 %v3107
        %v3210 = vunpack.c.h.bf16 %v3107
        %v3211 = vunpack.c.l.bf16 %v3108
        %v3212 = vunpack.c.h.bf16 %v3108
        %v3213 = vunpack.c.l.bf16 %v3109
        %v3214 = vunpack.c.h.bf16 %v3109
        %v3215 = vunpack.c.l.bf16 %v3110
        %v3216 = vunpack.c.h.bf16 %v3110
        %v3217 = vunpack.c.l.bf16 %v3111
        %v3218 = vunpack.c.h.bf16 %v3111
        %v3219 = vunpack.c.l.bf16 %v3112
        %v3220 = vunpack.c.h.bf16 %v3112
        %v3221 = vunpack.c.l.bf16 %v3113
        %v3222 = vunpack.c.h.bf16 %v3113
        %v3223 = vunpack.c.l.bf16 %v3114
        %v3224 = vunpack.c.h.bf16 %v3114
        %v3225 = vunpack.c.l.bf16 %v3115
        %v3226 = vunpack.c.h.bf16 %v3115
        %v3227 = vunpack.c.l.bf16 %v3116
        %v3228 = vunpack.c.h.bf16 %v3116
        %v3229 = vunpack.c.l.bf16 %v3117
        %v3230 = vunpack.c.h.bf16 %v3117
        %v3231 = vunpack.c.l.bf16 %v3118
        %v3232 = vunpack.c.h.bf16 %v3118
        %v3233 = vunpack.c.l.bf16 %v3119
        %v3234 = vunpack.c.h.bf16 %v3119
        %v3235 = vunpack.c.l.bf16 %v3120
        %v3236 = vunpack.c.h.bf16 %v3120
        %v3237 = vunpack.c.l.bf16 %v3121
        %v3238 = vunpack.c.h.bf16 %v3121
        %v3239 = vunpack.c.l.bf16 %v3122
        %v3240 = vunpack.c.h.bf16 %v3122
        %v3241 = vunpack.c.l.bf16 %v3123
        %v3242 = vunpack.c.h.bf16 %v3123
        %v3243 = vunpack.c.l.bf16 %v3124
        %v3244 = vunpack.c.h.bf16 %v3124
        %v3245 = vunpack.c.l.bf16 %v3125
        %v3246 = vunpack.c.h.bf16 %v3125
        %v3247 = vunpack.c.l.bf16 %v3126
        %v3248 = vunpack.c.h.bf16 %v3126
        %v3249 = vunpack.c.l.bf16 %v3127
        %v3250 = vunpack.c.h.bf16 %v3127
        %v3251 = vunpack.c.l.bf16 %v3128
        %v3252 = vunpack.c.h.bf16 %v3128
        %v3253 = vunpack.c.l.bf16 %v3129
        %v3254 = vunpack.c.h.bf16 %v3129
        %v3255 = vunpack.c.l.bf16 %v3130
        %v3256 = vunpack.c.h.bf16 %v3130
        %v3257 = vunpack.c.l.bf16 %v3131
        %v3258 = vunpack.c.h.bf16 %v3131
        %v3259 = vunpack.c.l.bf16 %v3132
        %v3260 = vunpack.c.h.bf16 %v3132
        %v3261 = vld [vmem:[#allocation3] sm:$0xff]
        %v3262 = vld [vmem:[#allocation3 + $0x8] sm:$0xff]
        %3263 = vmatprep.subr.mxu0 %v3254
        %3264 = vmatpush1.msra.mxu0 %v3253
        %3265 = vmatprep.subr.mxu0 %v3246
        %3266 = vmatpush1.msra.mxu0 %v3245
        %3267 = vmatprep.subr.mxu0 %v3238
        %3268 = vmatpush1.msra.mxu0 %v3237
        %3269 = vmatprep.subr.mxu0 %v3230
        %3270 = vmatpush1.msra.mxu0 %v3229
        %3271 = vmatprep.subr.mxu0 %v3222
        %3272 = vmatpush1.msra.mxu0 %v3221
        %3273 = vmatprep.subr.mxu0 %v3214
        %3274 = vmatpush1.msra.mxu0 %v3213
        %3275 = vmatprep.subr.mxu0 %v3206
        %3276 = vmatpush1.msra.mxu0 %v3205
        %3277 = vmatprep.subr.mxu0 %v3198
        %3278 = vmatpush1.msra.mxu0 %v3197
        %3279 = vmatprep.subr.mxu0 %v3190
        %3280 = vmatpush1.msra.mxu0 %v3189
        %3281 = vmatprep.subr.mxu0 %v3182
        %3282 = vmatpush1.msra.mxu0 %v3181
        %3283 = vmatprep.subr.mxu0 %v3174
        %3284 = vmatpush1.msra.mxu0 %v3173
        %3285 = vmatprep.subr.mxu0 %v3166
        %3286 = vmatpush1.msra.mxu0 %v3165
        %3287 = vmatprep.subr.mxu0 %v3158
        %3288 = vmatpush1.msra.mxu0 %v3157
        %3289 = vmatprep.subr.mxu0 %v3150
        %3290 = vmatpush1.msra.mxu0 %v3149
        %3291 = vmatprep.subr.mxu0 %v3142
        %3292 = vmatpush1.msra.mxu0 %v3141
        %3293 = vmatprep.subr.mxu0 %v3134
        %3294 = vmatpush1.msra.mxu0 %v3133
        %3295 = vmatprep.subr.mxu0 0.0
        %3296 = vmatpush2.msra.mxu0 0.0
        %3297 = vmatprep.subr.mxu0 0.0
        %3298 = vmatpush2.msra.mxu0 0.0
        %3299 = vmatprep.subr.mxu0 0.0
        %3300 = vmatpush2.msra.mxu0 0.0
        %3301 = vmatprep.subr.mxu0 0.0
        %3302 = vmatpush2.msra.mxu0 0.0
        %3303 = vmatprep.subr.mxu0 0.0
        %3304 = vmatpush2.msra.mxu0 0.0
        %3305 = vmatprep.subr.mxu0 0.0
        %3306 = vmatpush2.msra.mxu0 0.0
        %3307 = vmatprep.subr.mxu0 0.0
        %3308 = vmatpush2.msra.mxu0 0.0
        %3309 = vmatprep.subr.mxu0 0.0
        %3310 = vmatpush2.msra.mxu0 0.0
        %3311 = vmatprep.subr.mxu0 0.0
        %3312 = vmatpush2.msra.mxu0 0.0
        %3313 = vmatprep.subr.mxu0 0.0
        %3314 = vmatpush2.msra.mxu0 0.0
        %3315 = vmatprep.subr.mxu0 0.0
        %3316 = vmatpush2.msra.mxu0 0.0
        %3317 = vmatprep.subr.mxu0 0.0
        %3318 = vmatpush2.msra.mxu0 0.0
        %3319 = vmatprep.subr.mxu0 0.0
        %3320 = vmatpush2.msra.mxu0 0.0
        %3321 = vmatprep.subr.mxu0 0.0
        %3322 = vmatpush2.msra.mxu0 0.0
        %3323 = vmatprep.subr.mxu0 0.0
        %3324 = vmatpush2.msra.mxu0 0.0
        %3325 = vmatprep.subr.mxu0 0.0
        %3326 = vmatpush2.msra.mxu0 0.0
        %3327 = vmatprep.mubr.f32.mxu0 0.0
        %3328 = vmatmul.mubr.f32.gmra.mxu0 %v3068
        %v3329 = vpop.f32.mrf.mxu0
        %v3330 = vadd.f32 0.0, %v3329
        %v3331 = vpop.f32.mrf.mxu0
        %v3332 = vadd.f32 0.0, %v3331
        %3333 = vdwg.mxu0
        %3334 = vmatprep.subr.mxu0 %v3256
        %3335 = vmatpush1.msra.mxu0 %v3255
        %3336 = vmatprep.subr.mxu0 %v3248
        %3337 = vmatpush1.msra.mxu0 %v3247
        %3338 = vmatprep.subr.mxu0 %v3240
        %3339 = vmatpush1.msra.mxu0 %v3239
        %3340 = vmatprep.subr.mxu0 %v3232
        %3341 = vmatpush1.msra.mxu0 %v3231
        %3342 = vmatprep.subr.mxu0 %v3224
        %3343 = vmatpush1.msra.mxu0 %v3223
        %3344 = vmatprep.subr.mxu0 %v3216
        %3345 = vmatpush1.msra.mxu0 %v3215
        %3346 = vmatprep.subr.mxu0 %v3208
        %3347 = vmatpush1.msra.mxu0 %v3207
        %3348 = vmatprep.subr.mxu0 %v3200
        %3349 = vmatpush1.msra.mxu0 %v3199
        %3350 = vmatprep.subr.mxu0 %v3192
        %3351 = vmatpush1.msra.mxu0 %v3191
        %3352 = vmatprep.subr.mxu0 %v3184
        %3353 = vmatpush1.msra.mxu0 %v3183
        %3354 = vmatprep.subr.mxu0 %v3176
        %3355 = vmatpush1.msra.mxu0 %v3175
        %3356 = vmatprep.subr.mxu0 %v3168
        %3357 = vmatpush1.msra.mxu0 %v3167
        %3358 = vmatprep.subr.mxu0 %v3160
        %3359 = vmatpush1.msra.mxu0 %v3159
        %3360 = vmatprep.subr.mxu0 %v3152
        %3361 = vmatpush1.msra.mxu0 %v3151
        %3362 = vmatprep.subr.mxu0 %v3144
        %3363 = vmatpush1.msra.mxu0 %v3143
        %3364 = vmatprep.subr.mxu0 %v3136
        %3365 = vmatpush1.msra.mxu0 %v3135
        %3366 = vmatprep.subr.mxu0 0.0
        %3367 = vmatpush2.msra.mxu0 0.0
        %3368 = vmatprep.subr.mxu0 0.0
        %3369 = vmatpush2.msra.mxu0 0.0
        %3370 = vmatprep.subr.mxu0 0.0
        %3371 = vmatpush2.msra.mxu0 0.0
        %3372 = vmatprep.subr.mxu0 0.0
        %3373 = vmatpush2.msra.mxu0 0.0
        %3374 = vmatprep.subr.mxu0 0.0
        %3375 = vmatpush2.msra.mxu0 0.0
        %3376 = vmatprep.subr.mxu0 0.0
        %3377 = vmatpush2.msra.mxu0 0.0
        %3378 = vmatprep.subr.mxu0 0.0
        %3379 = vmatpush2.msra.mxu0 0.0
        %3380 = vmatprep.subr.mxu0 0.0
        %3381 = vmatpush2.msra.mxu0 0.0
        %3382 = vmatprep.subr.mxu0 0.0
        %3383 = vmatpush2.msra.mxu0 0.0
        %3384 = vmatprep.subr.mxu0 0.0
        %3385 = vmatpush2.msra.mxu0 0.0
        %3386 = vmatprep.subr.mxu0 0.0
        %3387 = vmatpush2.msra.mxu0 0.0
        %3388 = vmatprep.subr.mxu0 0.0
        %3389 = vmatpush2.msra.mxu0 0.0
        %3390 = vmatprep.subr.mxu0 0.0
        %3391 = vmatpush2.msra.mxu0 0.0
        %3392 = vmatprep.subr.mxu0 0.0
        %3393 = vmatpush2.msra.mxu0 0.0
        %3394 = vmatprep.subr.mxu0 0.0
        %3395 = vmatpush2.msra.mxu0 0.0
        %3396 = vmatprep.subr.mxu0 0.0
        %3397 = vmatpush2.msra.mxu0 0.0
        %3398 = vmatprep.mubr.f32.mxu0 0.0
        %3399 = vmatmul.mubr.f32.gmra.mxu0 %v3068
        %v3400 = vpop.f32.mrf.mxu0
        %v3401 = vadd.f32 0.0, %v3400
        %v3402 = vpop.f32.mrf.mxu0
        %v3403 = vadd.f32 0.0, %v3402
        %3404 = vdwg.mxu0
        %3405 = vmatprep.subr.mxu0 %v3258
        %3406 = vmatpush1.msra.mxu0 %v3257
        %3407 = vmatprep.subr.mxu0 %v3250
        %3408 = vmatpush1.msra.mxu0 %v3249
        %3409 = vmatprep.subr.mxu0 %v3242
        %3410 = vmatpush1.msra.mxu0 %v3241
        %3411 = vmatprep.subr.mxu0 %v3234
        %3412 = vmatpush1.msra.mxu0 %v3233
        %3413 = vmatprep.subr.mxu0 %v3226
        %3414 = vmatpush1.msra.mxu0 %v3225
        %3415 = vmatprep.subr.mxu0 %v3218
        %3416 = vmatpush1.msra.mxu0 %v3217
        %3417 = vmatprep.subr.mxu0 %v3210
        %3418 = vmatpush1.msra.mxu0 %v3209
        %3419 = vmatprep.subr.mxu0 %v3202
        %3420 = vmatpush1.msra.mxu0 %v3201
        %3421 = vmatprep.subr.mxu0 %v3194
        %3422 = vmatpush1.msra.mxu0 %v3193
        %3423 = vmatprep.subr.mxu0 %v3186
        %3424 = vmatpush1.msra.mxu0 %v3185
        %3425 = vmatprep.subr.mxu0 %v3178
        %3426 = vmatpush1.msra.mxu0 %v3177
        %3427 = vmatprep.subr.mxu0 %v3170
        %3428 = vmatpush1.msra.mxu0 %v3169
        %3429 = vmatprep.subr.mxu0 %v3162
        %3430 = vmatpush1.msra.mxu0 %v3161
        %3431 = vmatprep.subr.mxu0 %v3154
        %3432 = vmatpush1.msra.mxu0 %v3153
        %3433 = vmatprep.subr.mxu0 %v3146
        %3434 = vmatpush1.msra.mxu0 %v3145
        %3435 = vmatprep.subr.mxu0 %v3138
        %3436 = vmatpush1.msra.mxu0 %v3137
        %3437 = vmatprep.subr.mxu0 0.0
        %3438 = vmatpush2.msra.mxu0 0.0
        %3439 = vmatprep.subr.mxu0 0.0
        %3440 = vmatpush2.msra.mxu0 0.0
        %3441 = vmatprep.subr.mxu0 0.0
        %3442 = vmatpush2.msra.mxu0 0.0
        %3443 = vmatprep.subr.mxu0 0.0
        %3444 = vmatpush2.msra.mxu0 0.0
        %3445 = vmatprep.subr.mxu0 0.0
        %3446 = vmatpush2.msra.mxu0 0.0
        %3447 = vmatprep.subr.mxu0 0.0
        %3448 = vmatpush2.msra.mxu0 0.0
        %3449 = vmatprep.subr.mxu0 0.0
        %3450 = vmatpush2.msra.mxu0 0.0
        %3451 = vmatprep.subr.mxu0 0.0
        %3452 = vmatpush2.msra.mxu0 0.0
        %3453 = vmatprep.subr.mxu0 0.0
        %3454 = vmatpush2.msra.mxu0 0.0
        %3455 = vmatprep.subr.mxu0 0.0
        %3456 = vmatpush2.msra.mxu0 0.0
        %3457 = vmatprep.subr.mxu0 0.0
        %3458 = vmatpush2.msra.mxu0 0.0
        %3459 = vmatprep.subr.mxu0 0.0
        %3460 = vmatpush2.msra.mxu0 0.0
        %3461 = vmatprep.subr.mxu0 0.0
        %3462 = vmatpush2.msra.mxu0 0.0
        %3463 = vmatprep.subr.mxu0 0.0
        %3464 = vmatpush2.msra.mxu0 0.0
        %3465 = vmatprep.subr.mxu0 0.0
        %3466 = vmatpush2.msra.mxu0 0.0
        %3467 = vmatprep.subr.mxu0 0.0
        %3468 = vmatpush2.msra.mxu0 0.0
        %3469 = vmatprep.mubr.f32.mxu0 0.0
        %3470 = vmatmul.mubr.f32.gmra.mxu0 %v3068
        %v3471 = vpop.f32.mrf.mxu0
        %v3472 = vadd.f32 0.0, %v3471
        %v3473 = vpop.f32.mrf.mxu0
        %v3474 = vadd.f32 0.0, %v3473
        %3475 = vdwg.mxu0
        %3476 = vmatprep.subr.mxu0 %v3260
        %3477 = vmatpush1.msra.mxu0 %v3259
        %3478 = vmatprep.subr.mxu0 %v3252
        %3479 = vmatpush1.msra.mxu0 %v3251
        %3480 = vmatprep.subr.mxu0 %v3244
        %3481 = vmatpush1.msra.mxu0 %v3243
        %3482 = vmatprep.subr.mxu0 %v3236
        %3483 = vmatpush1.msra.mxu0 %v3235
        %3484 = vmatprep.subr.mxu0 %v3228
        %3485 = vmatpush1.msra.mxu0 %v3227
        %3486 = vmatprep.subr.mxu0 %v3220
        %3487 = vmatpush1.msra.mxu0 %v3219
        %3488 = vmatprep.subr.mxu0 %v3212
        %3489 = vmatpush1.msra.mxu0 %v3211
        %3490 = vmatprep.subr.mxu0 %v3204
        %3491 = vmatpush1.msra.mxu0 %v3203
        %3492 = vmatprep.subr.mxu0 %v3196
        %3493 = vmatpush1.msra.mxu0 %v3195
        %3494 = vmatprep.subr.mxu0 %v3188
        %3495 = vmatpush1.msra.mxu0 %v3187
        %3496 = vmatprep.subr.mxu0 %v3180
        %3497 = vmatpush1.msra.mxu0 %v3179
        %3498 = vmatprep.subr.mxu0 %v3172
        %3499 = vmatpush1.msra.mxu0 %v3171
        %3500 = vmatprep.subr.mxu0 %v3164
        %3501 = vmatpush1.msra.mxu0 %v3163
        %3502 = vmatprep.subr.mxu0 %v3156
        %3503 = vmatpush1.msra.mxu0 %v3155
        %3504 = vmatprep.subr.mxu0 %v3148
        %3505 = vmatpush1.msra.mxu0 %v3147
        %3506 = vmatprep.subr.mxu0 %v3140
        %3507 = vmatpush1.msra.mxu0 %v3139
        %3508 = vmatprep.subr.mxu0 0.0
        %3509 = vmatpush2.msra.mxu0 0.0
        %3510 = vmatprep.subr.mxu0 0.0
        %3511 = vmatpush2.msra.mxu0 0.0
        %3512 = vmatprep.subr.mxu0 0.0
        %3513 = vmatpush2.msra.mxu0 0.0
        %3514 = vmatprep.subr.mxu0 0.0
        %3515 = vmatpush2.msra.mxu0 0.0
        %3516 = vmatprep.subr.mxu0 0.0
        %3517 = vmatpush2.msra.mxu0 0.0
        %3518 = vmatprep.subr.mxu0 0.0
        %3519 = vmatpush2.msra.mxu0 0.0
        %3520 = vmatprep.subr.mxu0 0.0
        %3521 = vmatpush2.msra.mxu0 0.0
        %3522 = vmatprep.subr.mxu0 0.0
        %3523 = vmatpush2.msra.mxu0 0.0
        %3524 = vmatprep.subr.mxu0 0.0
        %3525 = vmatpush2.msra.mxu0 0.0
        %3526 = vmatprep.subr.mxu0 0.0
        %3527 = vmatpush2.msra.mxu0 0.0
        %3528 = vmatprep.subr.mxu0 0.0
        %3529 = vmatpush2.msra.mxu0 0.0
        %3530 = vmatprep.subr.mxu0 0.0
        %3531 = vmatpush2.msra.mxu0 0.0
        %3532 = vmatprep.subr.mxu0 0.0
        %3533 = vmatpush2.msra.mxu0 0.0
        %3534 = vmatprep.subr.mxu0 0.0
        %3535 = vmatpush2.msra.mxu0 0.0
        %3536 = vmatprep.subr.mxu0 0.0
        %3537 = vmatpush2.msra.mxu0 0.0
        %3538 = vmatprep.subr.mxu0 0.0
        %3539 = vmatpush2.msra.mxu0 0.0
        %3540 = vmatprep.mubr.f32.mxu0 0.0
        %3541 = vmatmul.mubr.f32.gmra.mxu0 %v3068
        %v3542 = vpop.f32.mrf.mxu0
        %v3543 = vadd.f32 0.0, %v3542
        %v3544 = vpop.f32.mrf.mxu0
        %v3545 = vadd.f32 0.0, %v3544
        %3546 = vdwg.mxu0
        %v3555 = vcombine.low %v3330, %v3332
        %v3556 = vcombine.low %v3401, %v3403
        %v3558 = vunpack.c.l.s4 1983009808
        %v3559 = vunpack.c.0.s8 %v3558
        %v3560 = vlaneseq
        %v3561 = vshrl.u32 %v3560, 7
        %v3562 = vsub.s32 %v3559, %v3561
        %v3563 = vrot.slane %v3555, %v3562
        %v3565 = vunpack.c.l.s4 1983009808
        %v3566 = vunpack.c.0.s8 %v3565
        %v3567 = vlaneseq
        %v3568 = vshrl.u32 %v3567, 7
        %v3569 = vsub.s32 %v3566, %v3568
        %v3570 = vrot.slane %v3556, %v3569
        %v3571 = vcombine.low %v3563, %v3570
        %v3572 = vcombine.low %v3472, %v3474
        %v3573 = vcombine.low %v3543, %v3545
        %v3575 = vunpack.c.l.s4 1983009808
        %v3576 = vunpack.c.0.s8 %v3575
        %v3577 = vlaneseq
        %v3578 = vshrl.u32 %v3577, 7
        %v3579 = vsub.s32 %v3576, %v3578
        %v3580 = vrot.slane %v3572, %v3579
        %v3582 = vunpack.c.l.s4 1983009808
        %v3583 = vunpack.c.0.s8 %v3582
        %v3584 = vlaneseq
        %v3585 = vshrl.u32 %v3584, 7
        %v3586 = vsub.s32 %v3583, %v3585
        %v3587 = vrot.slane %v3573, %v3586
        %v3588 = vcombine.low %v3580, %v3587
        %v3591 = vadd.f32 %v3261, %v3571
        %v3592 = vadd.f32 %v3262, %v3588
        %3593 = vst [vmem:[#allocation3] sm:$0xff] %v3591
        %3594 = vst [vmem:[#allocation3 + $0x8] sm:$0xff] %v3592
        %p3595 = scmp.eq.s32.totalorder %s23, 4
        // Predicated region
        $region53: #{encoder_cnn_forward.3} parent=47 // pred_check
          %p3596 = pneg %p3595
        $region54: #{encoder_cnn_forward.3} parent=47 // pred_check_branch
          %3598 = sbr.rel (%p3596) target = $region56
        $region55: #{encoder_cnn_forward.3} parent=47 // pred_region
          %v3599 = vld [vmem:[#allocation3] sm:$0xff]
          %v3600 = vld [vmem:[#allocation3 + $0x8] sm:$0xff]
          %v3601 = vld [vmem:[%s4] sm:$0xff]
          %v3603 = vlaneseq
          %v3604 = vshrl.u32 %v3603, 7
          %v3605 = vsub.s32 0, %v3604
          %v3606 = vrot.slane %v3601, %v3605
          %v3607 = vlaneseq
          %v3608 = vshrl.u32 %v3607, 7
          %v3609 = vsub.s32 1, %v3608
          %v3610 = vrot.slane %v3601, %v3609
          %v3611 = vlaneseq
          %v3612 = vshrl.u32 %v3611, 7
          %v3613 = vsub.s32 2, %v3612
          %v3614 = vrot.slane %v3601, %v3613
          %v3615 = vlaneseq
          %v3616 = vshrl.u32 %v3615, 7
          %v3617 = vsub.s32 3, %v3616
          %v3618 = vrot.slane %v3601, %v3617
          %v3619 = vlaneseq
          %v3620 = vshrl.u32 %v3619, 7
          %v3621 = vsub.s32 4, %v3620
          %v3622 = vrot.slane %v3601, %v3621
          %v3623 = vlaneseq
          %v3624 = vshrl.u32 %v3623, 7
          %v3625 = vsub.s32 5, %v3624
          %v3626 = vrot.slane %v3601, %v3625
          %v3627 = vlaneseq
          %v3628 = vshrl.u32 %v3627, 7
          %v3629 = vsub.s32 6, %v3628
          %v3630 = vrot.slane %v3601, %v3629
          %v3631 = vlaneseq
          %v3632 = vshrl.u32 %v3631, 7
          %v3633 = vsub.s32 7, %v3632
          %v3634 = vrot.slane %v3601, %v3633
          %v3635 = vcombine.low %v3606, %v3610
          %v3636 = vcombine.low %v3614, %v3618
          %v3638 = vunpack.c.l.s4 1983009808
          %v3639 = vunpack.c.0.s8 %v3638
          %v3640 = vlaneseq
          %v3641 = vshrl.u32 %v3640, 7
          %v3642 = vsub.s32 %v3639, %v3641
          %v3643 = vrot.slane %v3635, %v3642
          %v3645 = vunpack.c.l.s4 1983009808
          %v3646 = vunpack.c.0.s8 %v3645
          %v3647 = vlaneseq
          %v3648 = vshrl.u32 %v3647, 7
          %v3649 = vsub.s32 %v3646, %v3648
          %v3650 = vrot.slane %v3636, %v3649
          %v3651 = vcombine.low %v3643, %v3650
          %v3652 = vcombine.low %v3622, %v3626
          %v3653 = vcombine.low %v3630, %v3634
          %v3655 = vunpack.c.l.s4 1983009808
          %v3656 = vunpack.c.0.s8 %v3655
          %v3657 = vlaneseq
          %v3658 = vshrl.u32 %v3657, 7
          %v3659 = vsub.s32 %v3656, %v3658
          %v3660 = vrot.slane %v3652, %v3659
          %v3662 = vunpack.c.l.s4 1983009808
          %v3663 = vunpack.c.0.s8 %v3662
          %v3664 = vlaneseq
          %v3665 = vshrl.u32 %v3664, 7
          %v3666 = vsub.s32 %v3663, %v3665
          %v3667 = vrot.slane %v3653, %v3666
          %v3668 = vcombine.low %v3660, %v3667
          %v3671 = vadd.f32 %v3599, %v3651
          %v3672 = vadd.f32 %v3600, %v3668
          %vm3673 = vcmp.gt.f32.partialorder %v3671, 0.0
          %vm3674 = vcmp.gt.f32.partialorder %v3672, 0.0
          %v3675 = vmul.f32 %v3671, 0.2
          %v3676 = vmul.f32 %v3672, 0.2
          %v3677 = vsel %vm3673, %v3671, %v3675
          %v3678 = vsel %vm3674, %v3672, %v3676
          %v3679 = vld [vmem:[%s5] sm:$0xff]
          %v3680 = vld [vmem:[%s5 + $0x8] sm:$0xff]
          %v3681 = vld [vmem:[%s5 + $0x10] sm:$0xff]
          %v3682 = vld [vmem:[%s5 + $0x18] sm:$0xff]
          %v3683 = vld [vmem:[%s5 + $0x20] sm:$0xff]
          %v3684 = vld [vmem:[%s5 + $0x28] sm:$0xff]
          %v3685 = vld [vmem:[%s5 + $0x30] sm:$0xff]
          %v3686 = vld [vmem:[%s5 + $0x38] sm:$0xff]
          %v3687 = vld [vmem:[%s5 + $0x40] sm:$0xff]
          %v3688 = vld [vmem:[%s5 + $0x48] sm:$0xff]
          %v3689 = vld [vmem:[%s5 + $0x50] sm:$0xff]
          %v3690 = vld [vmem:[%s5 + $0x58] sm:$0xff]
          %v3691 = vld [vmem:[%s5 + $0x60] sm:$0xff]
          %v3692 = vld [vmem:[%s5 + $0x68] sm:$0xff]
          %v3693 = vld [vmem:[%s5 + $0x70] sm:$0xff]
          %v3694 = vld [vmem:[%s5 + $0x78] sm:$0xff]
          %v3695 = vld [vmem:[%s5 + $0x80] sm:$0xff]
          %v3696 = vld [vmem:[%s5 + $0x88] sm:$0xff]
          %v3697 = vld [vmem:[%s5 + $0x90] sm:$0xff]
          %v3698 = vld [vmem:[%s5 + $0x98] sm:$0xff]
          %v3699 = vld [vmem:[%s5 + $0xa0] sm:$0xff]
          %v3700 = vld [vmem:[%s5 + $0xa8] sm:$0xff]
          %v3701 = vld [vmem:[%s5 + $0xb0] sm:$0xff]
          %v3702 = vld [vmem:[%s5 + $0xb8] sm:$0xff]
          %v3703 = vld [vmem:[%s5 + $0xc0] sm:$0xff]
          %v3704 = vld [vmem:[%s5 + $0xc8] sm:$0xff]
          %v3705 = vld [vmem:[%s5 + $0xd0] sm:$0xff]
          %v3706 = vld [vmem:[%s5 + $0xd8] sm:$0xff]
          %v3707 = vld [vmem:[%s5 + $0xe0] sm:$0xff]
          %v3708 = vld [vmem:[%s5 + $0xe8] sm:$0xff]
          %v3709 = vld [vmem:[%s5 + $0xf0] sm:$0xff]
          %v3710 = vld [vmem:[%s5 + $0xf8] sm:$0xff]
          %v3711 = vld [vmem:[%s5 + $0x100] sm:$0xff]
          %v3712 = vld [vmem:[%s5 + $0x108] sm:$0xff]
          %v3713 = vld [vmem:[%s5 + $0x110] sm:$0xff]
          %v3714 = vld [vmem:[%s5 + $0x118] sm:$0xff]
          %v3715 = vld [vmem:[%s5 + $0x120] sm:$0xff]
          %v3716 = vld [vmem:[%s5 + $0x128] sm:$0xff]
          %v3717 = vld [vmem:[%s5 + $0x130] sm:$0xff]
          %v3718 = vld [vmem:[%s5 + $0x138] sm:$0xff]
          %v3719 = vld [vmem:[%s5 + $0x140] sm:$0xff]
          %v3720 = vld [vmem:[%s5 + $0x148] sm:$0xff]
          %v3721 = vld [vmem:[%s5 + $0x150] sm:$0xff]
          %v3722 = vld [vmem:[%s5 + $0x158] sm:$0xff]
          %v3723 = vld [vmem:[%s5 + $0x160] sm:$0xff]
          %v3724 = vld [vmem:[%s5 + $0x168] sm:$0xff]
          %v3725 = vld [vmem:[%s5 + $0x170] sm:$0xff]
          %v3726 = vld [vmem:[%s5 + $0x178] sm:$0xff]
          %v3727 = vld [vmem:[%s5 + $0x180] sm:$0xff]
          %v3728 = vld [vmem:[%s5 + $0x188] sm:$0xff]
          %v3729 = vld [vmem:[%s5 + $0x190] sm:$0xff]
          %v3730 = vld [vmem:[%s5 + $0x198] sm:$0xff]
          %v3731 = vld [vmem:[%s5 + $0x1a0] sm:$0xff]
          %v3732 = vld [vmem:[%s5 + $0x1a8] sm:$0xff]
          %v3733 = vld [vmem:[%s5 + $0x1b0] sm:$0xff]
          %v3734 = vld [vmem:[%s5 + $0x1b8] sm:$0xff]
          %v3735 = vld [vmem:[%s5 + $0x1c0] sm:$0xff]
          %v3736 = vld [vmem:[%s5 + $0x1c8] sm:$0xff]
          %v3737 = vld [vmem:[%s5 + $0x1d0] sm:$0xff]
          %v3738 = vld [vmem:[%s5 + $0x1d8] sm:$0xff]
          %v3739 = vld [vmem:[%s5 + $0x1e0] sm:$0xff]
          %v3740 = vld [vmem:[%s5 + $0x1e8] sm:$0xff]
          %v3741 = vld [vmem:[%s5 + $0x1f0] sm:$0xff]
          %v3742 = vld [vmem:[%s5 + $0x1f8] sm:$0xff]
          %v3743 = vld [vmem:[%s5 + $0x200] sm:$0xff]
          %v3744 = vld [vmem:[%s5 + $0x208] sm:$0xff]
          %v3745 = vld [vmem:[%s5 + $0x210] sm:$0xff]
          %v3746 = vld [vmem:[%s5 + $0x218] sm:$0xff]
          %v3747 = vld [vmem:[%s5 + $0x220] sm:$0xff]
          %v3748 = vld [vmem:[%s5 + $0x228] sm:$0xff]
          %v3749 = vld [vmem:[%s5 + $0x230] sm:$0xff]
          %v3750 = vld [vmem:[%s5 + $0x238] sm:$0xff]
          %v3751 = vld [vmem:[%s5 + $0x240] sm:$0xff]
          %v3752 = vld [vmem:[%s5 + $0x248] sm:$0xff]
          %v3753 = vld [vmem:[%s5 + $0x250] sm:$0xff]
          %v3754 = vld [vmem:[%s5 + $0x258] sm:$0xff]
          %v3755 = vld [vmem:[%s5 + $0x260] sm:$0xff]
          %v3756 = vld [vmem:[%s5 + $0x268] sm:$0xff]
          %v3757 = vld [vmem:[%s5 + $0x270] sm:$0xff]
          %v3758 = vld [vmem:[%s5 + $0x278] sm:$0xff]
          %v3759 = vld [vmem:[%s5 + $0x280] sm:$0xff]
          %v3760 = vld [vmem:[%s5 + $0x288] sm:$0xff]
          %v3761 = vld [vmem:[%s5 + $0x290] sm:$0xff]
          %v3762 = vld [vmem:[%s5 + $0x298] sm:$0xff]
          %v3763 = vld [vmem:[%s5 + $0x2a0] sm:$0xff]
          %v3764 = vld [vmem:[%s5 + $0x2a8] sm:$0xff]
          %v3765 = vld [vmem:[%s5 + $0x2b0] sm:$0xff]
          %v3766 = vld [vmem:[%s5 + $0x2b8] sm:$0xff]
          %v3767 = vld [vmem:[%s5 + $0x2c0] sm:$0xff]
          %v3768 = vld [vmem:[%s5 + $0x2c8] sm:$0xff]
          %v3769 = vld [vmem:[%s5 + $0x2d0] sm:$0xff]
          %v3770 = vld [vmem:[%s5 + $0x2d8] sm:$0xff]
          %v3771 = vld [vmem:[%s5 + $0x2e0] sm:$0xff]
          %v3772 = vld [vmem:[%s5 + $0x2e8] sm:$0xff]
          %v3773 = vld [vmem:[%s5 + $0x2f0] sm:$0xff]
          %v3774 = vld [vmem:[%s5 + $0x2f8] sm:$0xff]
          %v3775 = vld [vmem:[%s5 + $0x300] sm:$0xff]
          %v3776 = vld [vmem:[%s5 + $0x308] sm:$0xff]
          %v3777 = vld [vmem:[%s5 + $0x310] sm:$0xff]
          %v3778 = vld [vmem:[%s5 + $0x318] sm:$0xff]
          %v3779 = vld [vmem:[%s5 + $0x320] sm:$0xff]
          %v3780 = vld [vmem:[%s5 + $0x328] sm:$0xff]
          %v3781 = vld [vmem:[%s5 + $0x330] sm:$0xff]
          %v3782 = vld [vmem:[%s5 + $0x338] sm:$0xff]
          %v3783 = vld [vmem:[%s5 + $0x340] sm:$0xff]
          %v3784 = vld [vmem:[%s5 + $0x348] sm:$0xff]
          %v3785 = vld [vmem:[%s5 + $0x350] sm:$0xff]
          %v3786 = vld [vmem:[%s5 + $0x358] sm:$0xff]
          %v3787 = vld [vmem:[%s5 + $0x360] sm:$0xff]
          %v3788 = vld [vmem:[%s5 + $0x368] sm:$0xff]
          %v3789 = vld [vmem:[%s5 + $0x370] sm:$0xff]
          %v3790 = vld [vmem:[%s5 + $0x378] sm:$0xff]
          %v3791 = vld [vmem:[%s5 + $0x380] sm:$0xff]
          %v3792 = vld [vmem:[%s5 + $0x388] sm:$0xff]
          %v3793 = vld [vmem:[%s5 + $0x390] sm:$0xff]
          %v3794 = vld [vmem:[%s5 + $0x398] sm:$0xff]
          %v3795 = vld [vmem:[%s5 + $0x3a0] sm:$0xff]
          %v3796 = vld [vmem:[%s5 + $0x3a8] sm:$0xff]
          %v3797 = vld [vmem:[%s5 + $0x3b0] sm:$0xff]
          %v3798 = vld [vmem:[%s5 + $0x3b8] sm:$0xff]
          %v3799 = vld [vmem:[%s5 + $0x3c0] sm:$0xff]
          %v3800 = vld [vmem:[%s5 + $0x3c8] sm:$0xff]
          %v3801 = vld [vmem:[%s5 + $0x3d0] sm:$0xff]
          %v3802 = vld [vmem:[%s5 + $0x3d8] sm:$0xff]
          %v3803 = vld [vmem:[%s5 + $0x3e0] sm:$0xff]
          %v3804 = vld [vmem:[%s5 + $0x3e8] sm:$0xff]
          %v3805 = vld [vmem:[%s5 + $0x3f0] sm:$0xff]
          %v3806 = vld [vmem:[%s5 + $0x3f8] sm:$0xff]
          %v3807 = vld [vmem:[%s6] sm:$0x1]
          %v3809 = vlaneseq
          %v3810 = vshrl.u32 %v3809, 7
          %v3811 = vsub.s32 0, %v3810
          %v3812 = vrot.slane %v3807, %v3811
          %v3816 = vcombine.high %v3677, %v3677
          %v3818 = vunpack.c.l.s4 1983009808
          %v3819 = vunpack.c.0.s8 %v3818
          %v3820 = vlaneseq
          %v3821 = vshrl.u32 %v3820, 7
          %v3822 = vsub.s32 %v3819, %v3821
          %v3823 = vrot.slane %v3677, %v3822
          %v3825 = vunpack.c.l.s4 1983009808
          %v3826 = vunpack.c.0.s8 %v3825
          %v3827 = vlaneseq
          %v3828 = vshrl.u32 %v3827, 7
          %v3829 = vsub.s32 %v3826, %v3828
          %v3830 = vrot.slane %v3816, %v3829
          %v3831 = vcombine.high %v3823, %v3823
          %v3832 = vcombine.high %v3830, %v3830
          %v3833 = vcombine.high %v3678, %v3678
          %v3835 = vunpack.c.l.s4 1983009808
          %v3836 = vunpack.c.0.s8 %v3835
          %v3837 = vlaneseq
          %v3838 = vshrl.u32 %v3837, 7
          %v3839 = vsub.s32 %v3836, %v3838
          %v3840 = vrot.slane %v3678, %v3839
          %v3842 = vunpack.c.l.s4 1983009808
          %v3843 = vunpack.c.0.s8 %v3842
          %v3844 = vlaneseq
          %v3845 = vshrl.u32 %v3844, 7
          %v3846 = vsub.s32 %v3843, %v3845
          %v3847 = vrot.slane %v3833, %v3846
          %v3848 = vcombine.high %v3840, %v3840
          %v3849 = vcombine.high %v3847, %v3847
          %3858 = vmatprep.subr.mxu0 0.0
          %3859 = vmatpush1.msra.mxu0 %v3694
          %3860 = vmatprep.subr.mxu0 0.0
          %3861 = vmatpush1.msra.mxu0 %v3693
          %3862 = vmatprep.subr.mxu0 0.0
          %3863 = vmatpush1.msra.mxu0 %v3692
          %3864 = vmatprep.subr.mxu0 0.0
          %3865 = vmatpush1.msra.mxu0 %v3691
          %3866 = vmatprep.subr.mxu0 0.0
          %3867 = vmatpush1.msra.mxu0 %v3690
          %3868 = vmatprep.subr.mxu0 0.0
          %3869 = vmatpush1.msra.mxu0 %v3689
          %3870 = vmatprep.subr.mxu0 0.0
          %3871 = vmatpush1.msra.mxu0 %v3688
          %3872 = vmatprep.subr.mxu0 0.0
          %3873 = vmatpush1.msra.mxu0 %v3687
          %3874 = vmatprep.subr.mxu0 0.0
          %3875 = vmatpush1.msra.mxu0 %v3686
          %3876 = vmatprep.subr.mxu0 0.0
          %3877 = vmatpush1.msra.mxu0 %v3685
          %3878 = vmatprep.subr.mxu0 0.0
          %3879 = vmatpush1.msra.mxu0 %v3684
          %3880 = vmatprep.subr.mxu0 0.0
          %3881 = vmatpush1.msra.mxu0 %v3683
          %3882 = vmatprep.subr.mxu0 0.0
          %3883 = vmatpush1.msra.mxu0 %v3682
          %3884 = vmatprep.subr.mxu0 0.0
          %3885 = vmatpush1.msra.mxu0 %v3681
          %3886 = vmatprep.subr.mxu0 0.0
          %3887 = vmatpush1.msra.mxu0 %v3680
          %3888 = vmatprep.subr.mxu0 0.0
          %3889 = vmatpush1.msra.mxu0 %v3679
          %3890 = vmatprep.subr.mxu0 0.0
          %3891 = vmatpush2.msra.mxu0 %v3710
          %3892 = vmatprep.subr.mxu0 0.0
          %3893 = vmatpush2.msra.mxu0 %v3709
          %3894 = vmatprep.subr.mxu0 0.0
          %3895 = vmatpush2.msra.mxu0 %v3708
          %3896 = vmatprep.subr.mxu0 0.0
          %3897 = vmatpush2.msra.mxu0 %v3707
          %3898 = vmatprep.subr.mxu0 0.0
          %3899 = vmatpush2.msra.mxu0 %v3706
          %3900 = vmatprep.subr.mxu0 0.0
          %3901 = vmatpush2.msra.mxu0 %v3705
          %3902 = vmatprep.subr.mxu0 0.0
          %3903 = vmatpush2.msra.mxu0 %v3704
          %3904 = vmatprep.subr.mxu0 0.0
          %3905 = vmatpush2.msra.mxu0 %v3703
          %3906 = vmatprep.subr.mxu0 0.0
          %3907 = vmatpush2.msra.mxu0 %v3702
          %3908 = vmatprep.subr.mxu0 0.0
          %3909 = vmatpush2.msra.mxu0 %v3701
          %3910 = vmatprep.subr.mxu0 0.0
          %3911 = vmatpush2.msra.mxu0 %v3700
          %3912 = vmatprep.subr.mxu0 0.0
          %3913 = vmatpush2.msra.mxu0 %v3699
          %3914 = vmatprep.subr.mxu0 0.0
          %3915 = vmatpush2.msra.mxu0 %v3698
          %3916 = vmatprep.subr.mxu0 0.0
          %3917 = vmatpush2.msra.mxu0 %v3697
          %3918 = vmatprep.subr.mxu0 0.0
          %3919 = vmatpush2.msra.mxu0 %v3696
          %3920 = vmatprep.subr.mxu0 0.0
          %3921 = vmatpush2.msra.mxu0 %v3695
          %3922 = vmatprep.mubr.f32.mxu0 %v3831
          %3923 = vmatmul.mubr.f32.gmra.mxu0 %v3823
          %v3924 = vpop.f32.mrf.mxu0
          %v3925 = vadd.f32 %v3812, %v3924
          %v3926 = vpop.f32.mrf.mxu0
          %3927 = vdwg.mxu0
          %3928 = vmatprep.subr.mxu0 0.0
          %3929 = vmatpush1.msra.mxu0 %v3726
          %3930 = vmatprep.subr.mxu0 0.0
          %3931 = vmatpush1.msra.mxu0 %v3725
          %3932 = vmatprep.subr.mxu0 0.0
          %3933 = vmatpush1.msra.mxu0 %v3724
          %3934 = vmatprep.subr.mxu0 0.0
          %3935 = vmatpush1.msra.mxu0 %v3723
          %3936 = vmatprep.subr.mxu0 0.0
          %3937 = vmatpush1.msra.mxu0 %v3722
          %3938 = vmatprep.subr.mxu0 0.0
          %3939 = vmatpush1.msra.mxu0 %v3721
          %3940 = vmatprep.subr.mxu0 0.0
          %3941 = vmatpush1.msra.mxu0 %v3720
          %3942 = vmatprep.subr.mxu0 0.0
          %3943 = vmatpush1.msra.mxu0 %v3719
          %3944 = vmatprep.subr.mxu0 0.0
          %3945 = vmatpush1.msra.mxu0 %v3718
          %3946 = vmatprep.subr.mxu0 0.0
          %3947 = vmatpush1.msra.mxu0 %v3717
          %3948 = vmatprep.subr.mxu0 0.0
          %3949 = vmatpush1.msra.mxu0 %v3716
          %3950 = vmatprep.subr.mxu0 0.0
          %3951 = vmatpush1.msra.mxu0 %v3715
          %3952 = vmatprep.subr.mxu0 0.0
          %3953 = vmatpush1.msra.mxu0 %v3714
          %3954 = vmatprep.subr.mxu0 0.0
          %3955 = vmatpush1.msra.mxu0 %v3713
          %3956 = vmatprep.subr.mxu0 0.0
          %3957 = vmatpush1.msra.mxu0 %v3712
          %3958 = vmatprep.subr.mxu0 0.0
          %3959 = vmatpush1.msra.mxu0 %v3711
          %3960 = vmatprep.subr.mxu0 0.0
          %3961 = vmatpush2.msra.mxu0 %v3742
          %3962 = vmatprep.subr.mxu0 0.0
          %3963 = vmatpush2.msra.mxu0 %v3741
          %3964 = vmatprep.subr.mxu0 0.0
          %3965 = vmatpush2.msra.mxu0 %v3740
          %3966 = vmatprep.subr.mxu0 0.0
          %3967 = vmatpush2.msra.mxu0 %v3739
          %3968 = vmatprep.subr.mxu0 0.0
          %3969 = vmatpush2.msra.mxu0 %v3738
          %3970 = vmatprep.subr.mxu0 0.0
          %3971 = vmatpush2.msra.mxu0 %v3737
          %3972 = vmatprep.subr.mxu0 0.0
          %3973 = vmatpush2.msra.mxu0 %v3736
          %3974 = vmatprep.subr.mxu0 0.0
          %3975 = vmatpush2.msra.mxu0 %v3735
          %3976 = vmatprep.subr.mxu0 0.0
          %3977 = vmatpush2.msra.mxu0 %v3734
          %3978 = vmatprep.subr.mxu0 0.0
          %3979 = vmatpush2.msra.mxu0 %v3733
          %3980 = vmatprep.subr.mxu0 0.0
          %3981 = vmatpush2.msra.mxu0 %v3732
          %3982 = vmatprep.subr.mxu0 0.0
          %3983 = vmatpush2.msra.mxu0 %v3731
          %3984 = vmatprep.subr.mxu0 0.0
          %3985 = vmatpush2.msra.mxu0 %v3730
          %3986 = vmatprep.subr.mxu0 0.0
          %3987 = vmatpush2.msra.mxu0 %v3729
          %3988 = vmatprep.subr.mxu0 0.0
          %3989 = vmatpush2.msra.mxu0 %v3728
          %3990 = vmatprep.subr.mxu0 0.0
          %3991 = vmatpush2.msra.mxu0 %v3727
          %3992 = vmatprep.mubr.f32.mxu0 %v3832
          %3993 = vmatmul.mubr.f32.gmra.mxu0 %v3830
          %v3994 = vpop.f32.mrf.mxu0
          %v3995 = vadd.f32 %v3925, %v3994
          %v3996 = vpop.f32.mrf.mxu0
          %3997 = vdwg.mxu0
          %3998 = vmatprep.subr.mxu0 0.0
          %3999 = vmatpush1.msra.mxu0 %v3758
          %4000 = vmatprep.subr.mxu0 0.0
          %4001 = vmatpush1.msra.mxu0 %v3757
          %4002 = vmatprep.subr.mxu0 0.0
          %4003 = vmatpush1.msra.mxu0 %v3756
          %4004 = vmatprep.subr.mxu0 0.0
          %4005 = vmatpush1.msra.mxu0 %v3755
          %4006 = vmatprep.subr.mxu0 0.0
          %4007 = vmatpush1.msra.mxu0 %v3754
          %4008 = vmatprep.subr.mxu0 0.0
          %4009 = vmatpush1.msra.mxu0 %v3753
          %4010 = vmatprep.subr.mxu0 0.0
          %4011 = vmatpush1.msra.mxu0 %v3752
          %4012 = vmatprep.subr.mxu0 0.0
          %4013 = vmatpush1.msra.mxu0 %v3751
          %4014 = vmatprep.subr.mxu0 0.0
          %4015 = vmatpush1.msra.mxu0 %v3750
          %4016 = vmatprep.subr.mxu0 0.0
          %4017 = vmatpush1.msra.mxu0 %v3749
          %4018 = vmatprep.subr.mxu0 0.0
          %4019 = vmatpush1.msra.mxu0 %v3748
          %4020 = vmatprep.subr.mxu0 0.0
          %4021 = vmatpush1.msra.mxu0 %v3747
          %4022 = vmatprep.subr.mxu0 0.0
          %4023 = vmatpush1.msra.mxu0 %v3746
          %4024 = vmatprep.subr.mxu0 0.0
          %4025 = vmatpush1.msra.mxu0 %v3745
          %4026 = vmatprep.subr.mxu0 0.0
          %4027 = vmatpush1.msra.mxu0 %v3744
          %4028 = vmatprep.subr.mxu0 0.0
          %4029 = vmatpush1.msra.mxu0 %v3743
          %4030 = vmatprep.subr.mxu0 0.0
          %4031 = vmatpush2.msra.mxu0 %v3774
          %4032 = vmatprep.subr.mxu0 0.0
          %4033 = vmatpush2.msra.mxu0 %v3773
          %4034 = vmatprep.subr.mxu0 0.0
          %4035 = vmatpush2.msra.mxu0 %v3772
          %4036 = vmatprep.subr.mxu0 0.0
          %4037 = vmatpush2.msra.mxu0 %v3771
          %4038 = vmatprep.subr.mxu0 0.0
          %4039 = vmatpush2.msra.mxu0 %v3770
          %4040 = vmatprep.subr.mxu0 0.0
          %4041 = vmatpush2.msra.mxu0 %v3769
          %4042 = vmatprep.subr.mxu0 0.0
          %4043 = vmatpush2.msra.mxu0 %v3768
          %4044 = vmatprep.subr.mxu0 0.0
          %4045 = vmatpush2.msra.mxu0 %v3767
          %4046 = vmatprep.subr.mxu0 0.0
          %4047 = vmatpush2.msra.mxu0 %v3766
          %4048 = vmatprep.subr.mxu0 0.0
          %4049 = vmatpush2.msra.mxu0 %v3765
          %4050 = vmatprep.subr.mxu0 0.0
          %4051 = vmatpush2.msra.mxu0 %v3764
          %4052 = vmatprep.subr.mxu0 0.0
          %4053 = vmatpush2.msra.mxu0 %v3763
          %4054 = vmatprep.subr.mxu0 0.0
          %4055 = vmatpush2.msra.mxu0 %v3762
          %4056 = vmatprep.subr.mxu0 0.0
          %4057 = vmatpush2.msra.mxu0 %v3761
          %4058 = vmatprep.subr.mxu0 0.0
          %4059 = vmatpush2.msra.mxu0 %v3760
          %4060 = vmatprep.subr.mxu0 0.0
          %4061 = vmatpush2.msra.mxu0 %v3759
          %4062 = vmatprep.mubr.f32.mxu0 %v3848
          %4063 = vmatmul.mubr.f32.gmra.mxu0 %v3840
          %v4064 = vpop.f32.mrf.mxu0
          %v4065 = vadd.f32 %v3995, %v4064
          %v4066 = vpop.f32.mrf.mxu0
          %4067 = vdwg.mxu0
          %4068 = vmatprep.subr.mxu0 0.0
          %4069 = vmatpush1.msra.mxu0 %v3790
          %4070 = vmatprep.subr.mxu0 0.0
          %4071 = vmatpush1.msra.mxu0 %v3789
          %4072 = vmatprep.subr.mxu0 0.0
          %4073 = vmatpush1.msra.mxu0 %v3788
          %4074 = vmatprep.subr.mxu0 0.0
          %4075 = vmatpush1.msra.mxu0 %v3787
          %4076 = vmatprep.subr.mxu0 0.0
          %4077 = vmatpush1.msra.mxu0 %v3786
          %4078 = vmatprep.subr.mxu0 0.0
          %4079 = vmatpush1.msra.mxu0 %v3785
          %4080 = vmatprep.subr.mxu0 0.0
          %4081 = vmatpush1.msra.mxu0 %v3784
          %4082 = vmatprep.subr.mxu0 0.0
          %4083 = vmatpush1.msra.mxu0 %v3783
          %4084 = vmatprep.subr.mxu0 0.0
          %4085 = vmatpush1.msra.mxu0 %v3782
          %4086 = vmatprep.subr.mxu0 0.0
          %4087 = vmatpush1.msra.mxu0 %v3781
          %4088 = vmatprep.subr.mxu0 0.0
          %4089 = vmatpush1.msra.mxu0 %v3780
          %4090 = vmatprep.subr.mxu0 0.0
          %4091 = vmatpush1.msra.mxu0 %v3779
          %4092 = vmatprep.subr.mxu0 0.0
          %4093 = vmatpush1.msra.mxu0 %v3778
          %4094 = vmatprep.subr.mxu0 0.0
          %4095 = vmatpush1.msra.mxu0 %v3777
          %4096 = vmatprep.subr.mxu0 0.0
          %4097 = vmatpush1.msra.mxu0 %v3776
          %4098 = vmatprep.subr.mxu0 0.0
          %4099 = vmatpush1.msra.mxu0 %v3775
          %4100 = vmatprep.subr.mxu0 0.0
          %4101 = vmatpush2.msra.mxu0 %v3806
          %4102 = vmatprep.subr.mxu0 0.0
          %4103 = vmatpush2.msra.mxu0 %v3805
          %4104 = vmatprep.subr.mxu0 0.0
          %4105 = vmatpush2.msra.mxu0 %v3804
          %4106 = vmatprep.subr.mxu0 0.0
          %4107 = vmatpush2.msra.mxu0 %v3803
          %4108 = vmatprep.subr.mxu0 0.0
          %4109 = vmatpush2.msra.mxu0 %v3802
          %4110 = vmatprep.subr.mxu0 0.0
          %4111 = vmatpush2.msra.mxu0 %v3801
          %4112 = vmatprep.subr.mxu0 0.0
          %4113 = vmatpush2.msra.mxu0 %v3800
          %4114 = vmatprep.subr.mxu0 0.0
          %4115 = vmatpush2.msra.mxu0 %v3799
          %4116 = vmatprep.subr.mxu0 0.0
          %4117 = vmatpush2.msra.mxu0 %v3798
          %4118 = vmatprep.subr.mxu0 0.0
          %4119 = vmatpush2.msra.mxu0 %v3797
          %4120 = vmatprep.subr.mxu0 0.0
          %4121 = vmatpush2.msra.mxu0 %v3796
          %4122 = vmatprep.subr.mxu0 0.0
          %4123 = vmatpush2.msra.mxu0 %v3795
          %4124 = vmatprep.subr.mxu0 0.0
          %4125 = vmatpush2.msra.mxu0 %v3794
          %4126 = vmatprep.subr.mxu0 0.0
          %4127 = vmatpush2.msra.mxu0 %v3793
          %4128 = vmatprep.subr.mxu0 0.0
          %4129 = vmatpush2.msra.mxu0 %v3792
          %4130 = vmatprep.subr.mxu0 0.0
          %4131 = vmatpush2.msra.mxu0 %v3791
          %4132 = vmatprep.mubr.f32.mxu0 %v3849
          %4133 = vmatmul.mubr.f32.gmra.mxu0 %v3847
          %v4134 = vpop.f32.mrf.mxu0
          %v4135 = vadd.f32 %v4065, %v4134
          %v4136 = vpop.f32.mrf.mxu0
          %4137 = vdwg.mxu0
          %vm4138 = vcmask 58368
          %4139 = vst.msk [vmem:[#allocation4] sm:$0x3] %vm4138, %v4135
          %4141 = vrot.lane.b32.xlu0 %v4135, 120
          %v4142 = vpop.permute.xlu0 %4141
          %vm4144 = vcmask 25600
          %4145 = vst.msk [vmem:[#allocation8] sm:$0x3] %vm4144, %v4142
          %vm4146 = vcmask 91200
          %v4147 = vsel %vm4146, %v4135, -inf
          %4148 = vmax.xlane.f32.xlu0 %v4147
          %v4149 = vpop.xlane.xlu0 %4148
          %v4150 = vsub.f32 %v4135, %v4149
          %v4151 = vmul.f32 %v4150, 1.442695
          %v4152 = vpow.pop %v4151
          %4154 = vrot.lane.b32.xlu0 %v4152, 120
          %v4155 = vpop.permute.xlu0 %4154
          %v4157 = vsel %vm4144, %v4155, 0.0
          %4158 = vadd.xlane.f32.xlu0 %v4157
          %v4159 = vpop.xlane.xlu0 %4158
          %v4160 = vrcp.pop %v4159
          %v4161 = vmul.f32 %v4152, %v4160
          %4163 = vrot.lane.b32.xlu0 %v4161, 120
          %v4164 = vpop.permute.xlu0 %4163
          %4166 = vst.msk [vmem:[#allocation6] sm:$0x3] %vm4144, %v4164
        $region56: #{encoder_cnn_forward.3} parent=47 // pred_fallthru
          _
        // Predicated region
        $region57: #{encoder_cnn_forward.3} parent=47 // pred_check
          %p4167 = pneg %p188
        $region58: #{encoder_cnn_forward.3} parent=47 // pred_check_branch
          %4169 = sbr.rel (%p4167) target = $region60
        $region59: #{encoder_cnn_forward.3} parent=47 // pred_region
          %s4171 = ssub.s32 32, 32
          %4172 = vsyncadd [#allocation5], %s4171
          %s4174 = sshll.u32 [#allocation4], 4
          %s4175 = int_to_ptr.vmem [resolvable:$true] %s4174
          %4177 = dma.vmem_to_hbm [thread:$0]  %s4175, 32, %s7, [#allocation5]
        $region60: #{encoder_cnn_forward.3} parent=47 // pred_fallthru
          _
        // Predicated region
        $region61: #{encoder_cnn_forward.3} parent=47 // pred_check
          %p4178 = pneg %p209
        $region62: #{encoder_cnn_forward.3} parent=47 // pred_check_branch
          %4180 = sbr.rel (%p4178) target = $region64
        $region63: #{encoder_cnn_forward.3} parent=47 // pred_region
          %s4182 = ssub.s32 32, 32
          %4183 = vsyncadd [#allocation7], %s4182
          %s4185 = sshll.u32 [#allocation6], 4
          %s4186 = int_to_ptr.vmem [resolvable:$true] %s4185
          %4188 = dma.vmem_to_hbm [thread:$0]  %s4186, 32, %s8, [#allocation7]
        $region64: #{encoder_cnn_forward.3} parent=47 // pred_fallthru
          _
        // Predicated region
        $region65: #{encoder_cnn_forward.3} parent=47 // pred_check
          %p4189 = pneg %p230
        $region66: #{encoder_cnn_forward.3} parent=47 // pred_check_branch
          %4191 = sbr.rel (%p4189) target = $region68
        $region67: #{encoder_cnn_forward.3} parent=47 // pred_region
          %s4193 = ssub.s32 32, 32
          %4194 = vsyncadd [#allocation7], %s4193
          %s4196 = sshll.u32 [#allocation8], 4
          %s4197 = int_to_ptr.vmem [resolvable:$true] %s4196
          %4199 = dma.vmem_to_hbm [thread:$0]  %s4197, 32, %s9, [#allocation7]
        $region68: #{encoder_cnn_forward.3} parent=47 // pred_fallthru
          _
        // Predicated region
        $region69: #{encoder_cnn_forward.3} parent=47 // pred_check
          %p4200 = pneg %p188
        $region70: #{encoder_cnn_forward.3} parent=47 // pred_check_branch
          %4202 = sbr.rel (%p4200) target = $region72
        $region71: #{encoder_cnn_forward.3} parent=47 // pred_region
          %4203 = dma.done [#allocation5], 32
        $region72: #{encoder_cnn_forward.3} parent=47 // pred_fallthru
          _
        // Predicated region
        $region73: #{encoder_cnn_forward.3} parent=47 // pred_check
          %p4204 = pneg %p209
        $region74: #{encoder_cnn_forward.3} parent=47 // pred_check_branch
          %4206 = sbr.rel (%p4204) target = $region76
        $region75: #{encoder_cnn_forward.3} parent=47 // pred_region
          %4207 = dma.done [#allocation7], 32
        $region76: #{encoder_cnn_forward.3} parent=47 // pred_fallthru
          _
        // Predicated region
        $region77: #{encoder_cnn_forward.3} parent=47 // pred_check
          %p4208 = pneg %p230
        $region78: #{encoder_cnn_forward.3} parent=47 // pred_check_branch
          %4210 = sbr.rel (%p4208) target = $region80
        $region79: #{encoder_cnn_forward.3} parent=47 // pred_region
          %4211 = dma.done [#allocation7], 32
        $region80: #{encoder_cnn_forward.3} parent=47 // pred_fallthru
          _
      $region48: #{encoder_cnn_forward.3} parent=5 // pred_fallthru
        _
      %p4212 = scmp.le.s32.totalorder 2, %s18
      // Predicated region
      $region81: #{encoder_cnn_forward.3} parent=5 // pred_check
        %p4213 = pneg %p4212
      $region82: #{encoder_cnn_forward.3} parent=5 // pred_check_branch
        %4215 = sbr.rel (%p4213) target = $region84
      $region83: #{encoder_cnn_forward.3} parent=5 // pred_region
        %s4216 = ssub.s32 %s18, 2
      $region84: #{encoder_cnn_forward.3} parent=5 // pred_fallthru
        _
    $region6: #{encoder_cnn_forward.3} parent=1 // loop_footer
      %s22 = sadd.s32 1, %s18
    $region7: #{encoder_cnn_forward.3} parent=1 // loop_footer_branch
      %17 = sbr.rel target = $region3
    $region8: #{encoder_cnn_forward.3} parent=1 // loop_exit
      _
    %4217 = vsyncpa [#allocation5], 1
    %s4218 = scalar_lea.sflag [#allocation5], 1
    %4219 = vsyncpa %s4218, 1
    %4220 = vsyncpa [#allocation7], 1

</llo_original>
